<compile_context>
chip_gen: v6e
topology: v6e:2x2x1
jax: 0.10.0
libtpu: 0.0.40
codegen_flags: <defaults>
</compile_context>

<pallas_src>
import math

import jax
import jax.numpy as jnp
from jax.experimental import pallas as pl
from jax.experimental.pallas import tpu as pltpu

NEF = 256           # cfg.TRAIN.FLAG nef (also the eval default)
C_FEAT = 768        # Mixed_6e channels
C_CODE = 2048       # Mixed_7c channels
HW_FEAT = 17        # Mixed_6e spatial
HW_CODE = 8         # Mixed_7c spatial
P_CODE = HW_CODE * HW_CODE     # 64 pooled positions per image
P_FEAT = HW_FEAT * HW_FEAT     # 289 feature positions per image


def _round_up(x, m):
    return ((x + m - 1) // m) * m


# ---------------------------------------------------------------------------
# Pallas kernel 1: fused global avg-pool (8x8) + emb_cnn_code linear (batched)
# ---------------------------------------------------------------------------
def _head_kernel(x_ref, w_ref, b_ref, feat_ref, code_ref):
    # x_ref:    (TB, 64, 2048) bf16   Mixed_7c maps, spatial flattened on the sublane axis
    # w_ref:    (2048, NEF)    bf16   emb_cnn_code.weight^T
    # b_ref:    (1, NEF)       f32    emb_cnn_code.bias
    # feat_ref: (TB, 2048)     f32    feature_2048 (pooled)
    # code_ref: (TB, NEF)      f32    cnn_code
    #
    # avg_pool2d(k=8) == per-image mean over the 64 positions: a sublane (XLU) reduce
    # with f32 accumulation.  Because the reduce is per-image, a partial tail block
    # (batch % TB != 0) only produces garbage in output rows that Pallas masks on the
    # store; valid rows never read stale VMEM.  XLU slot is free on this mem-bound kernel.
    pooled = jnp.sum(x_ref[...], axis=1, dtype=jnp.float32) * (1.0 / P_CODE)
    feat_ref[...] = pooled
    code_ref[...] = (
        jnp.dot(pooled.astype(jnp.bfloat16), w_ref[...],
                preferred_element_type=jnp.float32)
        + b_ref[...]
    )


def _pick_tb(batch):
    """Batch rows per head grid step: as large as sensible (<=32, ~8 MiB bf16 x-block)
    while still giving >=2 parallel blocks (dual-TC v7x) once batch is large enough."""
    if batch <= 16:
        return batch                       # one full-extent block; nothing useful to split
    tb = max(8, _round_up(pl.cdiv(batch, 2), 8))
    return min(tb, 32)


def head_pallas(x7c, w_code_t, b_code):
    """x7c: (B, 64, 2048) bf16 -> (feature_2048 (B,2048) f32, cnn_code (B,NEF) f32)."""
    batch = x7c.shape[0]
    TB = _pick_tb(batch)
    grid_b = pl.cdiv(batch, TB)

    return pl.pallas_call(
        _head_kernel,
        out_shape=(
            jax.ShapeDtypeStruct((batch, C_CODE), jnp.float32),
            jax.ShapeDtypeStruct((batch, NEF), jnp.float32),
        ),
        grid=(grid_b,),
        in_specs=[
            pl.BlockSpec((TB, P_CODE, C_CODE), lambda i: (i, 0, 0)),
            pl.BlockSpec((C_CODE, NEF), lambda i: (0, 0)),
            pl.BlockSpec((1, NEF), lambda i: (0, 0)),
        ],
        out_specs=(
            pl.BlockSpec((TB, C_CODE), lambda i: (i, 0)),
            pl.BlockSpec((TB, NEF), lambda i: (i, 0)),
        ),
        compiler_params=pltpu.CompilerParams(
            dimension_semantics=("parallel",),
            # 2 x 8 MiB x-blocks at TB=32 + weight/output double-buffers + reduce temps;
            # explicit limit so the v5e 16 MiB / v7x 32 MiB scoped defaults never bite.
            vmem_limit_bytes=48 * 1024 * 1024,
        ),
    )(x7c, w_code_t, b_code)


# ---------------------------------------------------------------------------
# Pallas kernel 2: emb_features 1x1 conv (768 -> NEF), M-tiled flattened GEMM
# ---------------------------------------------------------------------------
def _conv1x1_kernel(x_ref, w_ref, o_ref):
    # x_ref: (TM, 768) bf16, w_ref: (768, NEF) bf16, o_ref: (TM, NEF) f32
    # Row-independent GEMM: a partial tail block computes on stale VMEM rows whose
    # outputs are masked on the partial store (safe).
    o_ref[...] = jnp.dot(x_ref[...], w_ref[...], preferred_element_type=jnp.float32)


def _pick_tm(m_rows):
    """Row tile for the flattened 1x1-conv GEMM: biggest 8-aligned tile (<=2048 rows,
    ~11 MiB double-buffered footprint) that still gives >=2..4 parallel blocks."""
    if m_rows <= 512:
        return m_rows                      # tiny problem: single full-extent block
    tm = max(512, _round_up(pl.cdiv(m_rows, 4), 8))
    return min(tm, 2048)


def conv1x1_pallas(x6e_rows, w_feat_t):
    """x6e_rows: (B*289, 768) bf16 -> (B*289, NEF) f32."""
    M = x6e_rows.shape[0]
    TM = _pick_tm(M)
    grid_m = pl.cdiv(M, TM)
    return pl.pallas_call(
        _conv1x1_kernel,
        out_shape=jax.ShapeDtypeStruct((M, NEF), jnp.float32),
        grid=(grid_m,),
        in_specs=[
            pl.BlockSpec((TM, C_FEAT), lambda i: (i, 0)),
            pl.BlockSpec((C_FEAT, NEF), lambda i: (0, 0)),
        ],
        out_specs=pl.BlockSpec((TM, NEF), lambda i: (i, 0)),
        compiler_params=pltpu.CompilerParams(
            dimension_semantics=("parallel",),
            vmem_limit_bytes=32 * 1024 * 1024,
        ),
    )(x6e_rows, w_feat_t)


# ---------------------------------------------------------------------------
# Deterministic parameter init (mirrors the module's trainable-weight init)
# ---------------------------------------------------------------------------
def init_params(key):
    k1, k2, k3, k4, k5 = jax.random.split(key, 5)
    initrange = 0.1
    # emb_features: Conv2d(768, nef, 1, 1, bias=False).weight.uniform_(-0.1, 0.1)
    w_feat = jax.random.uniform(k1, (NEF, C_FEAT), jnp.float32, -initrange, initrange)
    # emb_cnn_code: nn.Linear(2048, nef); weight.uniform_(-0.1, 0.1), default bias init
    w_code = jax.random.uniform(k2, (NEF, C_CODE), jnp.float32, -initrange, initrange)
    bbound = 1.0 / math.sqrt(C_CODE)
    b_code = jax.random.uniform(k3, (NEF,), jnp.float32, -bbound, bbound)
    # stand-in backbone projection matrices (frozen, synthetic)
    p_768 = jax.random.normal(k4, (3, C_FEAT), jnp.float32) * 0.1
    p_2048 = jax.random.normal(k5, (3, C_CODE), jnp.float32) * 0.1
    # emb weights stored pre-transposed AND pre-cast to bf16: the jitted forward does
    # no transpose/cast passes and the broadcast weight blocks DMA at 2 B/elt.
    return dict(
        w_feat_t=jnp.transpose(w_feat).astype(jnp.bfloat16),   # (768, NEF)
        w_code_t=jnp.transpose(w_code).astype(jnp.bfloat16),   # (2048, NEF)
        b_code=b_code.reshape(1, NEF),                         # (1, NEF) f32
        p_768=p_768,
        p_2048=p_2048,
    )


def _standin_backbone(x299_nchw, params):
    # TODO(synk): frozen pretrained Inception-v3 backbone replaced by a deterministic
    # stand-in producing identically-shaped Mixed_6e / Mixed_7c activations.
    # Emits bf16 at the source so no standalone cast pass over the activation slabs.
    B = x299_nchw.shape[0]
    x_nhwc = jnp.transpose(x299_nchw, (0, 2, 3, 1))                       # (B,299,299,3)
    f17 = jax.image.resize(x_nhwc, (B, HW_FEAT, HW_FEAT, 3), "bilinear")  # (B,17,17,3)
    f8 = jax.image.resize(x_nhwc, (B, HW_CODE, HW_CODE, 3), "bilinear")   # (B,8,8,3)
    feat6e = jax.nn.relu(
        jnp.einsum("bhwc,cd->bhwd", f17, params["p_768"])).astype(jnp.bfloat16)
    feat7c = jax.nn.relu(
        jnp.einsum("bhwc,cd->bhwd", f8, params["p_2048"])).astype(jnp.bfloat16)
    return feat6e, feat7c   # (B,17,17,768) bf16, (B,8,8,2048) bf16


# ---------------------------------------------------------------------------
# Full forward (matches CNN_ENCODER_2048F.forward return signature)
# ---------------------------------------------------------------------------
def cnn_encoder_2048f(x_nchw, params, features_nchw=True):
    B = x_nchw.shape[0]
    # F.interpolate(x, size=(299, 299), mode='bilinear', align_corners=False) parity:
    # antialias=False (matters when the input is larger than 299x299).
    x299 = jax.image.resize(x_nchw, (B, x_nchw.shape[1], 299, 299), "bilinear",
                            antialias=False)

    feat6e_nhwc, feat7c_nhwc = _standin_backbone(x299, params)            # bf16

    # Free contiguous reshapes (channel-last -> lane-dense rows), no extra HBM pass.
    x7c = feat7c_nhwc.reshape(B, P_CODE, C_CODE)                          # (B,64,2048) bf16
    x6e_rows = feat6e_nhwc.reshape(B * P_FEAT, C_FEAT)                    # (B*289,768) bf16

    # --- head: F.avg_pool2d(k=8) + view + emb_cnn_code (Pallas, fused & batched) ---
    feature_2048, cnn_code = head_pallas(x7c, params["w_code_t"], params["b_code"])

    # --- emb_features 1x1 conv on Mixed_6e map (Pallas, flattened M-tiled GEMM) ---
    feat_emb = conv1x1_pallas(x6e_rows, params["w_feat_t"])               # (B*289,NEF) f32
    features = feat_emb.reshape(B, HW_FEAT, HW_FEAT, NEF)
    if features_nchw:
        # PyTorch-parity layout; a consumer accepting the lane-dense (B,17,17,NEF) slab
        # can pass features_nchw=False and skip this extra read+write pass.
        features = jnp.transpose(features, (0, 3, 1, 2))                  # (B,NEF,17,17)

    return features, cnn_code, feature_2048


if __name__ == "__main__":
    key = jax.random.PRNGKey(0)
    kx, kp = jax.random.split(key)
    x = jax.random.normal(kx, (2, 3, 16, 16), jnp.float32)   # small NCHW image batch
    params = init_params(kp)

    features, cnn_code, feature_2048 = jax.jit(cnn_encoder_2048f)(x, params)
    jax.block_until_ready((features, cnn_code, feature_2048))

    assert features.shape == (2, NEF, HW_FEAT, HW_FEAT)
    assert cnn_code.shape == (2, NEF)
    assert feature_2048.shape == (2, C_CODE)

    # Plain-JAX reference of the head math (same bf16 inputs/weights) — loose tolerance
    # only guards against gross layout/transpose errors, not bf16 rounding.
    f6e_ref, f7c_ref = _standin_backbone(
        jax.image.resize(x, (2, 3, 299, 299), "bilinear", antialias=False), params)
    pooled_ref = jnp.mean(f7c_ref.reshape(2, P_CODE, C_CODE).astype(jnp.float32), axis=1)
    code_ref = pooled_ref @ params["w_code_t"].astype(jnp.float32) + params["b_code"]
    fmap_ref = (f6e_ref.reshape(2 * P_FEAT, C_FEAT).astype(jnp.float32)
                @ params["w_feat_t"].astype(jnp.float32)).reshape(2, HW_FEAT, HW_FEAT, NEF)
    fmap_ref = jnp.transpose(fmap_ref, (0, 3, 1, 2))
    assert jnp.allclose(feature_2048, pooled_ref, rtol=1e-1, atol=1e-1)
    assert jnp.allclose(cnn_code, code_ref, rtol=1e-1, atol=1e-1)
    assert jnp.allclose(features, fmap_ref, rtol=1e-1, atol=1e-1)

    print("KERNEL_OK")
</pallas_src>

<mosaic_0001>
module attributes {stable_mosaic.version = 11 : i64} {
  func.func @_head_kernel(%arg0: i32, %arg1: memref<2x64x2048xbf16, #tpu.memory_space<vmem>>, %arg2: memref<2048x256xbf16, #tpu.memory_space<vmem>>, %arg3: memref<1x256xf32, #tpu.memory_space<vmem>>, %arg4: memref<2x2048xf32, #tpu.memory_space<vmem>>, %arg5: memref<2x256xf32, #tpu.memory_space<vmem>>) attributes {dimension_semantics = [#tpu.dimension_semantics<parallel>], iteration_bounds = array<i64: 1>, scalar_prefetch = 0 : i64, scratch_operands = 0 : i64, tpu.core_type = #tpu.core_type<tc>, window_params = [{transform_indices = @transform_0, window_bounds = array<i64: 2, 64, 2048>}, {pipeline_mode = #tpu.pipeline_mode<synchronous>, transform_indices = @transform_1, window_bounds = array<i64: 2048, 256>}, {pipeline_mode = #tpu.pipeline_mode<synchronous>, transform_indices = @transform_2, window_bounds = array<i64: 1, 256>}, {transform_indices = @transform_3, window_bounds = array<i64: 2, 2048>}, {transform_indices = @transform_4, window_bounds = array<i64: 2, 256>}]} {
    %c0 = arith.constant 0 : index
    %c0_0 = arith.constant 0 : index
    %c0_1 = arith.constant 0 : index
    %0 = vector.load %arg1[%c0, %c0_0, %c0_1] : memref<2x64x2048xbf16, #tpu.memory_space<vmem>>, vector<2x64x2048xbf16>
    %1 = arith.extf %0 : vector<2x64x2048xbf16> to vector<2x64x2048xf32>
    %cst = arith.constant dense<0.000000e+00> : vector<2x2048xf32>
    %2 = vector.multi_reduction <add>, %1, %cst [1] : vector<2x64x2048xf32> to vector<2x2048xf32>
    %cst_2 = arith.constant 1.562500e-02 : f32
    %3 = vector.broadcast %cst_2 : f32 to vector<2x2048xf32>
    %4 = arith.mulf %2, %3 : vector<2x2048xf32>
    %c0_3 = arith.constant 0 : index
    %c0_4 = arith.constant 0 : index
    %5 = vector.load %arg4[%c0_3, %c0_4] : memref<2x2048xf32, #tpu.memory_space<vmem>>, vector<2x2048xf32>
    tpu.vector_store %arg4[%c0_3, %c0_4], %4 {strides = array<i32>} : memref<2x2048xf32, #tpu.memory_space<vmem>>, vector<2x2048xf32>,
    %6 = arith.truncf %4 : vector<2x2048xf32> to vector<2x2048xbf16>
    %c0_5 = arith.constant 0 : index
    %c0_6 = arith.constant 0 : index
    %7 = vector.load %arg2[%c0_5, %c0_6] : memref<2048x256xbf16, #tpu.memory_space<vmem>>, vector<2048x256xbf16>
    %cst_7 = arith.constant dense<0.000000e+00> : vector<2x256xf32>
    %8 = tpu.matmul %6, %7, %cst_7 {dimension_numbers = #tpu.dot_dimension_numbers<[1], [0], [0], [1], [0, 0, 1, 1], [], []>} : vector<2x2048xbf16>, vector<2048x256xbf16>, vector<2x256xf32> -> vector<2x256xf32>
    %c0_8 = arith.constant 0 : index
    %c0_9 = arith.constant 0 : index
    %9 = vector.load %arg3[%c0_8, %c0_9] : memref<1x256xf32, #tpu.memory_space<vmem>>, vector<1x256xf32>
    %10 = vector.broadcast %9 : vector<1x256xf32> to vector<2x256xf32>
    %11 = arith.addf %8, %10 : vector<2x256xf32>
    %c0_10 = arith.constant 0 : index
    %c0_11 = arith.constant 0 : index
    %12 = vector.load %arg5[%c0_10, %c0_11] : memref<2x256xf32, #tpu.memory_space<vmem>>, vector<2x256xf32>
    tpu.vector_store %arg5[%c0_10, %c0_11], %11 {strides = array<i32>} : memref<2x256xf32, #tpu.memory_space<vmem>>, vector<2x256xf32>,
    return
  }
  func.func @transform_0(%arg0: i32) -> (i32, i32, i32) {
    %c0_i32 = arith.constant 0 : i32
    %c0_i32_0 = arith.constant 0 : i32
    %c0_i32_1 = arith.constant 0 : i32
    return %arg0, %c0_i32, %c0_i32_0 : i32, i32, i32
  }
  func.func @transform_1(%arg0: i32) -> (i32, i32) {
    %c0_i32 = arith.constant 0 : i32
    %c0_i32_0 = arith.constant 0 : i32
    %c0_i32_1 = arith.constant 0 : i32
    return %c0_i32, %c0_i32_0 : i32, i32
  }
  func.func @transform_2(%arg0: i32) -> (i32, i32) {
    %c0_i32 = arith.constant 0 : i32
    %c0_i32_0 = arith.constant 0 : i32
    %c0_i32_1 = arith.constant 0 : i32
    return %c0_i32, %c0_i32_0 : i32, i32
  }
  func.func @transform_3(%arg0: i32) -> (i32, i32) {
    %c0_i32 = arith.constant 0 : i32
    %c0_i32_0 = arith.constant 0 : i32
    return %arg0, %c0_i32 : i32, i32
  }
  func.func @transform_4(%arg0: i32) -> (i32, i32) {
    %c0_i32 = arith.constant 0 : i32
    %c0_i32_0 = arith.constant 0 : i32
    return %arg0, %c0_i32 : i32, i32
  }
}

module attributes {stable_mosaic.version = 11 : i64} {
  func.func @_conv1x1_kernel(%arg0: i32, %arg1: memref<512x768xbf16, #tpu.memory_space<vmem>>, %arg2: memref<768x256xbf16, #tpu.memory_space<vmem>>, %arg3: memref<512x256xf32, #tpu.memory_space<vmem>>) attributes {dimension_semantics = [#tpu.dimension_semantics<parallel>], iteration_bounds = array<i64: 2>, scalar_prefetch = 0 : i64, scratch_operands = 0 : i64, tpu.core_type = #tpu.core_type<tc>, window_params = [{transform_indices = @transform_0, window_bounds = array<i64: 512, 768>}, {pipeline_mode = #tpu.pipeline_mode<synchronous>, transform_indices = @transform_1, window_bounds = array<i64: 768, 256>}, {transform_indices = @transform_2, window_bounds = array<i64: 512, 256>}]} {
    %c0 = arith.constant 0 : index
    %c0_0 = arith.constant 0 : index
    %0 = vector.load %arg1[%c0, %c0_0] : memref<512x768xbf16, #tpu.memory_space<vmem>>, vector<512x768xbf16>
    %c0_1 = arith.constant 0 : index
    %c0_2 = arith.constant 0 : index
    %1 = vector.load %arg2[%c0_1, %c0_2] : memref<768x256xbf16, #tpu.memory_space<vmem>>, vector<768x256xbf16>
    %cst = arith.constant dense<0.000000e+00> : vector<512x256xf32>
    %2 = tpu.matmul %0, %1, %cst {dimension_numbers = #tpu.dot_dimension_numbers<[1], [0], [0], [1], [0, 0, 1, 1], [], []>} : vector<512x768xbf16>, vector<768x256xbf16>, vector<512x256xf32> -> vector<512x256xf32>
    %c0_3 = arith.constant 0 : index
    %c0_4 = arith.constant 0 : index
    %3 = vector.load %arg3[%c0_3, %c0_4] : memref<512x256xf32, #tpu.memory_space<vmem>>, vector<512x256xf32>
    tpu.vector_store %arg3[%c0_3, %c0_4], %2 {strides = array<i32>} : memref<512x256xf32, #tpu.memory_space<vmem>>, vector<512x256xf32>,
    return
  }
  func.func @transform_0(%arg0: i32) -> (i32, i32) {
    %c0_i32 = arith.constant 0 : i32
    %c0_i32_0 = arith.constant 0 : i32
    return %arg0, %c0_i32 : i32, i32
  }
  func.func @transform_1(%arg0: i32) -> (i32, i32) {
    %c0_i32 = arith.constant 0 : i32
    %c0_i32_0 = arith.constant 0 : i32
    %c0_i32_1 = arith.constant 0 : i32
    return %c0_i32, %c0_i32_0 : i32, i32
  }
  func.func @transform_2(%arg0: i32) -> (i32, i32) {
    %c0_i32 = arith.constant 0 : i32
    %c0_i32_0 = arith.constant 0 : i32
    return %arg0, %c0_i32 : i32, i32
  }
}

</mosaic_0001>

<llo_original>
// kernel: cnn_encoder_2048f.2
$region0: #{cnn_encoder_2048f.2}
  #allocation0 [shape = 'u32[]', space=smem, size = 0x4, offset = 0x4, fixed_abs, tag = 'smem constant byte address 0x4 - core index']
  #allocation1 [shape = 'u32[144,128]{1,0:T(1,128)}', space=vmem, size = 0x12000, scoped, tag = 'internal scratch']
  %s0 = inlined_call_operand.vmem [shape: bf16[2,64,2048], index: 0, kind: input, shape index: {}]
  %s1 = inlined_call_operand.vmem [shape: bf16[2048,256], index: 1, kind: input, shape index: {}]
  %s2 = inlined_call_operand.vmem [shape: f32[1,256], index: 2, kind: input, shape index: {}]
  %s3 = inlined_call_operand.hbm [shape: f32[2,2048], index: 3, kind: output, shape index: {0}]
  %s4 = inlined_call_operand.hbm [shape: f32[2,256], index: 4, kind: output, shape index: {1}]
  %5 = xla_tuple %s3, %s4
  %s6 = sld [smem:[#allocation0]]
  $region30: #{cnn_encoder_2048f.2} parent=0
    _
  %s8 = ssub.s32 1, %s6
  %s9 = scalar_select 0, %s8, %s6
  $region1: #{cnn_encoder_2048f.2} parent=0
    #allocation2 [shape = 'u8[16384]{0}', space=vmem, size = 0x4000, scoped, tag = 'output window, operand 0, single buffered']
    #allocation3 [shape = 's32[1]{0}', space=sflag, size = 0x4, scoped, tag = 'scoped memory for cnn_encoder_2048f.2']
    #allocation4 [shape = 'u8[2048]{0}', space=vmem, size = 0x800, scoped, tag = 'output window, operand 1, single buffered']
    #allocation5 [shape = 's32[1]{0}', space=sflag, size = 0x4, scoped, tag = 'scoped memory for cnn_encoder_2048f.2']
    %10 = vsyncpa [#allocation3], 0
    %11 = vsyncpa [#allocation5], 0
    // Predicated region
    $region2: #{cnn_encoder_2048f.2} parent=1 // pred_check
      _
    $region3: #{cnn_encoder_2048f.2} parent=1 // pred_check_branch
      %13 = sbr.rel (0) target = $region5
    $region4: #{cnn_encoder_2048f.2} parent=1 // pred_region
      _
    $region5: #{cnn_encoder_2048f.2} parent=1 // pred_fallthru
      _
    // Predicated region
    $region6: #{cnn_encoder_2048f.2} parent=1 // pred_check
      _
    $region7: #{cnn_encoder_2048f.2} parent=1 // pred_check_branch
      %15 = sbr.rel (0) target = $region9
    $region8: #{cnn_encoder_2048f.2} parent=1 // pred_region
      _
    $region9: #{cnn_encoder_2048f.2} parent=1 // pred_fallthru
      _
    // Predicated region
    $region10: #{cnn_encoder_2048f.2} parent=1 // pred_check
      _
    $region11: #{cnn_encoder_2048f.2} parent=1 // pred_check_branch
      %17 = sbr.rel (0) target = $region13
    $region12: #{cnn_encoder_2048f.2} parent=1 // pred_region
      _
    $region13: #{cnn_encoder_2048f.2} parent=1 // pred_fallthru
      _
    %v18 = vld [vmem:[%s0] sm:$0xff]
    %v19 = vld [vmem:[%s0 + $0x8] sm:$0xff]
    %v20 = vld [vmem:[%s0 + $0x10] sm:$0xff]
    %v21 = vld [vmem:[%s0 + $0x18] sm:$0xff]
    %v22 = vld [vmem:[%s0 + $0x20] sm:$0xff]
    %v23 = vld [vmem:[%s0 + $0x28] sm:$0xff]
    %v24 = vld [vmem:[%s0 + $0x30] sm:$0xff]
    %v25 = vld [vmem:[%s0 + $0x38] sm:$0xff]
    %v26 = vld [vmem:[%s0 + $0x40] sm:$0xff]
    %v27 = vld [vmem:[%s0 + $0x48] sm:$0xff]
    %v28 = vld [vmem:[%s0 + $0x50] sm:$0xff]
    %v29 = vld [vmem:[%s0 + $0x58] sm:$0xff]
    %v30 = vld [vmem:[%s0 + $0x60] sm:$0xff]
    %v31 = vld [vmem:[%s0 + $0x68] sm:$0xff]
    %v32 = vld [vmem:[%s0 + $0x70] sm:$0xff]
    %v33 = vld [vmem:[%s0 + $0x78] sm:$0xff]
    %v34 = vld [vmem:[%s0 + $0x80] sm:$0xff]
    %v35 = vld [vmem:[%s0 + $0x88] sm:$0xff]
    %v36 = vld [vmem:[%s0 + $0x90] sm:$0xff]
    %v37 = vld [vmem:[%s0 + $0x98] sm:$0xff]
    %v38 = vld [vmem:[%s0 + $0xa0] sm:$0xff]
    %v39 = vld [vmem:[%s0 + $0xa8] sm:$0xff]
    %v40 = vld [vmem:[%s0 + $0xb0] sm:$0xff]
    %v41 = vld [vmem:[%s0 + $0xb8] sm:$0xff]
    %v42 = vld [vmem:[%s0 + $0xc0] sm:$0xff]
    %v43 = vld [vmem:[%s0 + $0xc8] sm:$0xff]
    %v44 = vld [vmem:[%s0 + $0xd0] sm:$0xff]
    %v45 = vld [vmem:[%s0 + $0xd8] sm:$0xff]
    %v46 = vld [vmem:[%s0 + $0xe0] sm:$0xff]
    %v47 = vld [vmem:[%s0 + $0xe8] sm:$0xff]
    %v48 = vld [vmem:[%s0 + $0xf0] sm:$0xff]
    %v49 = vld [vmem:[%s0 + $0xf8] sm:$0xff]
    %v50 = vld [vmem:[%s0 + $0x100] sm:$0xff]
    %v51 = vld [vmem:[%s0 + $0x108] sm:$0xff]
    %v52 = vld [vmem:[%s0 + $0x110] sm:$0xff]
    %v53 = vld [vmem:[%s0 + $0x118] sm:$0xff]
    %v54 = vld [vmem:[%s0 + $0x120] sm:$0xff]
    %v55 = vld [vmem:[%s0 + $0x128] sm:$0xff]
    %v56 = vld [vmem:[%s0 + $0x130] sm:$0xff]
    %v57 = vld [vmem:[%s0 + $0x138] sm:$0xff]
    %v58 = vld [vmem:[%s0 + $0x140] sm:$0xff]
    %v59 = vld [vmem:[%s0 + $0x148] sm:$0xff]
    %v60 = vld [vmem:[%s0 + $0x150] sm:$0xff]
    %v61 = vld [vmem:[%s0 + $0x158] sm:$0xff]
    %v62 = vld [vmem:[%s0 + $0x160] sm:$0xff]
    %v63 = vld [vmem:[%s0 + $0x168] sm:$0xff]
    %v64 = vld [vmem:[%s0 + $0x170] sm:$0xff]
    %v65 = vld [vmem:[%s0 + $0x178] sm:$0xff]
    %v66 = vld [vmem:[%s0 + $0x180] sm:$0xff]
    %v67 = vld [vmem:[%s0 + $0x188] sm:$0xff]
    %v68 = vld [vmem:[%s0 + $0x190] sm:$0xff]
    %v69 = vld [vmem:[%s0 + $0x198] sm:$0xff]
    %v70 = vld [vmem:[%s0 + $0x1a0] sm:$0xff]
    %v71 = vld [vmem:[%s0 + $0x1a8] sm:$0xff]
    %v72 = vld [vmem:[%s0 + $0x1b0] sm:$0xff]
    %v73 = vld [vmem:[%s0 + $0x1b8] sm:$0xff]
    %v74 = vld [vmem:[%s0 + $0x1c0] sm:$0xff]
    %v75 = vld [vmem:[%s0 + $0x1c8] sm:$0xff]
    %v76 = vld [vmem:[%s0 + $0x1d0] sm:$0xff]
    %v77 = vld [vmem:[%s0 + $0x1d8] sm:$0xff]
    %v78 = vld [vmem:[%s0 + $0x1e0] sm:$0xff]
    %v79 = vld [vmem:[%s0 + $0x1e8] sm:$0xff]
    %v80 = vld [vmem:[%s0 + $0x1f0] sm:$0xff]
    %v81 = vld [vmem:[%s0 + $0x1f8] sm:$0xff]
    %v82 = vld [vmem:[%s0 + $0x200] sm:$0xff]
    %v83 = vld [vmem:[%s0 + $0x208] sm:$0xff]
    %v84 = vld [vmem:[%s0 + $0x210] sm:$0xff]
    %v85 = vld [vmem:[%s0 + $0x218] sm:$0xff]
    %v86 = vld [vmem:[%s0 + $0x220] sm:$0xff]
    %v87 = vld [vmem:[%s0 + $0x228] sm:$0xff]
    %v88 = vld [vmem:[%s0 + $0x230] sm:$0xff]
    %v89 = vld [vmem:[%s0 + $0x238] sm:$0xff]
    %v90 = vld [vmem:[%s0 + $0x240] sm:$0xff]
    %v91 = vld [vmem:[%s0 + $0x248] sm:$0xff]
    %v92 = vld [vmem:[%s0 + $0x250] sm:$0xff]
    %v93 = vld [vmem:[%s0 + $0x258] sm:$0xff]
    %v94 = vld [vmem:[%s0 + $0x260] sm:$0xff]
    %v95 = vld [vmem:[%s0 + $0x268] sm:$0xff]
    %v96 = vld [vmem:[%s0 + $0x270] sm:$0xff]
    %v97 = vld [vmem:[%s0 + $0x278] sm:$0xff]
    %v98 = vld [vmem:[%s0 + $0x280] sm:$0xff]
    %v99 = vld [vmem:[%s0 + $0x288] sm:$0xff]
    %v100 = vld [vmem:[%s0 + $0x290] sm:$0xff]
    %v101 = vld [vmem:[%s0 + $0x298] sm:$0xff]
    %v102 = vld [vmem:[%s0 + $0x2a0] sm:$0xff]
    %v103 = vld [vmem:[%s0 + $0x2a8] sm:$0xff]
    %v104 = vld [vmem:[%s0 + $0x2b0] sm:$0xff]
    %v105 = vld [vmem:[%s0 + $0x2b8] sm:$0xff]
    %v106 = vld [vmem:[%s0 + $0x2c0] sm:$0xff]
    %v107 = vld [vmem:[%s0 + $0x2c8] sm:$0xff]
    %v108 = vld [vmem:[%s0 + $0x2d0] sm:$0xff]
    %v109 = vld [vmem:[%s0 + $0x2d8] sm:$0xff]
    %v110 = vld [vmem:[%s0 + $0x2e0] sm:$0xff]
    %v111 = vld [vmem:[%s0 + $0x2e8] sm:$0xff]
    %v112 = vld [vmem:[%s0 + $0x2f0] sm:$0xff]
    %v113 = vld [vmem:[%s0 + $0x2f8] sm:$0xff]
    %v114 = vld [vmem:[%s0 + $0x300] sm:$0xff]
    %v115 = vld [vmem:[%s0 + $0x308] sm:$0xff]
    %v116 = vld [vmem:[%s0 + $0x310] sm:$0xff]
    %v117 = vld [vmem:[%s0 + $0x318] sm:$0xff]
    %v118 = vld [vmem:[%s0 + $0x320] sm:$0xff]
    %v119 = vld [vmem:[%s0 + $0x328] sm:$0xff]
    %v120 = vld [vmem:[%s0 + $0x330] sm:$0xff]
    %v121 = vld [vmem:[%s0 + $0x338] sm:$0xff]
    %v122 = vld [vmem:[%s0 + $0x340] sm:$0xff]
    %v123 = vld [vmem:[%s0 + $0x348] sm:$0xff]
    %v124 = vld [vmem:[%s0 + $0x350] sm:$0xff]
    %v125 = vld [vmem:[%s0 + $0x358] sm:$0xff]
    %v126 = vld [vmem:[%s0 + $0x360] sm:$0xff]
    %v127 = vld [vmem:[%s0 + $0x368] sm:$0xff]
    %v128 = vld [vmem:[%s0 + $0x370] sm:$0xff]
    %v129 = vld [vmem:[%s0 + $0x378] sm:$0xff]
    %v130 = vld [vmem:[%s0 + $0x380] sm:$0xff]
    %v131 = vld [vmem:[%s0 + $0x388] sm:$0xff]
    %v132 = vld [vmem:[%s0 + $0x390] sm:$0xff]
    %v133 = vld [vmem:[%s0 + $0x398] sm:$0xff]
    %v134 = vld [vmem:[%s0 + $0x3a0] sm:$0xff]
    %v135 = vld [vmem:[%s0 + $0x3a8] sm:$0xff]
    %v136 = vld [vmem:[%s0 + $0x3b0] sm:$0xff]
    %v137 = vld [vmem:[%s0 + $0x3b8] sm:$0xff]
    %v138 = vld [vmem:[%s0 + $0x3c0] sm:$0xff]
    %v139 = vld [vmem:[%s0 + $0x3c8] sm:$0xff]
    %v140 = vld [vmem:[%s0 + $0x3d0] sm:$0xff]
    %v141 = vld [vmem:[%s0 + $0x3d8] sm:$0xff]
    %v142 = vld [vmem:[%s0 + $0x3e0] sm:$0xff]
    %v143 = vld [vmem:[%s0 + $0x3e8] sm:$0xff]
    %v144 = vld [vmem:[%s0 + $0x3f0] sm:$0xff]
    %v145 = vld [vmem:[%s0 + $0x3f8] sm:$0xff]
    %v146 = vunpack.c.l.bf16 %v18
    %v147 = vunpack.c.h.bf16 %v18
    %v148 = vunpack.c.l.bf16 %v19
    %v149 = vunpack.c.h.bf16 %v19
    %v150 = vunpack.c.l.bf16 %v20
    %v151 = vunpack.c.h.bf16 %v20
    %v152 = vunpack.c.l.bf16 %v21
    %v153 = vunpack.c.h.bf16 %v21
    %v154 = vunpack.c.l.bf16 %v22
    %v155 = vunpack.c.h.bf16 %v22
    %v156 = vunpack.c.l.bf16 %v23
    %v157 = vunpack.c.h.bf16 %v23
    %v158 = vunpack.c.l.bf16 %v24
    %v159 = vunpack.c.h.bf16 %v24
    %v160 = vunpack.c.l.bf16 %v25
    %v161 = vunpack.c.h.bf16 %v25
    %v162 = vunpack.c.l.bf16 %v26
    %v163 = vunpack.c.h.bf16 %v26
    %v164 = vunpack.c.l.bf16 %v27
    %v165 = vunpack.c.h.bf16 %v27
    %v166 = vunpack.c.l.bf16 %v28
    %v167 = vunpack.c.h.bf16 %v28
    %v168 = vunpack.c.l.bf16 %v29
    %v169 = vunpack.c.h.bf16 %v29
    %v170 = vunpack.c.l.bf16 %v30
    %v171 = vunpack.c.h.bf16 %v30
    %v172 = vunpack.c.l.bf16 %v31
    %v173 = vunpack.c.h.bf16 %v31
    %v174 = vunpack.c.l.bf16 %v32
    %v175 = vunpack.c.h.bf16 %v32
    %v176 = vunpack.c.l.bf16 %v33
    %v177 = vunpack.c.h.bf16 %v33
    %v178 = vunpack.c.l.bf16 %v34
    %v179 = vunpack.c.h.bf16 %v34
    %v180 = vunpack.c.l.bf16 %v35
    %v181 = vunpack.c.h.bf16 %v35
    %v182 = vunpack.c.l.bf16 %v36
    %v183 = vunpack.c.h.bf16 %v36
    %v184 = vunpack.c.l.bf16 %v37
    %v185 = vunpack.c.h.bf16 %v37
    %v186 = vunpack.c.l.bf16 %v38
    %v187 = vunpack.c.h.bf16 %v38
    %v188 = vunpack.c.l.bf16 %v39
    %v189 = vunpack.c.h.bf16 %v39
    %v190 = vunpack.c.l.bf16 %v40
    %v191 = vunpack.c.h.bf16 %v40
    %v192 = vunpack.c.l.bf16 %v41
    %v193 = vunpack.c.h.bf16 %v41
    %v194 = vunpack.c.l.bf16 %v42
    %v195 = vunpack.c.h.bf16 %v42
    %v196 = vunpack.c.l.bf16 %v43
    %v197 = vunpack.c.h.bf16 %v43
    %v198 = vunpack.c.l.bf16 %v44
    %v199 = vunpack.c.h.bf16 %v44
    %v200 = vunpack.c.l.bf16 %v45
    %v201 = vunpack.c.h.bf16 %v45
    %v202 = vunpack.c.l.bf16 %v46
    %v203 = vunpack.c.h.bf16 %v46
    %v204 = vunpack.c.l.bf16 %v47
    %v205 = vunpack.c.h.bf16 %v47
    %v206 = vunpack.c.l.bf16 %v48
    %v207 = vunpack.c.h.bf16 %v48
    %v208 = vunpack.c.l.bf16 %v49
    %v209 = vunpack.c.h.bf16 %v49
    %v210 = vunpack.c.l.bf16 %v50
    %v211 = vunpack.c.h.bf16 %v50
    %v212 = vunpack.c.l.bf16 %v51
    %v213 = vunpack.c.h.bf16 %v51
    %v214 = vunpack.c.l.bf16 %v52
    %v215 = vunpack.c.h.bf16 %v52
    %v216 = vunpack.c.l.bf16 %v53
    %v217 = vunpack.c.h.bf16 %v53
    %v218 = vunpack.c.l.bf16 %v54
    %v219 = vunpack.c.h.bf16 %v54
    %v220 = vunpack.c.l.bf16 %v55
    %v221 = vunpack.c.h.bf16 %v55
    %v222 = vunpack.c.l.bf16 %v56
    %v223 = vunpack.c.h.bf16 %v56
    %v224 = vunpack.c.l.bf16 %v57
    %v225 = vunpack.c.h.bf16 %v57
    %v226 = vunpack.c.l.bf16 %v58
    %v227 = vunpack.c.h.bf16 %v58
    %v228 = vunpack.c.l.bf16 %v59
    %v229 = vunpack.c.h.bf16 %v59
    %v230 = vunpack.c.l.bf16 %v60
    %v231 = vunpack.c.h.bf16 %v60
    %v232 = vunpack.c.l.bf16 %v61
    %v233 = vunpack.c.h.bf16 %v61
    %v234 = vunpack.c.l.bf16 %v62
    %v235 = vunpack.c.h.bf16 %v62
    %v236 = vunpack.c.l.bf16 %v63
    %v237 = vunpack.c.h.bf16 %v63
    %v238 = vunpack.c.l.bf16 %v64
    %v239 = vunpack.c.h.bf16 %v64
    %v240 = vunpack.c.l.bf16 %v65
    %v241 = vunpack.c.h.bf16 %v65
    %v242 = vunpack.c.l.bf16 %v66
    %v243 = vunpack.c.h.bf16 %v66
    %v244 = vunpack.c.l.bf16 %v67
    %v245 = vunpack.c.h.bf16 %v67
    %v246 = vunpack.c.l.bf16 %v68
    %v247 = vunpack.c.h.bf16 %v68
    %v248 = vunpack.c.l.bf16 %v69
    %v249 = vunpack.c.h.bf16 %v69
    %v250 = vunpack.c.l.bf16 %v70
    %v251 = vunpack.c.h.bf16 %v70
    %v252 = vunpack.c.l.bf16 %v71
    %v253 = vunpack.c.h.bf16 %v71
    %v254 = vunpack.c.l.bf16 %v72
    %v255 = vunpack.c.h.bf16 %v72
    %v256 = vunpack.c.l.bf16 %v73
    %v257 = vunpack.c.h.bf16 %v73
    %v258 = vunpack.c.l.bf16 %v74
    %v259 = vunpack.c.h.bf16 %v74
    %v260 = vunpack.c.l.bf16 %v75
    %v261 = vunpack.c.h.bf16 %v75
    %v262 = vunpack.c.l.bf16 %v76
    %v263 = vunpack.c.h.bf16 %v76
    %v264 = vunpack.c.l.bf16 %v77
    %v265 = vunpack.c.h.bf16 %v77
    %v266 = vunpack.c.l.bf16 %v78
    %v267 = vunpack.c.h.bf16 %v78
    %v268 = vunpack.c.l.bf16 %v79
    %v269 = vunpack.c.h.bf16 %v79
    %v270 = vunpack.c.l.bf16 %v80
    %v271 = vunpack.c.h.bf16 %v80
    %v272 = vunpack.c.l.bf16 %v81
    %v273 = vunpack.c.h.bf16 %v81
    %v274 = vunpack.c.l.bf16 %v82
    %v275 = vunpack.c.h.bf16 %v82
    %v276 = vunpack.c.l.bf16 %v83
    %v277 = vunpack.c.h.bf16 %v83
    %v278 = vunpack.c.l.bf16 %v84
    %v279 = vunpack.c.h.bf16 %v84
    %v280 = vunpack.c.l.bf16 %v85
    %v281 = vunpack.c.h.bf16 %v85
    %v282 = vunpack.c.l.bf16 %v86
    %v283 = vunpack.c.h.bf16 %v86
    %v284 = vunpack.c.l.bf16 %v87
    %v285 = vunpack.c.h.bf16 %v87
    %v286 = vunpack.c.l.bf16 %v88
    %v287 = vunpack.c.h.bf16 %v88
    %v288 = vunpack.c.l.bf16 %v89
    %v289 = vunpack.c.h.bf16 %v89
    %v290 = vunpack.c.l.bf16 %v90
    %v291 = vunpack.c.h.bf16 %v90
    %v292 = vunpack.c.l.bf16 %v91
    %v293 = vunpack.c.h.bf16 %v91
    %v294 = vunpack.c.l.bf16 %v92
    %v295 = vunpack.c.h.bf16 %v92
    %v296 = vunpack.c.l.bf16 %v93
    %v297 = vunpack.c.h.bf16 %v93
    %v298 = vunpack.c.l.bf16 %v94
    %v299 = vunpack.c.h.bf16 %v94
    %v300 = vunpack.c.l.bf16 %v95
    %v301 = vunpack.c.h.bf16 %v95
    %v302 = vunpack.c.l.bf16 %v96
    %v303 = vunpack.c.h.bf16 %v96
    %v304 = vunpack.c.l.bf16 %v97
    %v305 = vunpack.c.h.bf16 %v97
    %v306 = vunpack.c.l.bf16 %v98
    %v307 = vunpack.c.h.bf16 %v98
    %v308 = vunpack.c.l.bf16 %v99
    %v309 = vunpack.c.h.bf16 %v99
    %v310 = vunpack.c.l.bf16 %v100
    %v311 = vunpack.c.h.bf16 %v100
    %v312 = vunpack.c.l.bf16 %v101
    %v313 = vunpack.c.h.bf16 %v101
    %v314 = vunpack.c.l.bf16 %v102
    %v315 = vunpack.c.h.bf16 %v102
    %v316 = vunpack.c.l.bf16 %v103
    %v317 = vunpack.c.h.bf16 %v103
    %v318 = vunpack.c.l.bf16 %v104
    %v319 = vunpack.c.h.bf16 %v104
    %v320 = vunpack.c.l.bf16 %v105
    %v321 = vunpack.c.h.bf16 %v105
    %v322 = vunpack.c.l.bf16 %v106
    %v323 = vunpack.c.h.bf16 %v106
    %v324 = vunpack.c.l.bf16 %v107
    %v325 = vunpack.c.h.bf16 %v107
    %v326 = vunpack.c.l.bf16 %v108
    %v327 = vunpack.c.h.bf16 %v108
    %v328 = vunpack.c.l.bf16 %v109
    %v329 = vunpack.c.h.bf16 %v109
    %v330 = vunpack.c.l.bf16 %v110
    %v331 = vunpack.c.h.bf16 %v110
    %v332 = vunpack.c.l.bf16 %v111
    %v333 = vunpack.c.h.bf16 %v111
    %v334 = vunpack.c.l.bf16 %v112
    %v335 = vunpack.c.h.bf16 %v112
    %v336 = vunpack.c.l.bf16 %v113
    %v337 = vunpack.c.h.bf16 %v113
    %v338 = vunpack.c.l.bf16 %v114
    %v339 = vunpack.c.h.bf16 %v114
    %v340 = vunpack.c.l.bf16 %v115
    %v341 = vunpack.c.h.bf16 %v115
    %v342 = vunpack.c.l.bf16 %v116
    %v343 = vunpack.c.h.bf16 %v116
    %v344 = vunpack.c.l.bf16 %v117
    %v345 = vunpack.c.h.bf16 %v117
    %v346 = vunpack.c.l.bf16 %v118
    %v347 = vunpack.c.h.bf16 %v118
    %v348 = vunpack.c.l.bf16 %v119
    %v349 = vunpack.c.h.bf16 %v119
    %v350 = vunpack.c.l.bf16 %v120
    %v351 = vunpack.c.h.bf16 %v120
    %v352 = vunpack.c.l.bf16 %v121
    %v353 = vunpack.c.h.bf16 %v121
    %v354 = vunpack.c.l.bf16 %v122
    %v355 = vunpack.c.h.bf16 %v122
    %v356 = vunpack.c.l.bf16 %v123
    %v357 = vunpack.c.h.bf16 %v123
    %v358 = vunpack.c.l.bf16 %v124
    %v359 = vunpack.c.h.bf16 %v124
    %v360 = vunpack.c.l.bf16 %v125
    %v361 = vunpack.c.h.bf16 %v125
    %v362 = vunpack.c.l.bf16 %v126
    %v363 = vunpack.c.h.bf16 %v126
    %v364 = vunpack.c.l.bf16 %v127
    %v365 = vunpack.c.h.bf16 %v127
    %v366 = vunpack.c.l.bf16 %v128
    %v367 = vunpack.c.h.bf16 %v128
    %v368 = vunpack.c.l.bf16 %v129
    %v369 = vunpack.c.h.bf16 %v129
    %v370 = vunpack.c.l.bf16 %v130
    %v371 = vunpack.c.h.bf16 %v130
    %v372 = vunpack.c.l.bf16 %v131
    %v373 = vunpack.c.h.bf16 %v131
    %v374 = vunpack.c.l.bf16 %v132
    %v375 = vunpack.c.h.bf16 %v132
    %v376 = vunpack.c.l.bf16 %v133
    %v377 = vunpack.c.h.bf16 %v133
    %v378 = vunpack.c.l.bf16 %v134
    %v379 = vunpack.c.h.bf16 %v134
    %v380 = vunpack.c.l.bf16 %v135
    %v381 = vunpack.c.h.bf16 %v135
    %v382 = vunpack.c.l.bf16 %v136
    %v383 = vunpack.c.h.bf16 %v136
    %v384 = vunpack.c.l.bf16 %v137
    %v385 = vunpack.c.h.bf16 %v137
    %v386 = vunpack.c.l.bf16 %v138
    %v387 = vunpack.c.h.bf16 %v138
    %v388 = vunpack.c.l.bf16 %v139
    %v389 = vunpack.c.h.bf16 %v139
    %v390 = vunpack.c.l.bf16 %v140
    %v391 = vunpack.c.h.bf16 %v140
    %v392 = vunpack.c.l.bf16 %v141
    %v393 = vunpack.c.h.bf16 %v141
    %v394 = vunpack.c.l.bf16 %v142
    %v395 = vunpack.c.h.bf16 %v142
    %v396 = vunpack.c.l.bf16 %v143
    %v397 = vunpack.c.h.bf16 %v143
    %v398 = vunpack.c.l.bf16 %v144
    %v399 = vunpack.c.h.bf16 %v144
    %v400 = vunpack.c.l.bf16 %v145
    %v401 = vunpack.c.h.bf16 %v145
    %v402 = vadd.f32 %v146, %v162
    %v403 = vadd.f32 %v402, %v178
    %v404 = vadd.f32 %v403, %v194
    %v405 = vadd.f32 %v404, %v210
    %v406 = vadd.f32 %v405, %v226
    %v407 = vadd.f32 %v406, %v242
    %v408 = vadd.f32 %v407, %v258
    %v409 = vrot.slane %v408, 4
    %v410 = vadd.f32 %v408, %v409
    %v411 = vrot.slane %v410, 2
    %v412 = vadd.f32 %v410, %v411
    %v413 = vrot.slane %v412, 1
    %v414 = vadd.f32 %v412, %v413
    %v415 = vadd.f32 %v147, %v163
    %v416 = vadd.f32 %v415, %v179
    %v417 = vadd.f32 %v416, %v195
    %v418 = vadd.f32 %v417, %v211
    %v419 = vadd.f32 %v418, %v227
    %v420 = vadd.f32 %v419, %v243
    %v421 = vadd.f32 %v420, %v259
    %v422 = vrot.slane %v421, 4
    %v423 = vadd.f32 %v421, %v422
    %v424 = vrot.slane %v423, 2
    %v425 = vadd.f32 %v423, %v424
    %v426 = vrot.slane %v425, 1
    %v427 = vadd.f32 %v425, %v426
    %v428 = vadd.f32 %v148, %v164
    %v429 = vadd.f32 %v428, %v180
    %v430 = vadd.f32 %v429, %v196
    %v431 = vadd.f32 %v430, %v212
    %v432 = vadd.f32 %v431, %v228
    %v433 = vadd.f32 %v432, %v244
    %v434 = vadd.f32 %v433, %v260
    %v435 = vrot.slane %v434, 4
    %v436 = vadd.f32 %v434, %v435
    %v437 = vrot.slane %v436, 2
    %v438 = vadd.f32 %v436, %v437
    %v439 = vrot.slane %v438, 1
    %v440 = vadd.f32 %v438, %v439
    %v441 = vadd.f32 %v149, %v165
    %v442 = vadd.f32 %v441, %v181
    %v443 = vadd.f32 %v442, %v197
    %v444 = vadd.f32 %v443, %v213
    %v445 = vadd.f32 %v444, %v229
    %v446 = vadd.f32 %v445, %v245
    %v447 = vadd.f32 %v446, %v261
    %v448 = vrot.slane %v447, 4
    %v449 = vadd.f32 %v447, %v448
    %v450 = vrot.slane %v449, 2
    %v451 = vadd.f32 %v449, %v450
    %v452 = vrot.slane %v451, 1
    %v453 = vadd.f32 %v451, %v452
    %v454 = vadd.f32 %v150, %v166
    %v455 = vadd.f32 %v454, %v182
    %v456 = vadd.f32 %v455, %v198
    %v457 = vadd.f32 %v456, %v214
    %v458 = vadd.f32 %v457, %v230
    %v459 = vadd.f32 %v458, %v246
    %v460 = vadd.f32 %v459, %v262
    %v461 = vrot.slane %v460, 4
    %v462 = vadd.f32 %v460, %v461
    %v463 = vrot.slane %v462, 2
    %v464 = vadd.f32 %v462, %v463
    %v465 = vrot.slane %v464, 1
    %v466 = vadd.f32 %v464, %v465
    %v467 = vadd.f32 %v151, %v167
    %v468 = vadd.f32 %v467, %v183
    %v469 = vadd.f32 %v468, %v199
    %v470 = vadd.f32 %v469, %v215
    %v471 = vadd.f32 %v470, %v231
    %v472 = vadd.f32 %v471, %v247
    %v473 = vadd.f32 %v472, %v263
    %v474 = vrot.slane %v473, 4
    %v475 = vadd.f32 %v473, %v474
    %v476 = vrot.slane %v475, 2
    %v477 = vadd.f32 %v475, %v476
    %v478 = vrot.slane %v477, 1
    %v479 = vadd.f32 %v477, %v478
    %v480 = vadd.f32 %v152, %v168
    %v481 = vadd.f32 %v480, %v184
    %v482 = vadd.f32 %v481, %v200
    %v483 = vadd.f32 %v482, %v216
    %v484 = vadd.f32 %v483, %v232
    %v485 = vadd.f32 %v484, %v248
    %v486 = vadd.f32 %v485, %v264
    %v487 = vrot.slane %v486, 4
    %v488 = vadd.f32 %v486, %v487
    %v489 = vrot.slane %v488, 2
    %v490 = vadd.f32 %v488, %v489
    %v491 = vrot.slane %v490, 1
    %v492 = vadd.f32 %v490, %v491
    %v493 = vadd.f32 %v153, %v169
    %v494 = vadd.f32 %v493, %v185
    %v495 = vadd.f32 %v494, %v201
    %v496 = vadd.f32 %v495, %v217
    %v497 = vadd.f32 %v496, %v233
    %v498 = vadd.f32 %v497, %v249
    %v499 = vadd.f32 %v498, %v265
    %v500 = vrot.slane %v499, 4
    %v501 = vadd.f32 %v499, %v500
    %v502 = vrot.slane %v501, 2
    %v503 = vadd.f32 %v501, %v502
    %v504 = vrot.slane %v503, 1
    %v505 = vadd.f32 %v503, %v504
    %v506 = vadd.f32 %v154, %v170
    %v507 = vadd.f32 %v506, %v186
    %v508 = vadd.f32 %v507, %v202
    %v509 = vadd.f32 %v508, %v218
    %v510 = vadd.f32 %v509, %v234
    %v511 = vadd.f32 %v510, %v250
    %v512 = vadd.f32 %v511, %v266
    %v513 = vrot.slane %v512, 4
    %v514 = vadd.f32 %v512, %v513
    %v515 = vrot.slane %v514, 2
    %v516 = vadd.f32 %v514, %v515
    %v517 = vrot.slane %v516, 1
    %v518 = vadd.f32 %v516, %v517
    %v519 = vadd.f32 %v155, %v171
    %v520 = vadd.f32 %v519, %v187
    %v521 = vadd.f32 %v520, %v203
    %v522 = vadd.f32 %v521, %v219
    %v523 = vadd.f32 %v522, %v235
    %v524 = vadd.f32 %v523, %v251
    %v525 = vadd.f32 %v524, %v267
    %v526 = vrot.slane %v525, 4
    %v527 = vadd.f32 %v525, %v526
    %v528 = vrot.slane %v527, 2
    %v529 = vadd.f32 %v527, %v528
    %v530 = vrot.slane %v529, 1
    %v531 = vadd.f32 %v529, %v530
    %v532 = vadd.f32 %v156, %v172
    %v533 = vadd.f32 %v532, %v188
    %v534 = vadd.f32 %v533, %v204
    %v535 = vadd.f32 %v534, %v220
    %v536 = vadd.f32 %v535, %v236
    %v537 = vadd.f32 %v536, %v252
    %v538 = vadd.f32 %v537, %v268
    %v539 = vrot.slane %v538, 4
    %v540 = vadd.f32 %v538, %v539
    %v541 = vrot.slane %v540, 2
    %v542 = vadd.f32 %v540, %v541
    %v543 = vrot.slane %v542, 1
    %v544 = vadd.f32 %v542, %v543
    %v545 = vadd.f32 %v157, %v173
    %v546 = vadd.f32 %v545, %v189
    %v547 = vadd.f32 %v546, %v205
    %v548 = vadd.f32 %v547, %v221
    %v549 = vadd.f32 %v548, %v237
    %v550 = vadd.f32 %v549, %v253
    %v551 = vadd.f32 %v550, %v269
    %v552 = vrot.slane %v551, 4
    %v553 = vadd.f32 %v551, %v552
    %v554 = vrot.slane %v553, 2
    %v555 = vadd.f32 %v553, %v554
    %v556 = vrot.slane %v555, 1
    %v557 = vadd.f32 %v555, %v556
    %v558 = vadd.f32 %v158, %v174
    %v559 = vadd.f32 %v558, %v190
    %v560 = vadd.f32 %v559, %v206
    %v561 = vadd.f32 %v560, %v222
    %v562 = vadd.f32 %v561, %v238
    %v563 = vadd.f32 %v562, %v254
    %v564 = vadd.f32 %v563, %v270
    %v565 = vrot.slane %v564, 4
    %v566 = vadd.f32 %v564, %v565
    %v567 = vrot.slane %v566, 2
    %v568 = vadd.f32 %v566, %v567
    %v569 = vrot.slane %v568, 1
    %v570 = vadd.f32 %v568, %v569
    %v571 = vadd.f32 %v159, %v175
    %v572 = vadd.f32 %v571, %v191
    %v573 = vadd.f32 %v572, %v207
    %v574 = vadd.f32 %v573, %v223
    %v575 = vadd.f32 %v574, %v239
    %v576 = vadd.f32 %v575, %v255
    %v577 = vadd.f32 %v576, %v271
    %v578 = vrot.slane %v577, 4
    %v579 = vadd.f32 %v577, %v578
    %v580 = vrot.slane %v579, 2
    %v581 = vadd.f32 %v579, %v580
    %v582 = vrot.slane %v581, 1
    %v583 = vadd.f32 %v581, %v582
    %v584 = vadd.f32 %v160, %v176
    %v585 = vadd.f32 %v584, %v192
    %v586 = vadd.f32 %v585, %v208
    %v587 = vadd.f32 %v586, %v224
    %v588 = vadd.f32 %v587, %v240
    %v589 = vadd.f32 %v588, %v256
    %v590 = vadd.f32 %v589, %v272
    %v591 = vrot.slane %v590, 4
    %v592 = vadd.f32 %v590, %v591
    %v593 = vrot.slane %v592, 2
    %v594 = vadd.f32 %v592, %v593
    %v595 = vrot.slane %v594, 1
    %v596 = vadd.f32 %v594, %v595
    %v597 = vadd.f32 %v161, %v177
    %v598 = vadd.f32 %v597, %v193
    %v599 = vadd.f32 %v598, %v209
    %v600 = vadd.f32 %v599, %v225
    %v601 = vadd.f32 %v600, %v241
    %v602 = vadd.f32 %v601, %v257
    %v603 = vadd.f32 %v602, %v273
    %v604 = vrot.slane %v603, 4
    %v605 = vadd.f32 %v603, %v604
    %v606 = vrot.slane %v605, 2
    %v607 = vadd.f32 %v605, %v606
    %v608 = vrot.slane %v607, 1
    %v609 = vadd.f32 %v607, %v608
    %v610 = vadd.f32 %v274, %v290
    %v611 = vadd.f32 %v610, %v306
    %v612 = vadd.f32 %v611, %v322
    %v613 = vadd.f32 %v612, %v338
    %v614 = vadd.f32 %v613, %v354
    %v615 = vadd.f32 %v614, %v370
    %v616 = vadd.f32 %v615, %v386
    %v617 = vrot.slane %v616, 4
    %v618 = vadd.f32 %v616, %v617
    %v619 = vrot.slane %v618, 2
    %v620 = vadd.f32 %v618, %v619
    %v621 = vrot.slane %v620, 1
    %v622 = vadd.f32 %v620, %v621
    %v623 = vadd.f32 %v275, %v291
    %v624 = vadd.f32 %v623, %v307
    %v625 = vadd.f32 %v624, %v323
    %v626 = vadd.f32 %v625, %v339
    %v627 = vadd.f32 %v626, %v355
    %v628 = vadd.f32 %v627, %v371
    %v629 = vadd.f32 %v628, %v387
    %v630 = vrot.slane %v629, 4
    %v631 = vadd.f32 %v629, %v630
    %v632 = vrot.slane %v631, 2
    %v633 = vadd.f32 %v631, %v632
    %v634 = vrot.slane %v633, 1
    %v635 = vadd.f32 %v633, %v634
    %v636 = vadd.f32 %v276, %v292
    %v637 = vadd.f32 %v636, %v308
    %v638 = vadd.f32 %v637, %v324
    %v639 = vadd.f32 %v638, %v340
    %v640 = vadd.f32 %v639, %v356
    %v641 = vadd.f32 %v640, %v372
    %v642 = vadd.f32 %v641, %v388
    %v643 = vrot.slane %v642, 4
    %v644 = vadd.f32 %v642, %v643
    %v645 = vrot.slane %v644, 2
    %v646 = vadd.f32 %v644, %v645
    %v647 = vrot.slane %v646, 1
    %v648 = vadd.f32 %v646, %v647
    %v649 = vadd.f32 %v277, %v293
    %v650 = vadd.f32 %v649, %v309
    %v651 = vadd.f32 %v650, %v325
    %v652 = vadd.f32 %v651, %v341
    %v653 = vadd.f32 %v652, %v357
    %v654 = vadd.f32 %v653, %v373
    %v655 = vadd.f32 %v654, %v389
    %v656 = vrot.slane %v655, 4
    %v657 = vadd.f32 %v655, %v656
    %v658 = vrot.slane %v657, 2
    %v659 = vadd.f32 %v657, %v658
    %v660 = vrot.slane %v659, 1
    %v661 = vadd.f32 %v659, %v660
    %v662 = vadd.f32 %v278, %v294
    %v663 = vadd.f32 %v662, %v310
    %v664 = vadd.f32 %v663, %v326
    %v665 = vadd.f32 %v664, %v342
    %v666 = vadd.f32 %v665, %v358
    %v667 = vadd.f32 %v666, %v374
    %v668 = vadd.f32 %v667, %v390
    %v669 = vrot.slane %v668, 4
    %v670 = vadd.f32 %v668, %v669
    %v671 = vrot.slane %v670, 2
    %v672 = vadd.f32 %v670, %v671
    %v673 = vrot.slane %v672, 1
    %v674 = vadd.f32 %v672, %v673
    %v675 = vadd.f32 %v279, %v295
    %v676 = vadd.f32 %v675, %v311
    %v677 = vadd.f32 %v676, %v327
    %v678 = vadd.f32 %v677, %v343
    %v679 = vadd.f32 %v678, %v359
    %v680 = vadd.f32 %v679, %v375
    %v681 = vadd.f32 %v680, %v391
    %v682 = vrot.slane %v681, 4
    %v683 = vadd.f32 %v681, %v682
    %v684 = vrot.slane %v683, 2
    %v685 = vadd.f32 %v683, %v684
    %v686 = vrot.slane %v685, 1
    %v687 = vadd.f32 %v685, %v686
    %v688 = vadd.f32 %v280, %v296
    %v689 = vadd.f32 %v688, %v312
    %v690 = vadd.f32 %v689, %v328
    %v691 = vadd.f32 %v690, %v344
    %v692 = vadd.f32 %v691, %v360
    %v693 = vadd.f32 %v692, %v376
    %v694 = vadd.f32 %v693, %v392
    %v695 = vrot.slane %v694, 4
    %v696 = vadd.f32 %v694, %v695
    %v697 = vrot.slane %v696, 2
    %v698 = vadd.f32 %v696, %v697
    %v699 = vrot.slane %v698, 1
    %v700 = vadd.f32 %v698, %v699
    %v701 = vadd.f32 %v281, %v297
    %v702 = vadd.f32 %v701, %v313
    %v703 = vadd.f32 %v702, %v329
    %v704 = vadd.f32 %v703, %v345
    %v705 = vadd.f32 %v704, %v361
    %v706 = vadd.f32 %v705, %v377
    %v707 = vadd.f32 %v706, %v393
    %v708 = vrot.slane %v707, 4
    %v709 = vadd.f32 %v707, %v708
    %v710 = vrot.slane %v709, 2
    %v711 = vadd.f32 %v709, %v710
    %v712 = vrot.slane %v711, 1
    %v713 = vadd.f32 %v711, %v712
    %v714 = vadd.f32 %v282, %v298
    %v715 = vadd.f32 %v714, %v314
    %v716 = vadd.f32 %v715, %v330
    %v717 = vadd.f32 %v716, %v346
    %v718 = vadd.f32 %v717, %v362
    %v719 = vadd.f32 %v718, %v378
    %v720 = vadd.f32 %v719, %v394
    %v721 = vrot.slane %v720, 4
    %v722 = vadd.f32 %v720, %v721
    %v723 = vrot.slane %v722, 2
    %v724 = vadd.f32 %v722, %v723
    %v725 = vrot.slane %v724, 1
    %v726 = vadd.f32 %v724, %v725
    %v727 = vadd.f32 %v283, %v299
    %v728 = vadd.f32 %v727, %v315
    %v729 = vadd.f32 %v728, %v331
    %v730 = vadd.f32 %v729, %v347
    %v731 = vadd.f32 %v730, %v363
    %v732 = vadd.f32 %v731, %v379
    %v733 = vadd.f32 %v732, %v395
    %v734 = vrot.slane %v733, 4
    %v735 = vadd.f32 %v733, %v734
    %v736 = vrot.slane %v735, 2
    %v737 = vadd.f32 %v735, %v736
    %v738 = vrot.slane %v737, 1
    %v739 = vadd.f32 %v737, %v738
    %v740 = vadd.f32 %v284, %v300
    %v741 = vadd.f32 %v740, %v316
    %v742 = vadd.f32 %v741, %v332
    %v743 = vadd.f32 %v742, %v348
    %v744 = vadd.f32 %v743, %v364
    %v745 = vadd.f32 %v744, %v380
    %v746 = vadd.f32 %v745, %v396
    %v747 = vrot.slane %v746, 4
    %v748 = vadd.f32 %v746, %v747
    %v749 = vrot.slane %v748, 2
    %v750 = vadd.f32 %v748, %v749
    %v751 = vrot.slane %v750, 1
    %v752 = vadd.f32 %v750, %v751
    %v753 = vadd.f32 %v285, %v301
    %v754 = vadd.f32 %v753, %v317
    %v755 = vadd.f32 %v754, %v333
    %v756 = vadd.f32 %v755, %v349
    %v757 = vadd.f32 %v756, %v365
    %v758 = vadd.f32 %v757, %v381
    %v759 = vadd.f32 %v758, %v397
    %v760 = vrot.slane %v759, 4
    %v761 = vadd.f32 %v759, %v760
    %v762 = vrot.slane %v761, 2
    %v763 = vadd.f32 %v761, %v762
    %v764 = vrot.slane %v763, 1
    %v765 = vadd.f32 %v763, %v764
    %v766 = vadd.f32 %v286, %v302
    %v767 = vadd.f32 %v766, %v318
    %v768 = vadd.f32 %v767, %v334
    %v769 = vadd.f32 %v768, %v350
    %v770 = vadd.f32 %v769, %v366
    %v771 = vadd.f32 %v770, %v382
    %v772 = vadd.f32 %v771, %v398
    %v773 = vrot.slane %v772, 4
    %v774 = vadd.f32 %v772, %v773
    %v775 = vrot.slane %v774, 2
    %v776 = vadd.f32 %v774, %v775
    %v777 = vrot.slane %v776, 1
    %v778 = vadd.f32 %v776, %v777
    %v779 = vadd.f32 %v287, %v303
    %v780 = vadd.f32 %v779, %v319
    %v781 = vadd.f32 %v780, %v335
    %v782 = vadd.f32 %v781, %v351
    %v783 = vadd.f32 %v782, %v367
    %v784 = vadd.f32 %v783, %v383
    %v785 = vadd.f32 %v784, %v399
    %v786 = vrot.slane %v785, 4
    %v787 = vadd.f32 %v785, %v786
    %v788 = vrot.slane %v787, 2
    %v789 = vadd.f32 %v787, %v788
    %v790 = vrot.slane %v789, 1
    %v791 = vadd.f32 %v789, %v790
    %v792 = vadd.f32 %v288, %v304
    %v793 = vadd.f32 %v792, %v320
    %v794 = vadd.f32 %v793, %v336
    %v795 = vadd.f32 %v794, %v352
    %v796 = vadd.f32 %v795, %v368
    %v797 = vadd.f32 %v796, %v384
    %v798 = vadd.f32 %v797, %v400
    %v799 = vrot.slane %v798, 4
    %v800 = vadd.f32 %v798, %v799
    %v801 = vrot.slane %v800, 2
    %v802 = vadd.f32 %v800, %v801
    %v803 = vrot.slane %v802, 1
    %v804 = vadd.f32 %v802, %v803
    %v805 = vadd.f32 %v289, %v305
    %v806 = vadd.f32 %v805, %v321
    %v807 = vadd.f32 %v806, %v337
    %v808 = vadd.f32 %v807, %v353
    %v809 = vadd.f32 %v808, %v369
    %v810 = vadd.f32 %v809, %v385
    %v811 = vadd.f32 %v810, %v401
    %v812 = vrot.slane %v811, 4
    %v813 = vadd.f32 %v811, %v812
    %v814 = vrot.slane %v813, 2
    %v815 = vadd.f32 %v813, %v814
    %v816 = vrot.slane %v815, 1
    %v817 = vadd.f32 %v815, %v816
    %v818 = vmul.f32 %v414, 0.015625
    %v819 = vmul.f32 %v427, 0.015625
    %v820 = vmul.f32 %v440, 0.015625
    %v821 = vmul.f32 %v453, 0.015625
    %v822 = vmul.f32 %v466, 0.015625
    %v823 = vmul.f32 %v479, 0.015625
    %v824 = vmul.f32 %v492, 0.015625
    %v825 = vmul.f32 %v505, 0.015625
    %v826 = vmul.f32 %v518, 0.015625
    %v827 = vmul.f32 %v531, 0.015625
    %v828 = vmul.f32 %v544, 0.015625
    %v829 = vmul.f32 %v557, 0.015625
    %v830 = vmul.f32 %v570, 0.015625
    %v831 = vmul.f32 %v583, 0.015625
    %v832 = vmul.f32 %v596, 0.015625
    %v833 = vmul.f32 %v609, 0.015625
    %v834 = vmul.f32 %v622, 0.015625
    %v835 = vmul.f32 %v635, 0.015625
    %v836 = vmul.f32 %v648, 0.015625
    %v837 = vmul.f32 %v661, 0.015625
    %v838 = vmul.f32 %v674, 0.015625
    %v839 = vmul.f32 %v687, 0.015625
    %v840 = vmul.f32 %v700, 0.015625
    %v841 = vmul.f32 %v713, 0.015625
    %v842 = vmul.f32 %v726, 0.015625
    %v843 = vmul.f32 %v739, 0.015625
    %v844 = vmul.f32 %v752, 0.015625
    %v845 = vmul.f32 %v765, 0.015625
    %v846 = vmul.f32 %v778, 0.015625
    %v847 = vmul.f32 %v791, 0.015625
    %v848 = vmul.f32 %v804, 0.015625
    %v849 = vmul.f32 %v817, 0.015625
    %v882 = vcombine.low %v818, %v819
    %v883 = vcombine.low %v820, %v821
    %v885 = vunpack.c.l.s4 1983009808
    %v886 = vunpack.c.0.s8 %v885
    %v887 = vlaneseq
    %v888 = vshrl.u32 %v887, 7
    %v889 = vsub.s32 %v886, %v888
    %v890 = vrot.slane %v882, %v889
    %v892 = vunpack.c.l.s4 1983009808
    %v893 = vunpack.c.0.s8 %v892
    %v894 = vlaneseq
    %v895 = vshrl.u32 %v894, 7
    %v896 = vsub.s32 %v893, %v895
    %v897 = vrot.slane %v883, %v896
    %v898 = vcombine.low %v890, %v897
    %v899 = vcombine.low %v822, %v823
    %v900 = vcombine.low %v824, %v825
    %v902 = vunpack.c.l.s4 1983009808
    %v903 = vunpack.c.0.s8 %v902
    %v904 = vlaneseq
    %v905 = vshrl.u32 %v904, 7
    %v906 = vsub.s32 %v903, %v905
    %v907 = vrot.slane %v899, %v906
    %v909 = vunpack.c.l.s4 1983009808
    %v910 = vunpack.c.0.s8 %v909
    %v911 = vlaneseq
    %v912 = vshrl.u32 %v911, 7
    %v913 = vsub.s32 %v910, %v912
    %v914 = vrot.slane %v900, %v913
    %v915 = vcombine.low %v907, %v914
    %v916 = vcombine.low %v826, %v827
    %v917 = vcombine.low %v828, %v829
    %v919 = vunpack.c.l.s4 1983009808
    %v920 = vunpack.c.0.s8 %v919
    %v921 = vlaneseq
    %v922 = vshrl.u32 %v921, 7
    %v923 = vsub.s32 %v920, %v922
    %v924 = vrot.slane %v916, %v923
    %v926 = vunpack.c.l.s4 1983009808
    %v927 = vunpack.c.0.s8 %v926
    %v928 = vlaneseq
    %v929 = vshrl.u32 %v928, 7
    %v930 = vsub.s32 %v927, %v929
    %v931 = vrot.slane %v917, %v930
    %v932 = vcombine.low %v924, %v931
    %v933 = vcombine.low %v830, %v831
    %v934 = vcombine.low %v832, %v833
    %v936 = vunpack.c.l.s4 1983009808
    %v937 = vunpack.c.0.s8 %v936
    %v938 = vlaneseq
    %v939 = vshrl.u32 %v938, 7
    %v940 = vsub.s32 %v937, %v939
    %v941 = vrot.slane %v933, %v940
    %v943 = vunpack.c.l.s4 1983009808
    %v944 = vunpack.c.0.s8 %v943
    %v945 = vlaneseq
    %v946 = vshrl.u32 %v945, 7
    %v947 = vsub.s32 %v944, %v946
    %v948 = vrot.slane %v934, %v947
    %v949 = vcombine.low %v941, %v948
    %v950 = vcombine.low %v834, %v835
    %v951 = vcombine.low %v836, %v837
    %v953 = vunpack.c.l.s4 1983009808
    %v954 = vunpack.c.0.s8 %v953
    %v955 = vlaneseq
    %v956 = vshrl.u32 %v955, 7
    %v957 = vsub.s32 %v954, %v956
    %v958 = vrot.slane %v950, %v957
    %v960 = vunpack.c.l.s4 1983009808
    %v961 = vunpack.c.0.s8 %v960
    %v962 = vlaneseq
    %v963 = vshrl.u32 %v962, 7
    %v964 = vsub.s32 %v961, %v963
    %v965 = vrot.slane %v951, %v964
    %v966 = vcombine.low %v958, %v965
    %v967 = vcombine.low %v838, %v839
    %v968 = vcombine.low %v840, %v841
    %v970 = vunpack.c.l.s4 1983009808
    %v971 = vunpack.c.0.s8 %v970
    %v972 = vlaneseq
    %v973 = vshrl.u32 %v972, 7
    %v974 = vsub.s32 %v971, %v973
    %v975 = vrot.slane %v967, %v974
    %v977 = vunpack.c.l.s4 1983009808
    %v978 = vunpack.c.0.s8 %v977
    %v979 = vlaneseq
    %v980 = vshrl.u32 %v979, 7
    %v981 = vsub.s32 %v978, %v980
    %v982 = vrot.slane %v968, %v981
    %v983 = vcombine.low %v975, %v982
    %v984 = vcombine.low %v842, %v843
    %v985 = vcombine.low %v844, %v845
    %v987 = vunpack.c.l.s4 1983009808
    %v988 = vunpack.c.0.s8 %v987
    %v989 = vlaneseq
    %v990 = vshrl.u32 %v989, 7
    %v991 = vsub.s32 %v988, %v990
    %v992 = vrot.slane %v984, %v991
    %v994 = vunpack.c.l.s4 1983009808
    %v995 = vunpack.c.0.s8 %v994
    %v996 = vlaneseq
    %v997 = vshrl.u32 %v996, 7
    %v998 = vsub.s32 %v995, %v997
    %v999 = vrot.slane %v985, %v998
    %v1000 = vcombine.low %v992, %v999
    %v1001 = vcombine.low %v846, %v847
    %v1002 = vcombine.low %v848, %v849
    %v1004 = vunpack.c.l.s4 1983009808
    %v1005 = vunpack.c.0.s8 %v1004
    %v1006 = vlaneseq
    %v1007 = vshrl.u32 %v1006, 7
    %v1008 = vsub.s32 %v1005, %v1007
    %v1009 = vrot.slane %v1001, %v1008
    %v1011 = vunpack.c.l.s4 1983009808
    %v1012 = vunpack.c.0.s8 %v1011
    %v1013 = vlaneseq
    %v1014 = vshrl.u32 %v1013, 7
    %v1015 = vsub.s32 %v1012, %v1014
    %v1016 = vrot.slane %v1002, %v1015
    %v1017 = vcombine.low %v1009, %v1016
    %vm1018 = vcmask 1044484
    %v1019 = vsel %vm1018, %v898, %v898
    %vm1020 = vcmask 1046534
    %v1021 = vsel %vm1020, %v898, %v1019
    %v1022 = vrot.slane %v966, 7
    %vm1023 = vcmask 1041409
    %v1024 = vsel %vm1023, %v1022, %v1021
    %vm1025 = vcmask 1043459
    %v1026 = vsel %vm1025, %v1022, %v1024
    %vm1027 = vcmask 1045509
    %v1028 = vsel %vm1027, %v1022, %v1026
    %vm1029 = vcmask 1047559
    %v1030 = vsel %vm1029, %v1022, %v1028
    %v1031 = vsel %vm1018, %v915, %v915
    %v1032 = vsel %vm1020, %v915, %v1031
    %v1033 = vrot.slane %v983, 7
    %v1034 = vsel %vm1023, %v1033, %v1032
    %v1035 = vsel %vm1025, %v1033, %v1034
    %v1036 = vsel %vm1027, %v1033, %v1035
    %v1037 = vsel %vm1029, %v1033, %v1036
    %v1038 = vsel %vm1018, %v932, %v932
    %v1039 = vsel %vm1020, %v932, %v1038
    %v1040 = vrot.slane %v1000, 7
    %v1041 = vsel %vm1023, %v1040, %v1039
    %v1042 = vsel %vm1025, %v1040, %v1041
    %v1043 = vsel %vm1027, %v1040, %v1042
    %v1044 = vsel %vm1029, %v1040, %v1043
    %v1045 = vsel %vm1018, %v949, %v949
    %v1046 = vsel %vm1020, %v949, %v1045
    %v1047 = vrot.slane %v1017, 7
    %v1048 = vsel %vm1023, %v1047, %v1046
    %v1049 = vsel %vm1025, %v1047, %v1048
    %v1050 = vsel %vm1027, %v1047, %v1049
    %v1051 = vsel %vm1029, %v1047, %v1050
    %1056 = vst [vmem:[#allocation2] sm:$0xff] %v1030
    %1057 = vst [vmem:[#allocation2 + $0x8] sm:$0xff] %v1037
    %1058 = vst [vmem:[#allocation2 + $0x10] sm:$0xff] %v1044
    %1059 = vst [vmem:[#allocation2 + $0x18] sm:$0xff] %v1051
    %v1060 = vpack.c.bf16 %v818, %v818
    %v1061 = vpack.c.bf16 %v819, %v819
    %v1062 = vpack.c.bf16 %v820, %v820
    %v1063 = vpack.c.bf16 %v821, %v821
    %v1064 = vpack.c.bf16 %v822, %v822
    %v1065 = vpack.c.bf16 %v823, %v823
    %v1066 = vpack.c.bf16 %v824, %v824
    %v1067 = vpack.c.bf16 %v825, %v825
    %v1068 = vpack.c.bf16 %v826, %v826
    %v1069 = vpack.c.bf16 %v827, %v827
    %v1070 = vpack.c.bf16 %v828, %v828
    %v1071 = vpack.c.bf16 %v829, %v829
    %v1072 = vpack.c.bf16 %v830, %v830
    %v1073 = vpack.c.bf16 %v831, %v831
    %v1074 = vpack.c.bf16 %v832, %v832
    %v1075 = vpack.c.bf16 %v833, %v833
    %v1076 = vpack.c.bf16 %v834, %v834
    %v1077 = vpack.c.bf16 %v835, %v835
    %v1078 = vpack.c.bf16 %v836, %v836
    %v1079 = vpack.c.bf16 %v837, %v837
    %v1080 = vpack.c.bf16 %v838, %v838
    %v1081 = vpack.c.bf16 %v839, %v839
    %v1082 = vpack.c.bf16 %v840, %v840
    %v1083 = vpack.c.bf16 %v841, %v841
    %v1084 = vpack.c.bf16 %v842, %v842
    %v1085 = vpack.c.bf16 %v843, %v843
    %v1086 = vpack.c.bf16 %v844, %v844
    %v1087 = vpack.c.bf16 %v845, %v845
    %v1088 = vpack.c.bf16 %v846, %v846
    %v1089 = vpack.c.bf16 %v847, %v847
    %v1090 = vpack.c.bf16 %v848, %v848
    %v1091 = vpack.c.bf16 %v849, %v849
    %v1092 = vld [vmem:[%s1] sm:$0xff]
    %v1093 = vld [vmem:[%s1 + $0x8] sm:$0xff]
    %v1094 = vld [vmem:[%s1 + $0x10] sm:$0xff]
    %v1095 = vld [vmem:[%s1 + $0x18] sm:$0xff]
    %v1096 = vld [vmem:[%s1 + $0x20] sm:$0xff]
    %v1097 = vld [vmem:[%s1 + $0x28] sm:$0xff]
    %v1098 = vld [vmem:[%s1 + $0x30] sm:$0xff]
    %v1099 = vld [vmem:[%s1 + $0x38] sm:$0xff]
    %v1100 = vld [vmem:[%s1 + $0x40] sm:$0xff]
    %v1101 = vld [vmem:[%s1 + $0x48] sm:$0xff]
    %v1102 = vld [vmem:[%s1 + $0x50] sm:$0xff]
    %v1103 = vld [vmem:[%s1 + $0x58] sm:$0xff]
    %v1104 = vld [vmem:[%s1 + $0x60] sm:$0xff]
    %v1105 = vld [vmem:[%s1 + $0x68] sm:$0xff]
    %v1106 = vld [vmem:[%s1 + $0x70] sm:$0xff]
    %v1107 = vld [vmem:[%s1 + $0x78] sm:$0xff]
    %v1108 = vld [vmem:[%s1 + $0x80] sm:$0xff]
    %v1109 = vld [vmem:[%s1 + $0x88] sm:$0xff]
    %v1110 = vld [vmem:[%s1 + $0x90] sm:$0xff]
    %v1111 = vld [vmem:[%s1 + $0x98] sm:$0xff]
    %v1112 = vld [vmem:[%s1 + $0xa0] sm:$0xff]
    %v1113 = vld [vmem:[%s1 + $0xa8] sm:$0xff]
    %v1114 = vld [vmem:[%s1 + $0xb0] sm:$0xff]
    %v1115 = vld [vmem:[%s1 + $0xb8] sm:$0xff]
    %v1116 = vld [vmem:[%s1 + $0xc0] sm:$0xff]
    %v1117 = vld [vmem:[%s1 + $0xc8] sm:$0xff]
    %v1118 = vld [vmem:[%s1 + $0xd0] sm:$0xff]
    %v1119 = vld [vmem:[%s1 + $0xd8] sm:$0xff]
    %v1120 = vld [vmem:[%s1 + $0xe0] sm:$0xff]
    %v1121 = vld [vmem:[%s1 + $0xe8] sm:$0xff]
    %v1122 = vld [vmem:[%s1 + $0xf0] sm:$0xff]
    %v1123 = vld [vmem:[%s1 + $0xf8] sm:$0xff]
    %v1124 = vld [vmem:[%s1 + $0x100] sm:$0xff]
    %v1125 = vld [vmem:[%s1 + $0x108] sm:$0xff]
    %v1126 = vld [vmem:[%s1 + $0x110] sm:$0xff]
    %v1127 = vld [vmem:[%s1 + $0x118] sm:$0xff]
    %v1128 = vld [vmem:[%s1 + $0x120] sm:$0xff]
    %v1129 = vld [vmem:[%s1 + $0x128] sm:$0xff]
    %v1130 = vld [vmem:[%s1 + $0x130] sm:$0xff]
    %v1131 = vld [vmem:[%s1 + $0x138] sm:$0xff]
    %v1132 = vld [vmem:[%s1 + $0x140] sm:$0xff]
    %v1133 = vld [vmem:[%s1 + $0x148] sm:$0xff]
    %v1134 = vld [vmem:[%s1 + $0x150] sm:$0xff]
    %v1135 = vld [vmem:[%s1 + $0x158] sm:$0xff]
    %v1136 = vld [vmem:[%s1 + $0x160] sm:$0xff]
    %v1137 = vld [vmem:[%s1 + $0x168] sm:$0xff]
    %v1138 = vld [vmem:[%s1 + $0x170] sm:$0xff]
    %v1139 = vld [vmem:[%s1 + $0x178] sm:$0xff]
    %v1140 = vld [vmem:[%s1 + $0x180] sm:$0xff]
    %v1141 = vld [vmem:[%s1 + $0x188] sm:$0xff]
    %v1142 = vld [vmem:[%s1 + $0x190] sm:$0xff]
    %v1143 = vld [vmem:[%s1 + $0x198] sm:$0xff]
    %v1144 = vld [vmem:[%s1 + $0x1a0] sm:$0xff]
    %v1145 = vld [vmem:[%s1 + $0x1a8] sm:$0xff]
    %v1146 = vld [vmem:[%s1 + $0x1b0] sm:$0xff]
    %v1147 = vld [vmem:[%s1 + $0x1b8] sm:$0xff]
    %v1148 = vld [vmem:[%s1 + $0x1c0] sm:$0xff]
    %v1149 = vld [vmem:[%s1 + $0x1c8] sm:$0xff]
    %v1150 = vld [vmem:[%s1 + $0x1d0] sm:$0xff]
    %v1151 = vld [vmem:[%s1 + $0x1d8] sm:$0xff]
    %v1152 = vld [vmem:[%s1 + $0x1e0] sm:$0xff]
    %v1153 = vld [vmem:[%s1 + $0x1e8] sm:$0xff]
    %v1154 = vld [vmem:[%s1 + $0x1f0] sm:$0xff]
    %v1155 = vld [vmem:[%s1 + $0x1f8] sm:$0xff]
    %v1156 = vld [vmem:[%s1 + $0x200] sm:$0xff]
    %v1157 = vld [vmem:[%s1 + $0x208] sm:$0xff]
    %v1158 = vld [vmem:[%s1 + $0x210] sm:$0xff]
    %v1159 = vld [vmem:[%s1 + $0x218] sm:$0xff]
    %v1160 = vld [vmem:[%s1 + $0x220] sm:$0xff]
    %v1161 = vld [vmem:[%s1 + $0x228] sm:$0xff]
    %v1162 = vld [vmem:[%s1 + $0x230] sm:$0xff]
    %v1163 = vld [vmem:[%s1 + $0x238] sm:$0xff]
    %v1164 = vld [vmem:[%s1 + $0x240] sm:$0xff]
    %v1165 = vld [vmem:[%s1 + $0x248] sm:$0xff]
    %v1166 = vld [vmem:[%s1 + $0x250] sm:$0xff]
    %v1167 = vld [vmem:[%s1 + $0x258] sm:$0xff]
    %v1168 = vld [vmem:[%s1 + $0x260] sm:$0xff]
    %v1169 = vld [vmem:[%s1 + $0x268] sm:$0xff]
    %v1170 = vld [vmem:[%s1 + $0x270] sm:$0xff]
    %v1171 = vld [vmem:[%s1 + $0x278] sm:$0xff]
    %v1172 = vld [vmem:[%s1 + $0x280] sm:$0xff]
    %v1173 = vld [vmem:[%s1 + $0x288] sm:$0xff]
    %v1174 = vld [vmem:[%s1 + $0x290] sm:$0xff]
    %v1175 = vld [vmem:[%s1 + $0x298] sm:$0xff]
    %v1176 = vld [vmem:[%s1 + $0x2a0] sm:$0xff]
    %v1177 = vld [vmem:[%s1 + $0x2a8] sm:$0xff]
    %v1178 = vld [vmem:[%s1 + $0x2b0] sm:$0xff]
    %v1179 = vld [vmem:[%s1 + $0x2b8] sm:$0xff]
    %v1180 = vld [vmem:[%s1 + $0x2c0] sm:$0xff]
    %v1181 = vld [vmem:[%s1 + $0x2c8] sm:$0xff]
    %v1182 = vld [vmem:[%s1 + $0x2d0] sm:$0xff]
    %v1183 = vld [vmem:[%s1 + $0x2d8] sm:$0xff]
    %v1184 = vld [vmem:[%s1 + $0x2e0] sm:$0xff]
    %v1185 = vld [vmem:[%s1 + $0x2e8] sm:$0xff]
    %v1186 = vld [vmem:[%s1 + $0x2f0] sm:$0xff]
    %v1187 = vld [vmem:[%s1 + $0x2f8] sm:$0xff]
    %v1188 = vld [vmem:[%s1 + $0x300] sm:$0xff]
    %v1189 = vld [vmem:[%s1 + $0x308] sm:$0xff]
    %v1190 = vld [vmem:[%s1 + $0x310] sm:$0xff]
    %v1191 = vld [vmem:[%s1 + $0x318] sm:$0xff]
    %v1192 = vld [vmem:[%s1 + $0x320] sm:$0xff]
    %v1193 = vld [vmem:[%s1 + $0x328] sm:$0xff]
    %v1194 = vld [vmem:[%s1 + $0x330] sm:$0xff]
    %v1195 = vld [vmem:[%s1 + $0x338] sm:$0xff]
    %v1196 = vld [vmem:[%s1 + $0x340] sm:$0xff]
    %v1197 = vld [vmem:[%s1 + $0x348] sm:$0xff]
    %v1198 = vld [vmem:[%s1 + $0x350] sm:$0xff]
    %v1199 = vld [vmem:[%s1 + $0x358] sm:$0xff]
    %v1200 = vld [vmem:[%s1 + $0x360] sm:$0xff]
    %v1201 = vld [vmem:[%s1 + $0x368] sm:$0xff]
    %v1202 = vld [vmem:[%s1 + $0x370] sm:$0xff]
    %v1203 = vld [vmem:[%s1 + $0x378] sm:$0xff]
    %v1204 = vld [vmem:[%s1 + $0x380] sm:$0xff]
    %v1205 = vld [vmem:[%s1 + $0x388] sm:$0xff]
    %v1206 = vld [vmem:[%s1 + $0x390] sm:$0xff]
    %v1207 = vld [vmem:[%s1 + $0x398] sm:$0xff]
    %v1208 = vld [vmem:[%s1 + $0x3a0] sm:$0xff]
    %v1209 = vld [vmem:[%s1 + $0x3a8] sm:$0xff]
    %v1210 = vld [vmem:[%s1 + $0x3b0] sm:$0xff]
    %v1211 = vld [vmem:[%s1 + $0x3b8] sm:$0xff]
    %v1212 = vld [vmem:[%s1 + $0x3c0] sm:$0xff]
    %v1213 = vld [vmem:[%s1 + $0x3c8] sm:$0xff]
    %v1214 = vld [vmem:[%s1 + $0x3d0] sm:$0xff]
    %v1215 = vld [vmem:[%s1 + $0x3d8] sm:$0xff]
    %v1216 = vld [vmem:[%s1 + $0x3e0] sm:$0xff]
    %v1217 = vld [vmem:[%s1 + $0x3e8] sm:$0xff]
    %v1218 = vld [vmem:[%s1 + $0x3f0] sm:$0xff]
    %v1219 = vld [vmem:[%s1 + $0x3f8] sm:$0xff]
    %v1220 = vld [vmem:[%s1 + $0x400] sm:$0xff]
    %v1221 = vld [vmem:[%s1 + $0x408] sm:$0xff]
    %v1222 = vld [vmem:[%s1 + $0x410] sm:$0xff]
    %v1223 = vld [vmem:[%s1 + $0x418] sm:$0xff]
    %v1224 = vld [vmem:[%s1 + $0x420] sm:$0xff]
    %v1225 = vld [vmem:[%s1 + $0x428] sm:$0xff]
    %v1226 = vld [vmem:[%s1 + $0x430] sm:$0xff]
    %v1227 = vld [vmem:[%s1 + $0x438] sm:$0xff]
    %v1228 = vld [vmem:[%s1 + $0x440] sm:$0xff]
    %v1229 = vld [vmem:[%s1 + $0x448] sm:$0xff]
    %v1230 = vld [vmem:[%s1 + $0x450] sm:$0xff]
    %v1231 = vld [vmem:[%s1 + $0x458] sm:$0xff]
    %v1232 = vld [vmem:[%s1 + $0x460] sm:$0xff]
    %v1233 = vld [vmem:[%s1 + $0x468] sm:$0xff]
    %v1234 = vld [vmem:[%s1 + $0x470] sm:$0xff]
    %v1235 = vld [vmem:[%s1 + $0x478] sm:$0xff]
    %v1236 = vld [vmem:[%s1 + $0x480] sm:$0xff]
    %v1237 = vld [vmem:[%s1 + $0x488] sm:$0xff]
    %v1238 = vld [vmem:[%s1 + $0x490] sm:$0xff]
    %v1239 = vld [vmem:[%s1 + $0x498] sm:$0xff]
    %v1240 = vld [vmem:[%s1 + $0x4a0] sm:$0xff]
    %v1241 = vld [vmem:[%s1 + $0x4a8] sm:$0xff]
    %v1242 = vld [vmem:[%s1 + $0x4b0] sm:$0xff]
    %v1243 = vld [vmem:[%s1 + $0x4b8] sm:$0xff]
    %v1244 = vld [vmem:[%s1 + $0x4c0] sm:$0xff]
    %v1245 = vld [vmem:[%s1 + $0x4c8] sm:$0xff]
    %v1246 = vld [vmem:[%s1 + $0x4d0] sm:$0xff]
    %v1247 = vld [vmem:[%s1 + $0x4d8] sm:$0xff]
    %v1248 = vld [vmem:[%s1 + $0x4e0] sm:$0xff]
    %v1249 = vld [vmem:[%s1 + $0x4e8] sm:$0xff]
    %v1250 = vld [vmem:[%s1 + $0x4f0] sm:$0xff]
    %v1251 = vld [vmem:[%s1 + $0x4f8] sm:$0xff]
    %v1252 = vld [vmem:[%s1 + $0x500] sm:$0xff]
    %v1253 = vld [vmem:[%s1 + $0x508] sm:$0xff]
    %v1254 = vld [vmem:[%s1 + $0x510] sm:$0xff]
    %v1255 = vld [vmem:[%s1 + $0x518] sm:$0xff]
    %v1256 = vld [vmem:[%s1 + $0x520] sm:$0xff]
    %v1257 = vld [vmem:[%s1 + $0x528] sm:$0xff]
    %v1258 = vld [vmem:[%s1 + $0x530] sm:$0xff]
    %v1259 = vld [vmem:[%s1 + $0x538] sm:$0xff]
    %v1260 = vld [vmem:[%s1 + $0x540] sm:$0xff]
    %v1261 = vld [vmem:[%s1 + $0x548] sm:$0xff]
    %v1262 = vld [vmem:[%s1 + $0x550] sm:$0xff]
    %v1263 = vld [vmem:[%s1 + $0x558] sm:$0xff]
    %v1264 = vld [vmem:[%s1 + $0x560] sm:$0xff]
    %v1265 = vld [vmem:[%s1 + $0x568] sm:$0xff]
    %v1266 = vld [vmem:[%s1 + $0x570] sm:$0xff]
    %v1267 = vld [vmem:[%s1 + $0x578] sm:$0xff]
    %v1268 = vld [vmem:[%s1 + $0x580] sm:$0xff]
    %v1269 = vld [vmem:[%s1 + $0x588] sm:$0xff]
    %v1270 = vld [vmem:[%s1 + $0x590] sm:$0xff]
    %v1271 = vld [vmem:[%s1 + $0x598] sm:$0xff]
    %v1272 = vld [vmem:[%s1 + $0x5a0] sm:$0xff]
    %v1273 = vld [vmem:[%s1 + $0x5a8] sm:$0xff]
    %v1274 = vld [vmem:[%s1 + $0x5b0] sm:$0xff]
    %v1275 = vld [vmem:[%s1 + $0x5b8] sm:$0xff]
    %v1276 = vld [vmem:[%s1 + $0x5c0] sm:$0xff]
    %v1277 = vld [vmem:[%s1 + $0x5c8] sm:$0xff]
    %v1278 = vld [vmem:[%s1 + $0x5d0] sm:$0xff]
    %v1279 = vld [vmem:[%s1 + $0x5d8] sm:$0xff]
    %v1280 = vld [vmem:[%s1 + $0x5e0] sm:$0xff]
    %v1281 = vld [vmem:[%s1 + $0x5e8] sm:$0xff]
    %v1282 = vld [vmem:[%s1 + $0x5f0] sm:$0xff]
    %v1283 = vld [vmem:[%s1 + $0x5f8] sm:$0xff]
    %v1284 = vld [vmem:[%s1 + $0x600] sm:$0xff]
    %v1285 = vld [vmem:[%s1 + $0x608] sm:$0xff]
    %v1286 = vld [vmem:[%s1 + $0x610] sm:$0xff]
    %v1287 = vld [vmem:[%s1 + $0x618] sm:$0xff]
    %v1288 = vld [vmem:[%s1 + $0x620] sm:$0xff]
    %v1289 = vld [vmem:[%s1 + $0x628] sm:$0xff]
    %v1290 = vld [vmem:[%s1 + $0x630] sm:$0xff]
    %v1291 = vld [vmem:[%s1 + $0x638] sm:$0xff]
    %v1292 = vld [vmem:[%s1 + $0x640] sm:$0xff]
    %v1293 = vld [vmem:[%s1 + $0x648] sm:$0xff]
    %v1294 = vld [vmem:[%s1 + $0x650] sm:$0xff]
    %v1295 = vld [vmem:[%s1 + $0x658] sm:$0xff]
    %v1296 = vld [vmem:[%s1 + $0x660] sm:$0xff]
    %v1297 = vld [vmem:[%s1 + $0x668] sm:$0xff]
    %v1298 = vld [vmem:[%s1 + $0x670] sm:$0xff]
    %v1299 = vld [vmem:[%s1 + $0x678] sm:$0xff]
    %v1300 = vld [vmem:[%s1 + $0x680] sm:$0xff]
    %v1301 = vld [vmem:[%s1 + $0x688] sm:$0xff]
    %v1302 = vld [vmem:[%s1 + $0x690] sm:$0xff]
    %v1303 = vld [vmem:[%s1 + $0x698] sm:$0xff]
    %v1304 = vld [vmem:[%s1 + $0x6a0] sm:$0xff]
    %v1305 = vld [vmem:[%s1 + $0x6a8] sm:$0xff]
    %v1306 = vld [vmem:[%s1 + $0x6b0] sm:$0xff]
    %v1307 = vld [vmem:[%s1 + $0x6b8] sm:$0xff]
    %v1308 = vld [vmem:[%s1 + $0x6c0] sm:$0xff]
    %v1309 = vld [vmem:[%s1 + $0x6c8] sm:$0xff]
    %v1310 = vld [vmem:[%s1 + $0x6d0] sm:$0xff]
    %v1311 = vld [vmem:[%s1 + $0x6d8] sm:$0xff]
    %v1312 = vld [vmem:[%s1 + $0x6e0] sm:$0xff]
    %v1313 = vld [vmem:[%s1 + $0x6e8] sm:$0xff]
    %v1314 = vld [vmem:[%s1 + $0x6f0] sm:$0xff]
    %v1315 = vld [vmem:[%s1 + $0x6f8] sm:$0xff]
    %v1316 = vld [vmem:[%s1 + $0x700] sm:$0xff]
    %v1317 = vld [vmem:[%s1 + $0x708] sm:$0xff]
    %v1318 = vld [vmem:[%s1 + $0x710] sm:$0xff]
    %v1319 = vld [vmem:[%s1 + $0x718] sm:$0xff]
    %v1320 = vld [vmem:[%s1 + $0x720] sm:$0xff]
    %v1321 = vld [vmem:[%s1 + $0x728] sm:$0xff]
    %v1322 = vld [vmem:[%s1 + $0x730] sm:$0xff]
    %v1323 = vld [vmem:[%s1 + $0x738] sm:$0xff]
    %v1324 = vld [vmem:[%s1 + $0x740] sm:$0xff]
    %v1325 = vld [vmem:[%s1 + $0x748] sm:$0xff]
    %v1326 = vld [vmem:[%s1 + $0x750] sm:$0xff]
    %v1327 = vld [vmem:[%s1 + $0x758] sm:$0xff]
    %v1328 = vld [vmem:[%s1 + $0x760] sm:$0xff]
    %v1329 = vld [vmem:[%s1 + $0x768] sm:$0xff]
    %v1330 = vld [vmem:[%s1 + $0x770] sm:$0xff]
    %v1331 = vld [vmem:[%s1 + $0x778] sm:$0xff]
    %v1332 = vld [vmem:[%s1 + $0x780] sm:$0xff]
    %v1333 = vld [vmem:[%s1 + $0x788] sm:$0xff]
    %v1334 = vld [vmem:[%s1 + $0x790] sm:$0xff]
    %v1335 = vld [vmem:[%s1 + $0x798] sm:$0xff]
    %v1336 = vld [vmem:[%s1 + $0x7a0] sm:$0xff]
    %v1337 = vld [vmem:[%s1 + $0x7a8] sm:$0xff]
    %v1338 = vld [vmem:[%s1 + $0x7b0] sm:$0xff]
    %v1339 = vld [vmem:[%s1 + $0x7b8] sm:$0xff]
    %v1340 = vld [vmem:[%s1 + $0x7c0] sm:$0xff]
    %v1341 = vld [vmem:[%s1 + $0x7c8] sm:$0xff]
    %v1342 = vld [vmem:[%s1 + $0x7d0] sm:$0xff]
    %v1343 = vld [vmem:[%s1 + $0x7d8] sm:$0xff]
    %v1344 = vld [vmem:[%s1 + $0x7e0] sm:$0xff]
    %v1345 = vld [vmem:[%s1 + $0x7e8] sm:$0xff]
    %v1346 = vld [vmem:[%s1 + $0x7f0] sm:$0xff]
    %v1347 = vld [vmem:[%s1 + $0x7f8] sm:$0xff]
    %v1348 = vld [vmem:[%s2] sm:$0x3]
    %v1350 = vlaneseq
    %v1351 = vshrl.u32 %v1350, 7
    %v1352 = vsub.s32 0, %v1351
    %v1353 = vrot.slane %v1348, %v1352
    %v1354 = vlaneseq
    %v1355 = vshrl.u32 %v1354, 7
    %v1356 = vsub.s32 1, %v1355
    %v1357 = vrot.slane %v1348, %v1356
    %v1392 = vunpack.c.l.b16 %v1060
    %v1393 = vunpack.c.l.b16 %v1061
    %v1394 = vunpack.c.l.b16 %v1062
    %v1395 = vunpack.c.l.b16 %v1063
    %v1396 = vunpack.c.l.b16 %v1064
    %v1397 = vunpack.c.l.b16 %v1065
    %v1398 = vunpack.c.l.b16 %v1066
    %v1399 = vunpack.c.l.b16 %v1067
    %v1400 = vunpack.c.l.b16 %v1068
    %v1401 = vunpack.c.l.b16 %v1069
    %v1402 = vunpack.c.l.b16 %v1070
    %v1403 = vunpack.c.l.b16 %v1071
    %v1404 = vunpack.c.l.b16 %v1072
    %v1405 = vunpack.c.l.b16 %v1073
    %v1406 = vunpack.c.l.b16 %v1074
    %v1407 = vunpack.c.l.b16 %v1075
    %v1408 = vunpack.c.l.b16 %v1076
    %v1409 = vunpack.c.l.b16 %v1077
    %v1410 = vunpack.c.l.b16 %v1078
    %v1411 = vunpack.c.l.b16 %v1079
    %v1412 = vunpack.c.l.b16 %v1080
    %v1413 = vunpack.c.l.b16 %v1081
    %v1414 = vunpack.c.l.b16 %v1082
    %v1415 = vunpack.c.l.b16 %v1083
    %v1416 = vunpack.c.l.b16 %v1084
    %v1417 = vunpack.c.l.b16 %v1085
    %v1418 = vunpack.c.l.b16 %v1086
    %v1419 = vunpack.c.l.b16 %v1087
    %v1420 = vunpack.c.l.b16 %v1088
    %v1421 = vunpack.c.l.b16 %v1089
    %v1422 = vunpack.c.l.b16 %v1090
    %v1423 = vunpack.c.l.b16 %v1091
    %v1424 = vsel %vm1023, %v1408, %v1392
    %v1425 = vsel %vm1023, %v1409, %v1393
    %v1426 = vsel %vm1023, %v1410, %v1394
    %v1427 = vsel %vm1023, %v1411, %v1395
    %v1428 = vsel %vm1023, %v1412, %v1396
    %v1429 = vsel %vm1023, %v1413, %v1397
    %v1430 = vsel %vm1023, %v1414, %v1398
    %v1431 = vsel %vm1023, %v1415, %v1399
    %v1432 = vsel %vm1023, %v1416, %v1400
    %v1433 = vsel %vm1023, %v1417, %v1401
    %v1434 = vsel %vm1023, %v1418, %v1402
    %v1435 = vsel %vm1023, %v1419, %v1403
    %v1436 = vsel %vm1023, %v1420, %v1404
    %v1437 = vsel %vm1023, %v1421, %v1405
    %v1438 = vsel %vm1023, %v1422, %v1406
    %v1439 = vsel %vm1023, %v1423, %v1407
    %v1440 = vpack.c.b16 %v1424, %v1424
    %v1441 = vpack.c.b16 %v1425, %v1425
    %v1442 = vpack.c.b16 %v1426, %v1426
    %v1443 = vpack.c.b16 %v1427, %v1427
    %v1444 = vpack.c.b16 %v1428, %v1428
    %v1445 = vpack.c.b16 %v1429, %v1429
    %v1446 = vpack.c.b16 %v1430, %v1430
    %v1447 = vpack.c.b16 %v1431, %v1431
    %v1448 = vpack.c.b16 %v1432, %v1432
    %v1449 = vpack.c.b16 %v1433, %v1433
    %v1450 = vpack.c.b16 %v1434, %v1434
    %v1451 = vpack.c.b16 %v1435, %v1435
    %v1452 = vpack.c.b16 %v1436, %v1436
    %v1453 = vpack.c.b16 %v1437, %v1437
    %v1454 = vpack.c.b16 %v1438, %v1438
    %v1455 = vpack.c.b16 %v1439, %v1439
    %v1728 = vunpack.c.l.b16 %v1092
    %v1729 = vunpack.c.h.b16 %v1092
    %v1730 = vunpack.c.l.b16 %v1093
    %v1731 = vunpack.c.h.b16 %v1093
    %v1732 = vunpack.c.l.b16 %v1094
    %v1733 = vunpack.c.h.b16 %v1094
    %v1734 = vunpack.c.l.b16 %v1095
    %v1735 = vunpack.c.h.b16 %v1095
    %v1736 = vunpack.c.l.b16 %v1096
    %v1737 = vunpack.c.h.b16 %v1096
    %v1738 = vunpack.c.l.b16 %v1097
    %v1739 = vunpack.c.h.b16 %v1097
    %v1740 = vunpack.c.l.b16 %v1098
    %v1741 = vunpack.c.h.b16 %v1098
    %v1742 = vunpack.c.l.b16 %v1099
    %v1743 = vunpack.c.h.b16 %v1099
    %v1744 = vunpack.c.l.b16 %v1100
    %v1745 = vunpack.c.h.b16 %v1100
    %v1746 = vunpack.c.l.b16 %v1101
    %v1747 = vunpack.c.h.b16 %v1101
    %v1748 = vunpack.c.l.b16 %v1102
    %v1749 = vunpack.c.h.b16 %v1102
    %v1750 = vunpack.c.l.b16 %v1103
    %v1751 = vunpack.c.h.b16 %v1103
    %v1752 = vunpack.c.l.b16 %v1104
    %v1753 = vunpack.c.h.b16 %v1104
    %v1754 = vunpack.c.l.b16 %v1105
    %v1755 = vunpack.c.h.b16 %v1105
    %v1756 = vunpack.c.l.b16 %v1106
    %v1757 = vunpack.c.h.b16 %v1106
    %v1758 = vunpack.c.l.b16 %v1107
    %v1759 = vunpack.c.h.b16 %v1107
    %v1760 = vunpack.c.l.b16 %v1108
    %v1761 = vunpack.c.h.b16 %v1108
    %v1762 = vunpack.c.l.b16 %v1109
    %v1763 = vunpack.c.h.b16 %v1109
    %v1764 = vunpack.c.l.b16 %v1110
    %v1765 = vunpack.c.h.b16 %v1110
    %v1766 = vunpack.c.l.b16 %v1111
    %v1767 = vunpack.c.h.b16 %v1111
    %v1768 = vunpack.c.l.b16 %v1112
    %v1769 = vunpack.c.h.b16 %v1112
    %v1770 = vunpack.c.l.b16 %v1113
    %v1771 = vunpack.c.h.b16 %v1113
    %v1772 = vunpack.c.l.b16 %v1114
    %v1773 = vunpack.c.h.b16 %v1114
    %v1774 = vunpack.c.l.b16 %v1115
    %v1775 = vunpack.c.h.b16 %v1115
    %v1776 = vunpack.c.l.b16 %v1116
    %v1777 = vunpack.c.h.b16 %v1116
    %v1778 = vunpack.c.l.b16 %v1117
    %v1779 = vunpack.c.h.b16 %v1117
    %v1780 = vunpack.c.l.b16 %v1118
    %v1781 = vunpack.c.h.b16 %v1118
    %v1782 = vunpack.c.l.b16 %v1119
    %v1783 = vunpack.c.h.b16 %v1119
    %v1784 = vunpack.c.l.b16 %v1120
    %v1785 = vunpack.c.h.b16 %v1120
    %v1786 = vunpack.c.l.b16 %v1121
    %v1787 = vunpack.c.h.b16 %v1121
    %v1788 = vunpack.c.l.b16 %v1122
    %v1789 = vunpack.c.h.b16 %v1122
    %v1790 = vunpack.c.l.b16 %v1123
    %v1791 = vunpack.c.h.b16 %v1123
    %v1792 = vunpack.c.l.b16 %v1124
    %v1793 = vunpack.c.h.b16 %v1124
    %v1794 = vunpack.c.l.b16 %v1125
    %v1795 = vunpack.c.h.b16 %v1125
    %v1796 = vunpack.c.l.b16 %v1126
    %v1797 = vunpack.c.h.b16 %v1126
    %v1798 = vunpack.c.l.b16 %v1127
    %v1799 = vunpack.c.h.b16 %v1127
    %v1800 = vunpack.c.l.b16 %v1128
    %v1801 = vunpack.c.h.b16 %v1128
    %v1802 = vunpack.c.l.b16 %v1129
    %v1803 = vunpack.c.h.b16 %v1129
    %v1804 = vunpack.c.l.b16 %v1130
    %v1805 = vunpack.c.h.b16 %v1130
    %v1806 = vunpack.c.l.b16 %v1131
    %v1807 = vunpack.c.h.b16 %v1131
    %v1808 = vunpack.c.l.b16 %v1132
    %v1809 = vunpack.c.h.b16 %v1132
    %v1810 = vunpack.c.l.b16 %v1133
    %v1811 = vunpack.c.h.b16 %v1133
    %v1812 = vunpack.c.l.b16 %v1134
    %v1813 = vunpack.c.h.b16 %v1134
    %v1814 = vunpack.c.l.b16 %v1135
    %v1815 = vunpack.c.h.b16 %v1135
    %v1816 = vunpack.c.l.b16 %v1136
    %v1817 = vunpack.c.h.b16 %v1136
    %v1818 = vunpack.c.l.b16 %v1137
    %v1819 = vunpack.c.h.b16 %v1137
    %v1820 = vunpack.c.l.b16 %v1138
    %v1821 = vunpack.c.h.b16 %v1138
    %v1822 = vunpack.c.l.b16 %v1139
    %v1823 = vunpack.c.h.b16 %v1139
    %v1824 = vunpack.c.l.b16 %v1140
    %v1825 = vunpack.c.h.b16 %v1140
    %v1826 = vunpack.c.l.b16 %v1141
    %v1827 = vunpack.c.h.b16 %v1141
    %v1828 = vunpack.c.l.b16 %v1142
    %v1829 = vunpack.c.h.b16 %v1142
    %v1830 = vunpack.c.l.b16 %v1143
    %v1831 = vunpack.c.h.b16 %v1143
    %v1832 = vunpack.c.l.b16 %v1144
    %v1833 = vunpack.c.h.b16 %v1144
    %v1834 = vunpack.c.l.b16 %v1145
    %v1835 = vunpack.c.h.b16 %v1145
    %v1836 = vunpack.c.l.b16 %v1146
    %v1837 = vunpack.c.h.b16 %v1146
    %v1838 = vunpack.c.l.b16 %v1147
    %v1839 = vunpack.c.h.b16 %v1147
    %v1840 = vunpack.c.l.b16 %v1148
    %v1841 = vunpack.c.h.b16 %v1148
    %v1842 = vunpack.c.l.b16 %v1149
    %v1843 = vunpack.c.h.b16 %v1149
    %v1844 = vunpack.c.l.b16 %v1150
    %v1845 = vunpack.c.h.b16 %v1150
    %v1846 = vunpack.c.l.b16 %v1151
    %v1847 = vunpack.c.h.b16 %v1151
    %v1848 = vunpack.c.l.b16 %v1152
    %v1849 = vunpack.c.h.b16 %v1152
    %v1850 = vunpack.c.l.b16 %v1153
    %v1851 = vunpack.c.h.b16 %v1153
    %v1852 = vunpack.c.l.b16 %v1154
    %v1853 = vunpack.c.h.b16 %v1154
    %v1854 = vunpack.c.l.b16 %v1155
    %v1855 = vunpack.c.h.b16 %v1155
    %v1856 = vunpack.c.l.b16 %v1156
    %v1857 = vunpack.c.h.b16 %v1156
    %v1858 = vunpack.c.l.b16 %v1157
    %v1859 = vunpack.c.h.b16 %v1157
    %v1860 = vunpack.c.l.b16 %v1158
    %v1861 = vunpack.c.h.b16 %v1158
    %v1862 = vunpack.c.l.b16 %v1159
    %v1863 = vunpack.c.h.b16 %v1159
    %v1864 = vunpack.c.l.b16 %v1160
    %v1865 = vunpack.c.h.b16 %v1160
    %v1866 = vunpack.c.l.b16 %v1161
    %v1867 = vunpack.c.h.b16 %v1161
    %v1868 = vunpack.c.l.b16 %v1162
    %v1869 = vunpack.c.h.b16 %v1162
    %v1870 = vunpack.c.l.b16 %v1163
    %v1871 = vunpack.c.h.b16 %v1163
    %v1872 = vunpack.c.l.b16 %v1164
    %v1873 = vunpack.c.h.b16 %v1164
    %v1874 = vunpack.c.l.b16 %v1165
    %v1875 = vunpack.c.h.b16 %v1165
    %v1876 = vunpack.c.l.b16 %v1166
    %v1877 = vunpack.c.h.b16 %v1166
    %v1878 = vunpack.c.l.b16 %v1167
    %v1879 = vunpack.c.h.b16 %v1167
    %v1880 = vunpack.c.l.b16 %v1168
    %v1881 = vunpack.c.h.b16 %v1168
    %v1882 = vunpack.c.l.b16 %v1169
    %v1883 = vunpack.c.h.b16 %v1169
    %v1884 = vunpack.c.l.b16 %v1170
    %v1885 = vunpack.c.h.b16 %v1170
    %v1886 = vunpack.c.l.b16 %v1171
    %v1887 = vunpack.c.h.b16 %v1171
    %v1888 = vunpack.c.l.b16 %v1172
    %v1889 = vunpack.c.h.b16 %v1172
    %v1890 = vunpack.c.l.b16 %v1173
    %v1891 = vunpack.c.h.b16 %v1173
    %v1892 = vunpack.c.l.b16 %v1174
    %v1893 = vunpack.c.h.b16 %v1174
    %v1894 = vunpack.c.l.b16 %v1175
    %v1895 = vunpack.c.h.b16 %v1175
    %v1896 = vunpack.c.l.b16 %v1176
    %v1897 = vunpack.c.h.b16 %v1176
    %v1898 = vunpack.c.l.b16 %v1177
    %v1899 = vunpack.c.h.b16 %v1177
    %v1900 = vunpack.c.l.b16 %v1178
    %v1901 = vunpack.c.h.b16 %v1178
    %v1902 = vunpack.c.l.b16 %v1179
    %v1903 = vunpack.c.h.b16 %v1179
    %v1904 = vunpack.c.l.b16 %v1180
    %v1905 = vunpack.c.h.b16 %v1180
    %v1906 = vunpack.c.l.b16 %v1181
    %v1907 = vunpack.c.h.b16 %v1181
    %v1908 = vunpack.c.l.b16 %v1182
    %v1909 = vunpack.c.h.b16 %v1182
    %v1910 = vunpack.c.l.b16 %v1183
    %v1911 = vunpack.c.h.b16 %v1183
    %v1912 = vunpack.c.l.b16 %v1184
    %v1913 = vunpack.c.h.b16 %v1184
    %v1914 = vunpack.c.l.b16 %v1185
    %v1915 = vunpack.c.h.b16 %v1185
    %v1916 = vunpack.c.l.b16 %v1186
    %v1917 = vunpack.c.h.b16 %v1186
    %v1918 = vunpack.c.l.b16 %v1187
    %v1919 = vunpack.c.h.b16 %v1187
    %v1920 = vunpack.c.l.b16 %v1188
    %v1921 = vunpack.c.h.b16 %v1188
    %v1922 = vunpack.c.l.b16 %v1189
    %v1923 = vunpack.c.h.b16 %v1189
    %v1924 = vunpack.c.l.b16 %v1190
    %v1925 = vunpack.c.h.b16 %v1190
    %v1926 = vunpack.c.l.b16 %v1191
    %v1927 = vunpack.c.h.b16 %v1191
    %v1928 = vunpack.c.l.b16 %v1192
    %v1929 = vunpack.c.h.b16 %v1192
    %v1930 = vunpack.c.l.b16 %v1193
    %v1931 = vunpack.c.h.b16 %v1193
    %v1932 = vunpack.c.l.b16 %v1194
    %v1933 = vunpack.c.h.b16 %v1194
    %v1934 = vunpack.c.l.b16 %v1195
    %v1935 = vunpack.c.h.b16 %v1195
    %v1936 = vunpack.c.l.b16 %v1196
    %v1937 = vunpack.c.h.b16 %v1196
    %v1938 = vunpack.c.l.b16 %v1197
    %v1939 = vunpack.c.h.b16 %v1197
    %v1940 = vunpack.c.l.b16 %v1198
    %v1941 = vunpack.c.h.b16 %v1198
    %v1942 = vunpack.c.l.b16 %v1199
    %v1943 = vunpack.c.h.b16 %v1199
    %v1944 = vunpack.c.l.b16 %v1200
    %v1945 = vunpack.c.h.b16 %v1200
    %v1946 = vunpack.c.l.b16 %v1201
    %v1947 = vunpack.c.h.b16 %v1201
    %v1948 = vunpack.c.l.b16 %v1202
    %v1949 = vunpack.c.h.b16 %v1202
    %v1950 = vunpack.c.l.b16 %v1203
    %v1951 = vunpack.c.h.b16 %v1203
    %v1952 = vunpack.c.l.b16 %v1204
    %v1953 = vunpack.c.h.b16 %v1204
    %v1954 = vunpack.c.l.b16 %v1205
    %v1955 = vunpack.c.h.b16 %v1205
    %v1956 = vunpack.c.l.b16 %v1206
    %v1957 = vunpack.c.h.b16 %v1206
    %v1958 = vunpack.c.l.b16 %v1207
    %v1959 = vunpack.c.h.b16 %v1207
    %v1960 = vunpack.c.l.b16 %v1208
    %v1961 = vunpack.c.h.b16 %v1208
    %v1962 = vunpack.c.l.b16 %v1209
    %v1963 = vunpack.c.h.b16 %v1209
    %v1964 = vunpack.c.l.b16 %v1210
    %v1965 = vunpack.c.h.b16 %v1210
    %v1966 = vunpack.c.l.b16 %v1211
    %v1967 = vunpack.c.h.b16 %v1211
    %v1968 = vunpack.c.l.b16 %v1212
    %v1969 = vunpack.c.h.b16 %v1212
    %v1970 = vunpack.c.l.b16 %v1213
    %v1971 = vunpack.c.h.b16 %v1213
    %v1972 = vunpack.c.l.b16 %v1214
    %v1973 = vunpack.c.h.b16 %v1214
    %v1974 = vunpack.c.l.b16 %v1215
    %v1975 = vunpack.c.h.b16 %v1215
    %v1976 = vunpack.c.l.b16 %v1216
    %v1977 = vunpack.c.h.b16 %v1216
    %v1978 = vunpack.c.l.b16 %v1217
    %v1979 = vunpack.c.h.b16 %v1217
    %v1980 = vunpack.c.l.b16 %v1218
    %v1981 = vunpack.c.h.b16 %v1218
    %v1982 = vunpack.c.l.b16 %v1219
    %v1983 = vunpack.c.h.b16 %v1219
    %v1984 = vunpack.c.l.b16 %v1220
    %v1985 = vunpack.c.h.b16 %v1220
    %v1986 = vunpack.c.l.b16 %v1221
    %v1987 = vunpack.c.h.b16 %v1221
    %v1988 = vunpack.c.l.b16 %v1222
    %v1989 = vunpack.c.h.b16 %v1222
    %v1990 = vunpack.c.l.b16 %v1223
    %v1991 = vunpack.c.h.b16 %v1223
    %v1992 = vunpack.c.l.b16 %v1224
    %v1993 = vunpack.c.h.b16 %v1224
    %v1994 = vunpack.c.l.b16 %v1225
    %v1995 = vunpack.c.h.b16 %v1225
    %v1996 = vunpack.c.l.b16 %v1226
    %v1997 = vunpack.c.h.b16 %v1226
    %v1998 = vunpack.c.l.b16 %v1227
    %v1999 = vunpack.c.h.b16 %v1227
    %v2000 = vunpack.c.l.b16 %v1228
    %v2001 = vunpack.c.h.b16 %v1228
    %v2002 = vunpack.c.l.b16 %v1229
    %v2003 = vunpack.c.h.b16 %v1229
    %v2004 = vunpack.c.l.b16 %v1230
    %v2005 = vunpack.c.h.b16 %v1230
    %v2006 = vunpack.c.l.b16 %v1231
    %v2007 = vunpack.c.h.b16 %v1231
    %v2008 = vunpack.c.l.b16 %v1232
    %v2009 = vunpack.c.h.b16 %v1232
    %v2010 = vunpack.c.l.b16 %v1233
    %v2011 = vunpack.c.h.b16 %v1233
    %v2012 = vunpack.c.l.b16 %v1234
    %v2013 = vunpack.c.h.b16 %v1234
    %v2014 = vunpack.c.l.b16 %v1235
    %v2015 = vunpack.c.h.b16 %v1235
    %v2016 = vunpack.c.l.b16 %v1236
    %v2017 = vunpack.c.h.b16 %v1236
    %v2018 = vunpack.c.l.b16 %v1237
    %v2019 = vunpack.c.h.b16 %v1237
    %v2020 = vunpack.c.l.b16 %v1238
    %v2021 = vunpack.c.h.b16 %v1238
    %v2022 = vunpack.c.l.b16 %v1239
    %v2023 = vunpack.c.h.b16 %v1239
    %v2024 = vunpack.c.l.b16 %v1240
    %v2025 = vunpack.c.h.b16 %v1240
    %v2026 = vunpack.c.l.b16 %v1241
    %v2027 = vunpack.c.h.b16 %v1241
    %v2028 = vunpack.c.l.b16 %v1242
    %v2029 = vunpack.c.h.b16 %v1242
    %v2030 = vunpack.c.l.b16 %v1243
    %v2031 = vunpack.c.h.b16 %v1243
    %v2032 = vunpack.c.l.b16 %v1244
    %v2033 = vunpack.c.h.b16 %v1244
    %v2034 = vunpack.c.l.b16 %v1245
    %v2035 = vunpack.c.h.b16 %v1245
    %v2036 = vunpack.c.l.b16 %v1246
    %v2037 = vunpack.c.h.b16 %v1246
    %v2038 = vunpack.c.l.b16 %v1247
    %v2039 = vunpack.c.h.b16 %v1247
    %v2040 = vunpack.c.l.b16 %v1248
    %v2041 = vunpack.c.h.b16 %v1248
    %v2042 = vunpack.c.l.b16 %v1249
    %v2043 = vunpack.c.h.b16 %v1249
    %v2044 = vunpack.c.l.b16 %v1250
    %v2045 = vunpack.c.h.b16 %v1250
    %v2046 = vunpack.c.l.b16 %v1251
    %v2047 = vunpack.c.h.b16 %v1251
    %v2048 = vunpack.c.l.b16 %v1252
    %v2049 = vunpack.c.h.b16 %v1252
    %v2050 = vunpack.c.l.b16 %v1253
    %v2051 = vunpack.c.h.b16 %v1253
    %v2052 = vunpack.c.l.b16 %v1254
    %v2053 = vunpack.c.h.b16 %v1254
    %v2054 = vunpack.c.l.b16 %v1255
    %v2055 = vunpack.c.h.b16 %v1255
    %v2056 = vunpack.c.l.b16 %v1256
    %v2057 = vunpack.c.h.b16 %v1256
    %v2058 = vunpack.c.l.b16 %v1257
    %v2059 = vunpack.c.h.b16 %v1257
    %v2060 = vunpack.c.l.b16 %v1258
    %v2061 = vunpack.c.h.b16 %v1258
    %v2062 = vunpack.c.l.b16 %v1259
    %v2063 = vunpack.c.h.b16 %v1259
    %v2064 = vunpack.c.l.b16 %v1260
    %v2065 = vunpack.c.h.b16 %v1260
    %v2066 = vunpack.c.l.b16 %v1261
    %v2067 = vunpack.c.h.b16 %v1261
    %v2068 = vunpack.c.l.b16 %v1262
    %v2069 = vunpack.c.h.b16 %v1262
    %v2070 = vunpack.c.l.b16 %v1263
    %v2071 = vunpack.c.h.b16 %v1263
    %v2072 = vunpack.c.l.b16 %v1264
    %v2073 = vunpack.c.h.b16 %v1264
    %v2074 = vunpack.c.l.b16 %v1265
    %v2075 = vunpack.c.h.b16 %v1265
    %v2076 = vunpack.c.l.b16 %v1266
    %v2077 = vunpack.c.h.b16 %v1266
    %v2078 = vunpack.c.l.b16 %v1267
    %v2079 = vunpack.c.h.b16 %v1267
    %v2080 = vunpack.c.l.b16 %v1268
    %v2081 = vunpack.c.h.b16 %v1268
    %v2082 = vunpack.c.l.b16 %v1269
    %v2083 = vunpack.c.h.b16 %v1269
    %v2084 = vunpack.c.l.b16 %v1270
    %v2085 = vunpack.c.h.b16 %v1270
    %v2086 = vunpack.c.l.b16 %v1271
    %v2087 = vunpack.c.h.b16 %v1271
    %v2088 = vunpack.c.l.b16 %v1272
    %v2089 = vunpack.c.h.b16 %v1272
    %v2090 = vunpack.c.l.b16 %v1273
    %v2091 = vunpack.c.h.b16 %v1273
    %v2092 = vunpack.c.l.b16 %v1274
    %v2093 = vunpack.c.h.b16 %v1274
    %v2094 = vunpack.c.l.b16 %v1275
    %v2095 = vunpack.c.h.b16 %v1275
    %v2096 = vunpack.c.l.b16 %v1276
    %v2097 = vunpack.c.h.b16 %v1276
    %v2098 = vunpack.c.l.b16 %v1277
    %v2099 = vunpack.c.h.b16 %v1277
    %v2100 = vunpack.c.l.b16 %v1278
    %v2101 = vunpack.c.h.b16 %v1278
    %v2102 = vunpack.c.l.b16 %v1279
    %v2103 = vunpack.c.h.b16 %v1279
    %v2104 = vunpack.c.l.b16 %v1280
    %v2105 = vunpack.c.h.b16 %v1280
    %v2106 = vunpack.c.l.b16 %v1281
    %v2107 = vunpack.c.h.b16 %v1281
    %v2108 = vunpack.c.l.b16 %v1282
    %v2109 = vunpack.c.h.b16 %v1282
    %v2110 = vunpack.c.l.b16 %v1283
    %v2111 = vunpack.c.h.b16 %v1283
    %v2112 = vunpack.c.l.b16 %v1284
    %v2113 = vunpack.c.h.b16 %v1284
    %v2114 = vunpack.c.l.b16 %v1285
    %v2115 = vunpack.c.h.b16 %v1285
    %v2116 = vunpack.c.l.b16 %v1286
    %v2117 = vunpack.c.h.b16 %v1286
    %v2118 = vunpack.c.l.b16 %v1287
    %v2119 = vunpack.c.h.b16 %v1287
    %v2120 = vunpack.c.l.b16 %v1288
    %v2121 = vunpack.c.h.b16 %v1288
    %v2122 = vunpack.c.l.b16 %v1289
    %v2123 = vunpack.c.h.b16 %v1289
    %v2124 = vunpack.c.l.b16 %v1290
    %v2125 = vunpack.c.h.b16 %v1290
    %v2126 = vunpack.c.l.b16 %v1291
    %v2127 = vunpack.c.h.b16 %v1291
    %v2128 = vunpack.c.l.b16 %v1292
    %v2129 = vunpack.c.h.b16 %v1292
    %v2130 = vunpack.c.l.b16 %v1293
    %v2131 = vunpack.c.h.b16 %v1293
    %v2132 = vunpack.c.l.b16 %v1294
    %v2133 = vunpack.c.h.b16 %v1294
    %v2134 = vunpack.c.l.b16 %v1295
    %v2135 = vunpack.c.h.b16 %v1295
    %v2136 = vunpack.c.l.b16 %v1296
    %v2137 = vunpack.c.h.b16 %v1296
    %v2138 = vunpack.c.l.b16 %v1297
    %v2139 = vunpack.c.h.b16 %v1297
    %v2140 = vunpack.c.l.b16 %v1298
    %v2141 = vunpack.c.h.b16 %v1298
    %v2142 = vunpack.c.l.b16 %v1299
    %v2143 = vunpack.c.h.b16 %v1299
    %v2144 = vunpack.c.l.b16 %v1300
    %v2145 = vunpack.c.h.b16 %v1300
    %v2146 = vunpack.c.l.b16 %v1301
    %v2147 = vunpack.c.h.b16 %v1301
    %v2148 = vunpack.c.l.b16 %v1302
    %v2149 = vunpack.c.h.b16 %v1302
    %v2150 = vunpack.c.l.b16 %v1303
    %v2151 = vunpack.c.h.b16 %v1303
    %v2152 = vunpack.c.l.b16 %v1304
    %v2153 = vunpack.c.h.b16 %v1304
    %v2154 = vunpack.c.l.b16 %v1305
    %v2155 = vunpack.c.h.b16 %v1305
    %v2156 = vunpack.c.l.b16 %v1306
    %v2157 = vunpack.c.h.b16 %v1306
    %v2158 = vunpack.c.l.b16 %v1307
    %v2159 = vunpack.c.h.b16 %v1307
    %v2160 = vunpack.c.l.b16 %v1308
    %v2161 = vunpack.c.h.b16 %v1308
    %v2162 = vunpack.c.l.b16 %v1309
    %v2163 = vunpack.c.h.b16 %v1309
    %v2164 = vunpack.c.l.b16 %v1310
    %v2165 = vunpack.c.h.b16 %v1310
    %v2166 = vunpack.c.l.b16 %v1311
    %v2167 = vunpack.c.h.b16 %v1311
    %v2168 = vunpack.c.l.b16 %v1312
    %v2169 = vunpack.c.h.b16 %v1312
    %v2170 = vunpack.c.l.b16 %v1313
    %v2171 = vunpack.c.h.b16 %v1313
    %v2172 = vunpack.c.l.b16 %v1314
    %v2173 = vunpack.c.h.b16 %v1314
    %v2174 = vunpack.c.l.b16 %v1315
    %v2175 = vunpack.c.h.b16 %v1315
    %v2176 = vunpack.c.l.b16 %v1316
    %v2177 = vunpack.c.h.b16 %v1316
    %v2178 = vunpack.c.l.b16 %v1317
    %v2179 = vunpack.c.h.b16 %v1317
    %v2180 = vunpack.c.l.b16 %v1318
    %v2181 = vunpack.c.h.b16 %v1318
    %v2182 = vunpack.c.l.b16 %v1319
    %v2183 = vunpack.c.h.b16 %v1319
    %v2184 = vunpack.c.l.b16 %v1320
    %v2185 = vunpack.c.h.b16 %v1320
    %v2186 = vunpack.c.l.b16 %v1321
    %v2187 = vunpack.c.h.b16 %v1321
    %v2188 = vunpack.c.l.b16 %v1322
    %v2189 = vunpack.c.h.b16 %v1322
    %v2190 = vunpack.c.l.b16 %v1323
    %v2191 = vunpack.c.h.b16 %v1323
    %v2192 = vunpack.c.l.b16 %v1324
    %v2193 = vunpack.c.h.b16 %v1324
    %v2194 = vunpack.c.l.b16 %v1325
    %v2195 = vunpack.c.h.b16 %v1325
    %v2196 = vunpack.c.l.b16 %v1326
    %v2197 = vunpack.c.h.b16 %v1326
    %v2198 = vunpack.c.l.b16 %v1327
    %v2199 = vunpack.c.h.b16 %v1327
    %v2200 = vunpack.c.l.b16 %v1328
    %v2201 = vunpack.c.h.b16 %v1328
    %v2202 = vunpack.c.l.b16 %v1329
    %v2203 = vunpack.c.h.b16 %v1329
    %v2204 = vunpack.c.l.b16 %v1330
    %v2205 = vunpack.c.h.b16 %v1330
    %v2206 = vunpack.c.l.b16 %v1331
    %v2207 = vunpack.c.h.b16 %v1331
    %v2208 = vunpack.c.l.b16 %v1332
    %v2209 = vunpack.c.h.b16 %v1332
    %v2210 = vunpack.c.l.b16 %v1333
    %v2211 = vunpack.c.h.b16 %v1333
    %v2212 = vunpack.c.l.b16 %v1334
    %v2213 = vunpack.c.h.b16 %v1334
    %v2214 = vunpack.c.l.b16 %v1335
    %v2215 = vunpack.c.h.b16 %v1335
    %v2216 = vunpack.c.l.b16 %v1336
    %v2217 = vunpack.c.h.b16 %v1336
    %v2218 = vunpack.c.l.b16 %v1337
    %v2219 = vunpack.c.h.b16 %v1337
    %v2220 = vunpack.c.l.b16 %v1338
    %v2221 = vunpack.c.h.b16 %v1338
    %v2222 = vunpack.c.l.b16 %v1339
    %v2223 = vunpack.c.h.b16 %v1339
    %v2224 = vunpack.c.l.b16 %v1340
    %v2225 = vunpack.c.h.b16 %v1340
    %v2226 = vunpack.c.l.b16 %v1341
    %v2227 = vunpack.c.h.b16 %v1341
    %v2228 = vunpack.c.l.b16 %v1342
    %v2229 = vunpack.c.h.b16 %v1342
    %v2230 = vunpack.c.l.b16 %v1343
    %v2231 = vunpack.c.h.b16 %v1343
    %v2232 = vunpack.c.l.b16 %v1344
    %v2233 = vunpack.c.h.b16 %v1344
    %v2234 = vunpack.c.l.b16 %v1345
    %v2235 = vunpack.c.h.b16 %v1345
    %v2236 = vunpack.c.l.b16 %v1346
    %v2237 = vunpack.c.h.b16 %v1346
    %v2238 = vunpack.c.l.b16 %v1347
    %v2239 = vunpack.c.h.b16 %v1347
    %v2240 = vpack.c.b16 %v1730, %v1728
    %v2241 = vpack.c.b16 %v1731, %v1729
    %v2242 = vpack.c.b16 %v1734, %v1732
    %v2243 = vpack.c.b16 %v1735, %v1733
    %v2244 = vpack.c.b16 %v1738, %v1736
    %v2245 = vpack.c.b16 %v1739, %v1737
    %v2246 = vpack.c.b16 %v1742, %v1740
    %v2247 = vpack.c.b16 %v1743, %v1741
    %v2248 = vpack.c.b16 %v1746, %v1744
    %v2249 = vpack.c.b16 %v1747, %v1745
    %v2250 = vpack.c.b16 %v1750, %v1748
    %v2251 = vpack.c.b16 %v1751, %v1749
    %v2252 = vpack.c.b16 %v1754, %v1752
    %v2253 = vpack.c.b16 %v1755, %v1753
    %v2254 = vpack.c.b16 %v1758, %v1756
    %v2255 = vpack.c.b16 %v1759, %v1757
    %v2256 = vpack.c.b16 %v1762, %v1760
    %v2257 = vpack.c.b16 %v1763, %v1761
    %v2258 = vpack.c.b16 %v1766, %v1764
    %v2259 = vpack.c.b16 %v1767, %v1765
    %v2260 = vpack.c.b16 %v1770, %v1768
    %v2261 = vpack.c.b16 %v1771, %v1769
    %v2262 = vpack.c.b16 %v1774, %v1772
    %v2263 = vpack.c.b16 %v1775, %v1773
    %v2264 = vpack.c.b16 %v1778, %v1776
    %v2265 = vpack.c.b16 %v1779, %v1777
    %v2266 = vpack.c.b16 %v1782, %v1780
    %v2267 = vpack.c.b16 %v1783, %v1781
    %v2268 = vpack.c.b16 %v1786, %v1784
    %v2269 = vpack.c.b16 %v1787, %v1785
    %v2270 = vpack.c.b16 %v1790, %v1788
    %v2271 = vpack.c.b16 %v1791, %v1789
    %v2272 = vpack.c.b16 %v1794, %v1792
    %v2273 = vpack.c.b16 %v1795, %v1793
    %v2274 = vpack.c.b16 %v1798, %v1796
    %v2275 = vpack.c.b16 %v1799, %v1797
    %v2276 = vpack.c.b16 %v1802, %v1800
    %v2277 = vpack.c.b16 %v1803, %v1801
    %v2278 = vpack.c.b16 %v1806, %v1804
    %v2279 = vpack.c.b16 %v1807, %v1805
    %v2280 = vpack.c.b16 %v1810, %v1808
    %v2281 = vpack.c.b16 %v1811, %v1809
    %v2282 = vpack.c.b16 %v1814, %v1812
    %v2283 = vpack.c.b16 %v1815, %v1813
    %v2284 = vpack.c.b16 %v1818, %v1816
    %v2285 = vpack.c.b16 %v1819, %v1817
    %v2286 = vpack.c.b16 %v1822, %v1820
    %v2287 = vpack.c.b16 %v1823, %v1821
    %v2288 = vpack.c.b16 %v1826, %v1824
    %v2289 = vpack.c.b16 %v1827, %v1825
    %v2290 = vpack.c.b16 %v1830, %v1828
    %v2291 = vpack.c.b16 %v1831, %v1829
    %v2292 = vpack.c.b16 %v1834, %v1832
    %v2293 = vpack.c.b16 %v1835, %v1833
    %v2294 = vpack.c.b16 %v1838, %v1836
    %v2295 = vpack.c.b16 %v1839, %v1837
    %v2296 = vpack.c.b16 %v1842, %v1840
    %v2297 = vpack.c.b16 %v1843, %v1841
    %v2298 = vpack.c.b16 %v1846, %v1844
    %v2299 = vpack.c.b16 %v1847, %v1845
    %v2300 = vpack.c.b16 %v1850, %v1848
    %v2301 = vpack.c.b16 %v1851, %v1849
    %v2302 = vpack.c.b16 %v1854, %v1852
    %v2303 = vpack.c.b16 %v1855, %v1853
    %v2304 = vpack.c.b16 %v1858, %v1856
    %v2305 = vpack.c.b16 %v1859, %v1857
    %v2306 = vpack.c.b16 %v1862, %v1860
    %v2307 = vpack.c.b16 %v1863, %v1861
    %v2308 = vpack.c.b16 %v1866, %v1864
    %v2309 = vpack.c.b16 %v1867, %v1865
    %v2310 = vpack.c.b16 %v1870, %v1868
    %v2311 = vpack.c.b16 %v1871, %v1869
    %v2312 = vpack.c.b16 %v1874, %v1872
    %v2313 = vpack.c.b16 %v1875, %v1873
    %v2314 = vpack.c.b16 %v1878, %v1876
    %v2315 = vpack.c.b16 %v1879, %v1877
    %v2316 = vpack.c.b16 %v1882, %v1880
    %v2317 = vpack.c.b16 %v1883, %v1881
    %v2318 = vpack.c.b16 %v1886, %v1884
    %v2319 = vpack.c.b16 %v1887, %v1885
    %v2320 = vpack.c.b16 %v1890, %v1888
    %v2321 = vpack.c.b16 %v1891, %v1889
    %v2322 = vpack.c.b16 %v1894, %v1892
    %v2323 = vpack.c.b16 %v1895, %v1893
    %v2324 = vpack.c.b16 %v1898, %v1896
    %v2325 = vpack.c.b16 %v1899, %v1897
    %v2326 = vpack.c.b16 %v1902, %v1900
    %v2327 = vpack.c.b16 %v1903, %v1901
    %v2328 = vpack.c.b16 %v1906, %v1904
    %v2329 = vpack.c.b16 %v1907, %v1905
    %v2330 = vpack.c.b16 %v1910, %v1908
    %v2331 = vpack.c.b16 %v1911, %v1909
    %v2332 = vpack.c.b16 %v1914, %v1912
    %v2333 = vpack.c.b16 %v1915, %v1913
    %v2334 = vpack.c.b16 %v1918, %v1916
    %v2335 = vpack.c.b16 %v1919, %v1917
    %v2336 = vpack.c.b16 %v1922, %v1920
    %v2337 = vpack.c.b16 %v1923, %v1921
    %v2338 = vpack.c.b16 %v1926, %v1924
    %v2339 = vpack.c.b16 %v1927, %v1925
    %v2340 = vpack.c.b16 %v1930, %v1928
    %v2341 = vpack.c.b16 %v1931, %v1929
    %v2342 = vpack.c.b16 %v1934, %v1932
    %v2343 = vpack.c.b16 %v1935, %v1933
    %v2344 = vpack.c.b16 %v1938, %v1936
    %v2345 = vpack.c.b16 %v1939, %v1937
    %v2346 = vpack.c.b16 %v1942, %v1940
    %v2347 = vpack.c.b16 %v1943, %v1941
    %v2348 = vpack.c.b16 %v1946, %v1944
    %v2349 = vpack.c.b16 %v1947, %v1945
    %v2350 = vpack.c.b16 %v1950, %v1948
    %v2351 = vpack.c.b16 %v1951, %v1949
    %v2352 = vpack.c.b16 %v1954, %v1952
    %v2353 = vpack.c.b16 %v1955, %v1953
    %v2354 = vpack.c.b16 %v1958, %v1956
    %v2355 = vpack.c.b16 %v1959, %v1957
    %v2356 = vpack.c.b16 %v1962, %v1960
    %v2357 = vpack.c.b16 %v1963, %v1961
    %v2358 = vpack.c.b16 %v1966, %v1964
    %v2359 = vpack.c.b16 %v1967, %v1965
    %v2360 = vpack.c.b16 %v1970, %v1968
    %v2361 = vpack.c.b16 %v1971, %v1969
    %v2362 = vpack.c.b16 %v1974, %v1972
    %v2363 = vpack.c.b16 %v1975, %v1973
    %v2364 = vpack.c.b16 %v1978, %v1976
    %v2365 = vpack.c.b16 %v1979, %v1977
    %v2366 = vpack.c.b16 %v1982, %v1980
    %v2367 = vpack.c.b16 %v1983, %v1981
    %v2368 = vpack.c.b16 %v1986, %v1984
    %v2369 = vpack.c.b16 %v1987, %v1985
    %v2370 = vpack.c.b16 %v1990, %v1988
    %v2371 = vpack.c.b16 %v1991, %v1989
    %v2372 = vpack.c.b16 %v1994, %v1992
    %v2373 = vpack.c.b16 %v1995, %v1993
    %v2374 = vpack.c.b16 %v1998, %v1996
    %v2375 = vpack.c.b16 %v1999, %v1997
    %v2376 = vpack.c.b16 %v2002, %v2000
    %v2377 = vpack.c.b16 %v2003, %v2001
    %v2378 = vpack.c.b16 %v2006, %v2004
    %v2379 = vpack.c.b16 %v2007, %v2005
    %v2380 = vpack.c.b16 %v2010, %v2008
    %v2381 = vpack.c.b16 %v2011, %v2009
    %v2382 = vpack.c.b16 %v2014, %v2012
    %v2383 = vpack.c.b16 %v2015, %v2013
    %v2384 = vpack.c.b16 %v2018, %v2016
    %v2385 = vpack.c.b16 %v2019, %v2017
    %v2386 = vpack.c.b16 %v2022, %v2020
    %v2387 = vpack.c.b16 %v2023, %v2021
    %v2388 = vpack.c.b16 %v2026, %v2024
    %v2389 = vpack.c.b16 %v2027, %v2025
    %v2390 = vpack.c.b16 %v2030, %v2028
    %v2391 = vpack.c.b16 %v2031, %v2029
    %v2392 = vpack.c.b16 %v2034, %v2032
    %v2393 = vpack.c.b16 %v2035, %v2033
    %v2394 = vpack.c.b16 %v2038, %v2036
    %v2395 = vpack.c.b16 %v2039, %v2037
    %v2396 = vpack.c.b16 %v2042, %v2040
    %v2397 = vpack.c.b16 %v2043, %v2041
    %v2398 = vpack.c.b16 %v2046, %v2044
    %v2399 = vpack.c.b16 %v2047, %v2045
    %v2400 = vpack.c.b16 %v2050, %v2048
    %v2401 = vpack.c.b16 %v2051, %v2049
    %v2402 = vpack.c.b16 %v2054, %v2052
    %v2403 = vpack.c.b16 %v2055, %v2053
    %v2404 = vpack.c.b16 %v2058, %v2056
    %v2405 = vpack.c.b16 %v2059, %v2057
    %v2406 = vpack.c.b16 %v2062, %v2060
    %v2407 = vpack.c.b16 %v2063, %v2061
    %v2408 = vpack.c.b16 %v2066, %v2064
    %v2409 = vpack.c.b16 %v2067, %v2065
    %v2410 = vpack.c.b16 %v2070, %v2068
    %v2411 = vpack.c.b16 %v2071, %v2069
    %v2412 = vpack.c.b16 %v2074, %v2072
    %v2413 = vpack.c.b16 %v2075, %v2073
    %v2414 = vpack.c.b16 %v2078, %v2076
    %v2415 = vpack.c.b16 %v2079, %v2077
    %v2416 = vpack.c.b16 %v2082, %v2080
    %v2417 = vpack.c.b16 %v2083, %v2081
    %v2418 = vpack.c.b16 %v2086, %v2084
    %v2419 = vpack.c.b16 %v2087, %v2085
    %v2420 = vpack.c.b16 %v2090, %v2088
    %v2421 = vpack.c.b16 %v2091, %v2089
    %v2422 = vpack.c.b16 %v2094, %v2092
    %v2423 = vpack.c.b16 %v2095, %v2093
    %v2424 = vpack.c.b16 %v2098, %v2096
    %v2425 = vpack.c.b16 %v2099, %v2097
    %v2426 = vpack.c.b16 %v2102, %v2100
    %v2427 = vpack.c.b16 %v2103, %v2101
    %v2428 = vpack.c.b16 %v2106, %v2104
    %v2429 = vpack.c.b16 %v2107, %v2105
    %v2430 = vpack.c.b16 %v2110, %v2108
    %v2431 = vpack.c.b16 %v2111, %v2109
    %v2432 = vpack.c.b16 %v2114, %v2112
    %v2433 = vpack.c.b16 %v2115, %v2113
    %v2434 = vpack.c.b16 %v2118, %v2116
    %v2435 = vpack.c.b16 %v2119, %v2117
    %v2436 = vpack.c.b16 %v2122, %v2120
    %v2437 = vpack.c.b16 %v2123, %v2121
    %v2438 = vpack.c.b16 %v2126, %v2124
    %v2439 = vpack.c.b16 %v2127, %v2125
    %v2440 = vpack.c.b16 %v2130, %v2128
    %v2441 = vpack.c.b16 %v2131, %v2129
    %v2442 = vpack.c.b16 %v2134, %v2132
    %v2443 = vpack.c.b16 %v2135, %v2133
    %v2444 = vpack.c.b16 %v2138, %v2136
    %v2445 = vpack.c.b16 %v2139, %v2137
    %v2446 = vpack.c.b16 %v2142, %v2140
    %v2447 = vpack.c.b16 %v2143, %v2141
    %v2448 = vpack.c.b16 %v2146, %v2144
    %v2449 = vpack.c.b16 %v2147, %v2145
    %v2450 = vpack.c.b16 %v2150, %v2148
    %v2451 = vpack.c.b16 %v2151, %v2149
    %v2452 = vpack.c.b16 %v2154, %v2152
    %v2453 = vpack.c.b16 %v2155, %v2153
    %v2454 = vpack.c.b16 %v2158, %v2156
    %v2455 = vpack.c.b16 %v2159, %v2157
    %v2456 = vpack.c.b16 %v2162, %v2160
    %v2457 = vpack.c.b16 %v2163, %v2161
    %v2458 = vpack.c.b16 %v2166, %v2164
    %v2459 = vpack.c.b16 %v2167, %v2165
    %v2460 = vpack.c.b16 %v2170, %v2168
    %v2461 = vpack.c.b16 %v2171, %v2169
    %v2462 = vpack.c.b16 %v2174, %v2172
    %v2463 = vpack.c.b16 %v2175, %v2173
    %v2464 = vpack.c.b16 %v2178, %v2176
    %v2465 = vpack.c.b16 %v2179, %v2177
    %v2466 = vpack.c.b16 %v2182, %v2180
    %v2467 = vpack.c.b16 %v2183, %v2181
    %v2468 = vpack.c.b16 %v2186, %v2184
    %v2469 = vpack.c.b16 %v2187, %v2185
    %v2470 = vpack.c.b16 %v2190, %v2188
    %v2471 = vpack.c.b16 %v2191, %v2189
    %v2472 = vpack.c.b16 %v2194, %v2192
    %v2473 = vpack.c.b16 %v2195, %v2193
    %v2474 = vpack.c.b16 %v2198, %v2196
    %v2475 = vpack.c.b16 %v2199, %v2197
    %v2476 = vpack.c.b16 %v2202, %v2200
    %v2477 = vpack.c.b16 %v2203, %v2201
    %v2478 = vpack.c.b16 %v2206, %v2204
    %v2479 = vpack.c.b16 %v2207, %v2205
    %v2480 = vpack.c.b16 %v2210, %v2208
    %v2481 = vpack.c.b16 %v2211, %v2209
    %v2482 = vpack.c.b16 %v2214, %v2212
    %v2483 = vpack.c.b16 %v2215, %v2213
    %v2484 = vpack.c.b16 %v2218, %v2216
    %v2485 = vpack.c.b16 %v2219, %v2217
    %v2486 = vpack.c.b16 %v2222, %v2220
    %v2487 = vpack.c.b16 %v2223, %v2221
    %v2488 = vpack.c.b16 %v2226, %v2224
    %v2489 = vpack.c.b16 %v2227, %v2225
    %v2490 = vpack.c.b16 %v2230, %v2228
    %v2491 = vpack.c.b16 %v2231, %v2229
    %v2492 = vpack.c.b16 %v2234, %v2232
    %v2493 = vpack.c.b16 %v2235, %v2233
    %v2494 = vpack.c.b16 %v2238, %v2236
    %v2495 = vpack.c.b16 %v2239, %v2237
    %2752 = vmatprep.subr.bf16.mxu0 %v2255
    %2753 = vmatpush1.bf16.msra.mxu0 %v2254
    %2754 = vmatprep.subr.bf16.mxu0 %v2253
    %2755 = vmatpush1.bf16.msra.mxu0 %v2252
    %2756 = vmatprep.subr.bf16.mxu0 %v2251
    %2757 = vmatpush1.bf16.msra.mxu0 %v2250
    %2758 = vmatprep.subr.bf16.mxu0 %v2249
    %2759 = vmatpush1.bf16.msra.mxu0 %v2248
    %2760 = vmatprep.subr.bf16.mxu0 %v2247
    %2761 = vmatpush1.bf16.msra.mxu0 %v2246
    %2762 = vmatprep.subr.bf16.mxu0 %v2245
    %2763 = vmatpush1.bf16.msra.mxu0 %v2244
    %2764 = vmatprep.subr.bf16.mxu0 %v2243
    %2765 = vmatpush1.bf16.msra.mxu0 %v2242
    %2766 = vmatprep.subr.bf16.mxu0 %v2241
    %2767 = vmatpush1.bf16.msra.mxu0 %v2240
    %2768 = vmatprep.subr.bf16.mxu0 %v2271
    %2769 = vmatpush2.bf16.msra.mxu0 %v2270
    %2770 = vmatprep.subr.bf16.mxu0 %v2269
    %2771 = vmatpush2.bf16.msra.mxu0 %v2268
    %2772 = vmatprep.subr.bf16.mxu0 %v2267
    %2773 = vmatpush2.bf16.msra.mxu0 %v2266
    %2774 = vmatprep.subr.bf16.mxu0 %v2265
    %2775 = vmatpush2.bf16.msra.mxu0 %v2264
    %2776 = vmatprep.subr.bf16.mxu0 %v2263
    %2777 = vmatpush2.bf16.msra.mxu0 %v2262
    %2778 = vmatprep.subr.bf16.mxu0 %v2261
    %2779 = vmatpush2.bf16.msra.mxu0 %v2260
    %2780 = vmatprep.subr.bf16.mxu0 %v2259
    %2781 = vmatpush2.bf16.msra.mxu0 %v2258
    %2782 = vmatprep.subr.bf16.mxu0 %v2257
    %2783 = vmatpush2.bf16.msra.mxu0 %v2256
    %2784 = vmatprep.mubr.bf16.mxu0 %v1441
    %2785 = vmatmul.mubr.bf16.gmra.mxu0 %v1440
    %v2786 = vpop.f32.mrf.mxu0
    %v2787 = vadd.f32 %v1353, %v2786
    %v2788 = vpop.f32.mrf.mxu0
    %v2789 = vadd.f32 %v1357, %v2788
    %v2790 = vpop.f32.mrf.mxu0
    %v2791 = vpop.f32.mrf.mxu0
    %2792 = vdwg.mxu0
    %2793 = vmatprep.subr.bf16.mxu0 %v2287
    %2794 = vmatpush1.bf16.msra.mxu0 %v2286
    %2795 = vmatprep.subr.bf16.mxu0 %v2285
    %2796 = vmatpush1.bf16.msra.mxu0 %v2284
    %2797 = vmatprep.subr.bf16.mxu0 %v2283
    %2798 = vmatpush1.bf16.msra.mxu0 %v2282
    %2799 = vmatprep.subr.bf16.mxu0 %v2281
    %2800 = vmatpush1.bf16.msra.mxu0 %v2280
    %2801 = vmatprep.subr.bf16.mxu0 %v2279
    %2802 = vmatpush1.bf16.msra.mxu0 %v2278
    %2803 = vmatprep.subr.bf16.mxu0 %v2277
    %2804 = vmatpush1.bf16.msra.mxu0 %v2276
    %2805 = vmatprep.subr.bf16.mxu0 %v2275
    %2806 = vmatpush1.bf16.msra.mxu0 %v2274
    %2807 = vmatprep.subr.bf16.mxu0 %v2273
    %2808 = vmatpush1.bf16.msra.mxu0 %v2272
    %2809 = vmatprep.subr.bf16.mxu0 %v2303
    %2810 = vmatpush2.bf16.msra.mxu0 %v2302
    %2811 = vmatprep.subr.bf16.mxu0 %v2301
    %2812 = vmatpush2.bf16.msra.mxu0 %v2300
    %2813 = vmatprep.subr.bf16.mxu0 %v2299
    %2814 = vmatpush2.bf16.msra.mxu0 %v2298
    %2815 = vmatprep.subr.bf16.mxu0 %v2297
    %2816 = vmatpush2.bf16.msra.mxu0 %v2296
    %2817 = vmatprep.subr.bf16.mxu0 %v2295
    %2818 = vmatpush2.bf16.msra.mxu0 %v2294
    %2819 = vmatprep.subr.bf16.mxu0 %v2293
    %2820 = vmatpush2.bf16.msra.mxu0 %v2292
    %2821 = vmatprep.subr.bf16.mxu0 %v2291
    %2822 = vmatpush2.bf16.msra.mxu0 %v2290
    %2823 = vmatprep.subr.bf16.mxu0 %v2289
    %2824 = vmatpush2.bf16.msra.mxu0 %v2288
    %2825 = vmatprep.mubr.bf16.mxu0 %v1443
    %2826 = vmatmul.mubr.bf16.gmra.mxu0 %v1442
    %v2827 = vpop.f32.mrf.mxu0
    %v2828 = vadd.f32 %v2787, %v2827
    %v2829 = vpop.f32.mrf.mxu0
    %v2830 = vadd.f32 %v2789, %v2829
    %v2831 = vpop.f32.mrf.mxu0
    %v2832 = vpop.f32.mrf.mxu0
    %2833 = vdwg.mxu0
    %2834 = vmatprep.subr.bf16.mxu0 %v2319
    %2835 = vmatpush1.bf16.msra.mxu0 %v2318
    %2836 = vmatprep.subr.bf16.mxu0 %v2317
    %2837 = vmatpush1.bf16.msra.mxu0 %v2316
    %2838 = vmatprep.subr.bf16.mxu0 %v2315
    %2839 = vmatpush1.bf16.msra.mxu0 %v2314
    %2840 = vmatprep.subr.bf16.mxu0 %v2313
    %2841 = vmatpush1.bf16.msra.mxu0 %v2312
    %2842 = vmatprep.subr.bf16.mxu0 %v2311
    %2843 = vmatpush1.bf16.msra.mxu0 %v2310
    %2844 = vmatprep.subr.bf16.mxu0 %v2309
    %2845 = vmatpush1.bf16.msra.mxu0 %v2308
    %2846 = vmatprep.subr.bf16.mxu0 %v2307
    %2847 = vmatpush1.bf16.msra.mxu0 %v2306
    %2848 = vmatprep.subr.bf16.mxu0 %v2305
    %2849 = vmatpush1.bf16.msra.mxu0 %v2304
    %2850 = vmatprep.subr.bf16.mxu0 %v2335
    %2851 = vmatpush2.bf16.msra.mxu0 %v2334
    %2852 = vmatprep.subr.bf16.mxu0 %v2333
    %2853 = vmatpush2.bf16.msra.mxu0 %v2332
    %2854 = vmatprep.subr.bf16.mxu0 %v2331
    %2855 = vmatpush2.bf16.msra.mxu0 %v2330
    %2856 = vmatprep.subr.bf16.mxu0 %v2329
    %2857 = vmatpush2.bf16.msra.mxu0 %v2328
    %2858 = vmatprep.subr.bf16.mxu0 %v2327
    %2859 = vmatpush2.bf16.msra.mxu0 %v2326
    %2860 = vmatprep.subr.bf16.mxu0 %v2325
    %2861 = vmatpush2.bf16.msra.mxu0 %v2324
    %2862 = vmatprep.subr.bf16.mxu0 %v2323
    %2863 = vmatpush2.bf16.msra.mxu0 %v2322
    %2864 = vmatprep.subr.bf16.mxu0 %v2321
    %2865 = vmatpush2.bf16.msra.mxu0 %v2320
    %2866 = vmatprep.mubr.bf16.mxu0 %v1445
    %2867 = vmatmul.mubr.bf16.gmra.mxu0 %v1444
    %v2868 = vpop.f32.mrf.mxu0
    %v2869 = vadd.f32 %v2828, %v2868
    %v2870 = vpop.f32.mrf.mxu0
    %v2871 = vadd.f32 %v2830, %v2870
    %v2872 = vpop.f32.mrf.mxu0
    %v2873 = vpop.f32.mrf.mxu0
    %2874 = vdwg.mxu0
    %2875 = vmatprep.subr.bf16.mxu0 %v2351
    %2876 = vmatpush1.bf16.msra.mxu0 %v2350
    %2877 = vmatprep.subr.bf16.mxu0 %v2349
    %2878 = vmatpush1.bf16.msra.mxu0 %v2348
    %2879 = vmatprep.subr.bf16.mxu0 %v2347
    %2880 = vmatpush1.bf16.msra.mxu0 %v2346
    %2881 = vmatprep.subr.bf16.mxu0 %v2345
    %2882 = vmatpush1.bf16.msra.mxu0 %v2344
    %2883 = vmatprep.subr.bf16.mxu0 %v2343
    %2884 = vmatpush1.bf16.msra.mxu0 %v2342
    %2885 = vmatprep.subr.bf16.mxu0 %v2341
    %2886 = vmatpush1.bf16.msra.mxu0 %v2340
    %2887 = vmatprep.subr.bf16.mxu0 %v2339
    %2888 = vmatpush1.bf16.msra.mxu0 %v2338
    %2889 = vmatprep.subr.bf16.mxu0 %v2337
    %2890 = vmatpush1.bf16.msra.mxu0 %v2336
    %2891 = vmatprep.subr.bf16.mxu0 %v2367
    %2892 = vmatpush2.bf16.msra.mxu0 %v2366
    %2893 = vmatprep.subr.bf16.mxu0 %v2365
    %2894 = vmatpush2.bf16.msra.mxu0 %v2364
    %2895 = vmatprep.subr.bf16.mxu0 %v2363
    %2896 = vmatpush2.bf16.msra.mxu0 %v2362
    %2897 = vmatprep.subr.bf16.mxu0 %v2361
    %2898 = vmatpush2.bf16.msra.mxu0 %v2360
    %2899 = vmatprep.subr.bf16.mxu0 %v2359
    %2900 = vmatpush2.bf16.msra.mxu0 %v2358
    %2901 = vmatprep.subr.bf16.mxu0 %v2357
    %2902 = vmatpush2.bf16.msra.mxu0 %v2356
    %2903 = vmatprep.subr.bf16.mxu0 %v2355
    %2904 = vmatpush2.bf16.msra.mxu0 %v2354
    %2905 = vmatprep.subr.bf16.mxu0 %v2353
    %2906 = vmatpush2.bf16.msra.mxu0 %v2352
    %2907 = vmatprep.mubr.bf16.mxu0 %v1447
    %2908 = vmatmul.mubr.bf16.gmra.mxu0 %v1446
    %v2909 = vpop.f32.mrf.mxu0
    %v2910 = vadd.f32 %v2869, %v2909
    %v2911 = vpop.f32.mrf.mxu0
    %v2912 = vadd.f32 %v2871, %v2911
    %v2913 = vpop.f32.mrf.mxu0
    %v2914 = vpop.f32.mrf.mxu0
    %2915 = vdwg.mxu0
    %2916 = vmatprep.subr.bf16.mxu0 %v2383
    %2917 = vmatpush1.bf16.msra.mxu0 %v2382
    %2918 = vmatprep.subr.bf16.mxu0 %v2381
    %2919 = vmatpush1.bf16.msra.mxu0 %v2380
    %2920 = vmatprep.subr.bf16.mxu0 %v2379
    %2921 = vmatpush1.bf16.msra.mxu0 %v2378
    %2922 = vmatprep.subr.bf16.mxu0 %v2377
    %2923 = vmatpush1.bf16.msra.mxu0 %v2376
    %2924 = vmatprep.subr.bf16.mxu0 %v2375
    %2925 = vmatpush1.bf16.msra.mxu0 %v2374
    %2926 = vmatprep.subr.bf16.mxu0 %v2373
    %2927 = vmatpush1.bf16.msra.mxu0 %v2372
    %2928 = vmatprep.subr.bf16.mxu0 %v2371
    %2929 = vmatpush1.bf16.msra.mxu0 %v2370
    %2930 = vmatprep.subr.bf16.mxu0 %v2369
    %2931 = vmatpush1.bf16.msra.mxu0 %v2368
    %2932 = vmatprep.subr.bf16.mxu0 %v2399
    %2933 = vmatpush2.bf16.msra.mxu0 %v2398
    %2934 = vmatprep.subr.bf16.mxu0 %v2397
    %2935 = vmatpush2.bf16.msra.mxu0 %v2396
    %2936 = vmatprep.subr.bf16.mxu0 %v2395
    %2937 = vmatpush2.bf16.msra.mxu0 %v2394
    %2938 = vmatprep.subr.bf16.mxu0 %v2393
    %2939 = vmatpush2.bf16.msra.mxu0 %v2392
    %2940 = vmatprep.subr.bf16.mxu0 %v2391
    %2941 = vmatpush2.bf16.msra.mxu0 %v2390
    %2942 = vmatprep.subr.bf16.mxu0 %v2389
    %2943 = vmatpush2.bf16.msra.mxu0 %v2388
    %2944 = vmatprep.subr.bf16.mxu0 %v2387
    %2945 = vmatpush2.bf16.msra.mxu0 %v2386
    %2946 = vmatprep.subr.bf16.mxu0 %v2385
    %2947 = vmatpush2.bf16.msra.mxu0 %v2384
    %2948 = vmatprep.mubr.bf16.mxu0 %v1449
    %2949 = vmatmul.mubr.bf16.gmra.mxu0 %v1448
    %v2950 = vpop.f32.mrf.mxu0
    %v2951 = vadd.f32 %v2910, %v2950
    %v2952 = vpop.f32.mrf.mxu0
    %v2953 = vadd.f32 %v2912, %v2952
    %v2954 = vpop.f32.mrf.mxu0
    %v2955 = vpop.f32.mrf.mxu0
    %2956 = vdwg.mxu0
    %2957 = vmatprep.subr.bf16.mxu0 %v2415
    %2958 = vmatpush1.bf16.msra.mxu0 %v2414
    %2959 = vmatprep.subr.bf16.mxu0 %v2413
    %2960 = vmatpush1.bf16.msra.mxu0 %v2412
    %2961 = vmatprep.subr.bf16.mxu0 %v2411
    %2962 = vmatpush1.bf16.msra.mxu0 %v2410
    %2963 = vmatprep.subr.bf16.mxu0 %v2409
    %2964 = vmatpush1.bf16.msra.mxu0 %v2408
    %2965 = vmatprep.subr.bf16.mxu0 %v2407
    %2966 = vmatpush1.bf16.msra.mxu0 %v2406
    %2967 = vmatprep.subr.bf16.mxu0 %v2405
    %2968 = vmatpush1.bf16.msra.mxu0 %v2404
    %2969 = vmatprep.subr.bf16.mxu0 %v2403
    %2970 = vmatpush1.bf16.msra.mxu0 %v2402
    %2971 = vmatprep.subr.bf16.mxu0 %v2401
    %2972 = vmatpush1.bf16.msra.mxu0 %v2400
    %2973 = vmatprep.subr.bf16.mxu0 %v2431
    %2974 = vmatpush2.bf16.msra.mxu0 %v2430
    %2975 = vmatprep.subr.bf16.mxu0 %v2429
    %2976 = vmatpush2.bf16.msra.mxu0 %v2428
    %2977 = vmatprep.subr.bf16.mxu0 %v2427
    %2978 = vmatpush2.bf16.msra.mxu0 %v2426
    %2979 = vmatprep.subr.bf16.mxu0 %v2425
    %2980 = vmatpush2.bf16.msra.mxu0 %v2424
    %2981 = vmatprep.subr.bf16.mxu0 %v2423
    %2982 = vmatpush2.bf16.msra.mxu0 %v2422
    %2983 = vmatprep.subr.bf16.mxu0 %v2421
    %2984 = vmatpush2.bf16.msra.mxu0 %v2420
    %2985 = vmatprep.subr.bf16.mxu0 %v2419
    %2986 = vmatpush2.bf16.msra.mxu0 %v2418
    %2987 = vmatprep.subr.bf16.mxu0 %v2417
    %2988 = vmatpush2.bf16.msra.mxu0 %v2416
    %2989 = vmatprep.mubr.bf16.mxu0 %v1451
    %2990 = vmatmul.mubr.bf16.gmra.mxu0 %v1450
    %v2991 = vpop.f32.mrf.mxu0
    %v2992 = vadd.f32 %v2951, %v2991
    %v2993 = vpop.f32.mrf.mxu0
    %v2994 = vadd.f32 %v2953, %v2993
    %v2995 = vpop.f32.mrf.mxu0
    %v2996 = vpop.f32.mrf.mxu0
    %2997 = vdwg.mxu0
    %2998 = vmatprep.subr.bf16.mxu0 %v2447
    %2999 = vmatpush1.bf16.msra.mxu0 %v2446
    %3000 = vmatprep.subr.bf16.mxu0 %v2445
    %3001 = vmatpush1.bf16.msra.mxu0 %v2444
    %3002 = vmatprep.subr.bf16.mxu0 %v2443
    %3003 = vmatpush1.bf16.msra.mxu0 %v2442
    %3004 = vmatprep.subr.bf16.mxu0 %v2441
    %3005 = vmatpush1.bf16.msra.mxu0 %v2440
    %3006 = vmatprep.subr.bf16.mxu0 %v2439
    %3007 = vmatpush1.bf16.msra.mxu0 %v2438
    %3008 = vmatprep.subr.bf16.mxu0 %v2437
    %3009 = vmatpush1.bf16.msra.mxu0 %v2436
    %3010 = vmatprep.subr.bf16.mxu0 %v2435
    %3011 = vmatpush1.bf16.msra.mxu0 %v2434
    %3012 = vmatprep.subr.bf16.mxu0 %v2433
    %3013 = vmatpush1.bf16.msra.mxu0 %v2432
    %3014 = vmatprep.subr.bf16.mxu0 %v2463
    %3015 = vmatpush2.bf16.msra.mxu0 %v2462
    %3016 = vmatprep.subr.bf16.mxu0 %v2461
    %3017 = vmatpush2.bf16.msra.mxu0 %v2460
    %3018 = vmatprep.subr.bf16.mxu0 %v2459
    %3019 = vmatpush2.bf16.msra.mxu0 %v2458
    %3020 = vmatprep.subr.bf16.mxu0 %v2457
    %3021 = vmatpush2.bf16.msra.mxu0 %v2456
    %3022 = vmatprep.subr.bf16.mxu0 %v2455
    %3023 = vmatpush2.bf16.msra.mxu0 %v2454
    %3024 = vmatprep.subr.bf16.mxu0 %v2453
    %3025 = vmatpush2.bf16.msra.mxu0 %v2452
    %3026 = vmatprep.subr.bf16.mxu0 %v2451
    %3027 = vmatpush2.bf16.msra.mxu0 %v2450
    %3028 = vmatprep.subr.bf16.mxu0 %v2449
    %3029 = vmatpush2.bf16.msra.mxu0 %v2448
    %3030 = vmatprep.mubr.bf16.mxu0 %v1453
    %3031 = vmatmul.mubr.bf16.gmra.mxu0 %v1452
    %v3032 = vpop.f32.mrf.mxu0
    %v3033 = vadd.f32 %v2992, %v3032
    %v3034 = vpop.f32.mrf.mxu0
    %v3035 = vadd.f32 %v2994, %v3034
    %v3036 = vpop.f32.mrf.mxu0
    %v3037 = vpop.f32.mrf.mxu0
    %3038 = vdwg.mxu0
    %3039 = vmatprep.subr.bf16.mxu0 %v2479
    %3040 = vmatpush1.bf16.msra.mxu0 %v2478
    %3041 = vmatprep.subr.bf16.mxu0 %v2477
    %3042 = vmatpush1.bf16.msra.mxu0 %v2476
    %3043 = vmatprep.subr.bf16.mxu0 %v2475
    %3044 = vmatpush1.bf16.msra.mxu0 %v2474
    %3045 = vmatprep.subr.bf16.mxu0 %v2473
    %3046 = vmatpush1.bf16.msra.mxu0 %v2472
    %3047 = vmatprep.subr.bf16.mxu0 %v2471
    %3048 = vmatpush1.bf16.msra.mxu0 %v2470
    %3049 = vmatprep.subr.bf16.mxu0 %v2469
    %3050 = vmatpush1.bf16.msra.mxu0 %v2468
    %3051 = vmatprep.subr.bf16.mxu0 %v2467
    %3052 = vmatpush1.bf16.msra.mxu0 %v2466
    %3053 = vmatprep.subr.bf16.mxu0 %v2465
    %3054 = vmatpush1.bf16.msra.mxu0 %v2464
    %3055 = vmatprep.subr.bf16.mxu0 %v2495
    %3056 = vmatpush2.bf16.msra.mxu0 %v2494
    %3057 = vmatprep.subr.bf16.mxu0 %v2493
    %3058 = vmatpush2.bf16.msra.mxu0 %v2492
    %3059 = vmatprep.subr.bf16.mxu0 %v2491
    %3060 = vmatpush2.bf16.msra.mxu0 %v2490
    %3061 = vmatprep.subr.bf16.mxu0 %v2489
    %3062 = vmatpush2.bf16.msra.mxu0 %v2488
    %3063 = vmatprep.subr.bf16.mxu0 %v2487
    %3064 = vmatpush2.bf16.msra.mxu0 %v2486
    %3065 = vmatprep.subr.bf16.mxu0 %v2485
    %3066 = vmatpush2.bf16.msra.mxu0 %v2484
    %3067 = vmatprep.subr.bf16.mxu0 %v2483
    %3068 = vmatpush2.bf16.msra.mxu0 %v2482
    %3069 = vmatprep.subr.bf16.mxu0 %v2481
    %3070 = vmatpush2.bf16.msra.mxu0 %v2480
    %3071 = vmatprep.mubr.bf16.mxu0 %v1455
    %3072 = vmatmul.mubr.bf16.gmra.mxu0 %v1454
    %v3073 = vpop.f32.mrf.mxu0
    %v3074 = vadd.f32 %v3033, %v3073
    %v3075 = vpop.f32.mrf.mxu0
    %v3076 = vadd.f32 %v3035, %v3075
    %v3077 = vpop.f32.mrf.mxu0
    %v3078 = vpop.f32.mrf.mxu0
    %3079 = vdwg.mxu0
    %v3082 = vcombine.low %v3074, %v3076
    %v3084 = vunpack.c.l.s4 1983009808
    %v3085 = vunpack.c.0.s8 %v3084
    %v3086 = vlaneseq
    %v3087 = vshrl.u32 %v3086, 7
    %v3088 = vsub.s32 %v3085, %v3087
    %v3089 = vrot.slane %v3082, %v3088
    %3091 = vst [vmem:[#allocation4] sm:$0xf] %v3089
    // Predicated region
    $region14: #{cnn_encoder_2048f.2} parent=1 // pred_check
      _
    $region15: #{cnn_encoder_2048f.2} parent=1 // pred_check_branch
      %3093 = sbr.rel (0) target = $region17
    $region16: #{cnn_encoder_2048f.2} parent=1 // pred_region
      %s3095 = ssub.s32 512, 512
      %3096 = vsyncadd [#allocation3], %s3095
      %s3098 = sshll.u32 [#allocation2], 4
      %s3099 = int_to_ptr.vmem [resolvable:$true] %s3098
      %3101 = dma.vmem_to_hbm [thread:$0]  %s3099, 512, %s3, [#allocation3]
    $region17: #{cnn_encoder_2048f.2} parent=1 // pred_fallthru
      _
    // Predicated region
    $region18: #{cnn_encoder_2048f.2} parent=1 // pred_check
      _
    $region19: #{cnn_encoder_2048f.2} parent=1 // pred_check_branch
      %3103 = sbr.rel (0) target = $region21
    $region20: #{cnn_encoder_2048f.2} parent=1 // pred_region
      %s3105 = ssub.s32 64, 64
      %3106 = vsyncadd [#allocation5], %s3105
      %s3108 = sshll.u32 [#allocation4], 4
      %s3109 = int_to_ptr.vmem [resolvable:$true] %s3108
      %3111 = dma.vmem_to_hbm [thread:$0]  %s3109, 64, %s4, [#allocation5]
    $region21: #{cnn_encoder_2048f.2} parent=1 // pred_fallthru
      _
    // Predicated region
    $region22: #{cnn_encoder_2048f.2} parent=1 // pred_check
      _
    $region23: #{cnn_encoder_2048f.2} parent=1 // pred_check_branch
      %3113 = sbr.rel (0) target = $region25
    $region24: #{cnn_encoder_2048f.2} parent=1 // pred_region
      %3114 = dma.done [#allocation3], 512
    $region25: #{cnn_encoder_2048f.2} parent=1 // pred_fallthru
      _
    // Predicated region
    $region26: #{cnn_encoder_2048f.2} parent=1 // pred_check
      _
    $region27: #{cnn_encoder_2048f.2} parent=1 // pred_check_branch
      %3116 = sbr.rel (0) target = $region29
    $region28: #{cnn_encoder_2048f.2} parent=1 // pred_region
      %3117 = dma.done [#allocation5], 64
    $region29: #{cnn_encoder_2048f.2} parent=1 // pred_fallthru
      _
    %3118 = vsyncpa [#allocation3], 1
    %3119 = vsyncpa [#allocation5], 1

// kernel: cnn_encoder_2048f.3
$region0: #{cnn_encoder_2048f.3}
  #allocation0 [shape = 'u32[]', space=smem, size = 0x4, offset = 0x4, fixed_abs, tag = 'smem constant byte address 0x4 - core index']
  #allocation1 [shape = 'u32[144,128]{1,0:T(1,128)}', space=vmem, size = 0x12000, scoped, tag = 'internal scratch']
  %s0 = inlined_call_operand.vmem [shape: bf16[578,768], index: 0, kind: input, shape index: {}]
  %s1 = inlined_call_operand.vmem [shape: bf16[768,256], index: 1, kind: input, shape index: {}]
  %s2 = inlined_call_operand.vmem [shape: f32[578,256], index: 2, kind: output, shape index: {}]
  %s3 = sld [smem:[#allocation0]]
  $region67: #{cnn_encoder_2048f.3} parent=0
    _
  %s5 = ssub.s32 1, %s3
  %s6 = scalar_select 0, %s5, %s3
  $region1: #{cnn_encoder_2048f.3} parent=0
    #allocation2 [shape = 'u8[1048576]{0}', space=vmem, size = 0x100000, scoped, tag = 'output window, operand 0']
    loop: start=0, step=1, limit=4
    $region2: #{cnn_encoder_2048f.3} parent=1 // loop_pre_header
      _
    $region3: #{cnn_encoder_2048f.3} parent=1 // loop_header
      %s8 = sphi 0, %s12
      %p9 = scmp.ge.s32.totalorder %s8, 4
      %s18 = sphi 0, %s20
      %s21 = sphi 0, %s18
      %s22 = sphi 0, %s21
      %s38 = sphi 0, %s22
      %s42 = sphi 0, %s42
      %s44 = sphi 0, %s42
      %s45 = sphi 0, %s44
      %s59 = sphi 0, %s45
      %s65 = sphi 0, %s67
      %s68 = sphi 0, %s65
      %s69 = sphi 0, %s68
      %s85 = sphi 0, %s69
    $region4: #{cnn_encoder_2048f.3} parent=1 // loop_header_branch
      %11 = sbr.rel (%p9) target = $region8
    $region5: #{cnn_encoder_2048f.3} parent=1 // loop_body
      %s13 = ssub.s32 %s8, 1
      %s14 = ssub.s32 %s8, 2
      %s15 = sadd.s32 %s8, 1
      %s16 = ssub.s32 %s8, %s15
      %p17 = scmp.eq.s32.totalorder %s16, 0
      %s19 = sadd.s32 %s18, 1
      %s20 = scalar_select %p17, %s18, %s19
      %p23 = pneg %p17
      %p24 = scmp.eq.s32.totalorder %s8, 1
      %p25 = por %p23, %p24
      %p26 = scmp.ne.s32.totalorder %s18, %s21
      %p27 = scmp.eq.s32.totalorder %s8, 0
      %p28 = por %p26, %p27
      %p29 = scmp.ne.s32.totalorder %s18, %s21
      %p30 = scmp.eq.s32.totalorder %s13, 1
      %p31 = por %p29, %p30
      %p32 = scmp.ne.s32.totalorder %s21, %s22
      %p33 = scmp.eq.s32.totalorder %s13, 0
      %p34 = por %p32, %p33
      %p35 = scmp.ne.s32.totalorder %s21, %s22
      %p36 = scmp.eq.s32.totalorder %s14, 1
      %p37 = por %p35, %p36
      %p39 = scmp.ne.s32.totalorder %s22, %s38
      %p40 = scmp.eq.s32.totalorder %s14, 0
      %p41 = por %p39, %p40
      %s43 = sadd.s32 %s42, 1
      %p46 = scmp.eq.s32.totalorder %s8, 1
      %p47 = scmp.ne.s32.totalorder %s42, %s44
      %p48 = scmp.eq.s32.totalorder %s8, 0
      %p49 = por %p47, %p48
      %p50 = scmp.ne.s32.totalorder %s42, %s44
      %p51 = scmp.eq.s32.totalorder %s13, 1
      %p52 = por %p50, %p51
      %p53 = scmp.ne.s32.totalorder %s44, %s45
      %p54 = scmp.eq.s32.totalorder %s13, 0
      %p55 = por %p53, %p54
      %p56 = scmp.ne.s32.totalorder %s44, %s45
      %p57 = scmp.eq.s32.totalorder %s14, 1
      %p58 = por %p56, %p57
      %p60 = scmp.ne.s32.totalorder %s45, %s59
      %p61 = scmp.eq.s32.totalorder %s14, 0
      %p62 = por %p60, %p61
      %s63 = ssub.s32 %s8, %s15
      %p64 = scmp.eq.s32.totalorder %s63, 0
      %s66 = sadd.s32 %s65, 1
      %s67 = scalar_select %p64, %s65, %s66
      %p70 = pneg %p64
      %p71 = scmp.eq.s32.totalorder %s8, 1
      %p72 = por %p70, %p71
      %p73 = scmp.ne.s32.totalorder %s65, %s68
      %p74 = scmp.eq.s32.totalorder %s8, 0
      %p75 = por %p73, %p74
      %p76 = scmp.ne.s32.totalorder %s65, %s68
      %p77 = scmp.eq.s32.totalorder %s13, 1
      %p78 = por %p76, %p77
      %p79 = scmp.ne.s32.totalorder %s68, %s69
      %p80 = scmp.eq.s32.totalorder %s13, 0
      %p81 = por %p79, %p80
      %p82 = scmp.ne.s32.totalorder %s68, %s69
      %p83 = scmp.eq.s32.totalorder %s14, 1
      %p84 = por %p82, %p83
      %p86 = scmp.ne.s32.totalorder %s69, %s85
      %p87 = scmp.eq.s32.totalorder %s14, 0
      %p88 = por %p86, %p87
      %p89 = scmp.le.s32.totalorder 1, %s8
      %p90 = scmp.lt.s32.totalorder %s8, 3
      %p91 = pnand %p89, %p90
      %p92 = pneg %p91
      // Predicated region
      $region9: #{cnn_encoder_2048f.3} parent=5 // pred_check
        _
      $region10: #{cnn_encoder_2048f.3} parent=5 // pred_check_branch
        %94 = sbr.rel (%p91) target = $region12
      $region11: #{cnn_encoder_2048f.3} parent=5 // pred_region
        %s95 = ssub.s32 %s8, 1
        // Predicated region
        $region13: #{cnn_encoder_2048f.3} parent=11 // pred_check
          %p96 = pneg %p55
        $region14: #{cnn_encoder_2048f.3} parent=11 // pred_check_branch
          %98 = sbr.rel (%p96) target = $region16
        $region15: #{cnn_encoder_2048f.3} parent=11 // pred_region
          _
        $region16: #{cnn_encoder_2048f.3} parent=11 // pred_fallthru
          _
      $region12: #{cnn_encoder_2048f.3} parent=5 // pred_fallthru
        _
      %p99 = scmp.lt.s32.totalorder %s8, 2
      // Predicated region
      $region17: #{cnn_encoder_2048f.3} parent=5 // pred_check
        %p100 = pneg %p99
      $region18: #{cnn_encoder_2048f.3} parent=5 // pred_check_branch
        %102 = sbr.rel (%p100) target = $region20
      $region19: #{cnn_encoder_2048f.3} parent=5 // pred_region
        // Predicated region
        $region21: #{cnn_encoder_2048f.3} parent=19 // pred_check
          %p103 = pneg %p28
        $region22: #{cnn_encoder_2048f.3} parent=19 // pred_check_branch
          %105 = sbr.rel (%p103) target = $region24
        $region23: #{cnn_encoder_2048f.3} parent=19 // pred_region
          %s106 = smul.u32 64, %s8
          %s107 = ssub.s32 73, %s106
          %p108 = scmp.lt.s32.totalorder %s107, 64
          %s109 = scalar_select %p108, %s107, 64
          %s110 = smul.u32 64, %s109
          %s111 = smul.u32 %s110, 6
          %p112 = scmp.lt.s32.totalorder %s106, 72
          %s113 = scalar_select %p112, %s106, 72
          %s114 = smul.addr %s113, 6
          %s115 = smul.addr %s114, 4
          %s116 = scalar_lea.vmem %s0, %s115
          %s117 = smul.u32 64, %s8
          %s118 = ssub.s32 73, %s117
          %p119 = scmp.lt.s32.totalorder %s118, 64
          %s120 = scalar_select %p119, %s118, 64
          %s121 = smul.u32 64, %s120
          %s122 = smul.u32 %s121, 6
        $region24: #{cnn_encoder_2048f.3} parent=19 // pred_fallthru
          _
      $region20: #{cnn_encoder_2048f.3} parent=5 // pred_fallthru
        _
      %p123 = scmp.le.s32.totalorder 1, %s8
      %p124 = scmp.lt.s32.totalorder %s8, 3
      %p125 = pnand %p123, %p124
      %p126 = pneg %p125
      // Predicated region
      $region25: #{cnn_encoder_2048f.3} parent=5 // pred_check
        _
      $region26: #{cnn_encoder_2048f.3} parent=5 // pred_check_branch
        %128 = sbr.rel (%p125) target = $region28
      $region27: #{cnn_encoder_2048f.3} parent=5 // pred_region
        %s129 = ssub.s32 %s8, 1
        %s130 = smul.u32 64, %s13
        %s131 = ssub.s32 73, %s130
        %p132 = scmp.lt.s32.totalorder %s131, 64
        %s133 = scalar_select %p132, %s131, 64
        %s134 = smul.u32 64, %s133
        %s135 = smul.u32 %s134, 6
        %p136 = scmp.lt.s32.totalorder %s130, 72
        %s137 = scalar_select %p136, %s130, 72
        %s138 = smul.addr %s137, 6
        %s139 = smul.addr %s138, 4
        %s140 = scalar_lea.vmem %s0, %s139
        %p141 = pneg %p34
        %p142 = pneg %p31
        %p143 = pneg %p55
        %p144 = pneg %p52
        %p145 = pneg %p81
        %p146 = pneg %p78
        %s147 = sand.u32 %s68, 1
        %s148 = sand.u32 %s68, 1
        %s149 = smul.addr %s148, 1024
        %s150 = scalar_lea.vmem [#allocation2], %s149
        %s151 = smul.u32 64, %s13
        %s152 = ssub.s32 73, %s151
        %p153 = scmp.lt.s32.totalorder %s152, 64
        %s154 = scalar_select %p153, %s152, 64
        %s155 = smul.u32 64, %s154
        %s156 = smul.u32 %s155, 6
        %p157 = scmp.lt.s32.totalorder %s151, 72
        %s158 = scalar_select %p157, %s151, 72
        %s159 = smul.addr %s158, 6
        %s160 = smul.addr %s159, 4
        %s161 = scalar_lea.vmem %s0, %s160
        %s162 = smul.u32 64, %s13
        %s163 = ssub.s32 73, %s162
        %p164 = scmp.lt.s32.totalorder %s163, 64
        %s165 = scalar_select %p164, %s163, 64
        %s166 = smul.u32 64, %s165
        %s167 = smul.u32 %s166, 6
        %s168 = smul.u32 64, %s13
        %s169 = ssub.s32 73, %s168
        %p170 = scmp.lt.s32.totalorder %s169, 64
        %s171 = scalar_select %p170, %s169, 64
        %s172 = smul.u32 128, %s171
        %s173 = smul.u32 %s172, 2
        %v174 = vld [vmem:[%s161] sm:$0xff]
        %v175 = vld [vmem:[%s161 + $0x8] sm:$0xff]
        %v176 = vld [vmem:[%s161 + $0x10] sm:$0xff]
        %v177 = vld [vmem:[%s161 + $0x18] sm:$0xff]
        %v178 = vld [vmem:[%s161 + $0x20] sm:$0xff]
        %v179 = vld [vmem:[%s161 + $0x28] sm:$0xff]
        %v180 = vld [vmem:[%s161 + $0x30] sm:$0xff]
        %v181 = vld [vmem:[%s161 + $0x38] sm:$0xff]
        %v182 = vld [vmem:[%s161 + $0x40] sm:$0xff]
        %v183 = vld [vmem:[%s161 + $0x48] sm:$0xff]
        %v184 = vld [vmem:[%s161 + $0x50] sm:$0xff]
        %v185 = vld [vmem:[%s161 + $0x58] sm:$0xff]
        %v186 = vld [vmem:[%s161 + $0x60] sm:$0xff]
        %v187 = vld [vmem:[%s161 + $0x68] sm:$0xff]
        %v188 = vld [vmem:[%s161 + $0x70] sm:$0xff]
        %v189 = vld [vmem:[%s161 + $0x78] sm:$0xff]
        %v190 = vld [vmem:[%s161 + $0x80] sm:$0xff]
        %v191 = vld [vmem:[%s161 + $0x88] sm:$0xff]
        %v192 = vld [vmem:[%s161 + $0x90] sm:$0xff]
        %v193 = vld [vmem:[%s161 + $0x98] sm:$0xff]
        %v194 = vld [vmem:[%s161 + $0xa0] sm:$0xff]
        %v195 = vld [vmem:[%s161 + $0xa8] sm:$0xff]
        %v196 = vld [vmem:[%s161 + $0xb0] sm:$0xff]
        %v197 = vld [vmem:[%s161 + $0xb8] sm:$0xff]
        %v198 = vld [vmem:[%s161 + $0xc0] sm:$0xff]
        %v199 = vld [vmem:[%s161 + $0xc8] sm:$0xff]
        %v200 = vld [vmem:[%s161 + $0xd0] sm:$0xff]
        %v201 = vld [vmem:[%s161 + $0xd8] sm:$0xff]
        %v202 = vld [vmem:[%s161 + $0xe0] sm:$0xff]
        %v203 = vld [vmem:[%s161 + $0xe8] sm:$0xff]
        %v204 = vld [vmem:[%s161 + $0xf0] sm:$0xff]
        %v205 = vld [vmem:[%s161 + $0xf8] sm:$0xff]
        %v206 = vld [vmem:[%s161 + $0x100] sm:$0xff]
        %v207 = vld [vmem:[%s161 + $0x108] sm:$0xff]
        %v208 = vld [vmem:[%s161 + $0x110] sm:$0xff]
        %v209 = vld [vmem:[%s161 + $0x118] sm:$0xff]
        %v210 = vld [vmem:[%s161 + $0x120] sm:$0xff]
        %v211 = vld [vmem:[%s161 + $0x128] sm:$0xff]
        %v212 = vld [vmem:[%s161 + $0x130] sm:$0xff]
        %v213 = vld [vmem:[%s161 + $0x138] sm:$0xff]
        %v214 = vld [vmem:[%s161 + $0x140] sm:$0xff]
        %v215 = vld [vmem:[%s161 + $0x148] sm:$0xff]
        %v216 = vld [vmem:[%s161 + $0x150] sm:$0xff]
        %v217 = vld [vmem:[%s161 + $0x158] sm:$0xff]
        %v218 = vld [vmem:[%s161 + $0x160] sm:$0xff]
        %v219 = vld [vmem:[%s161 + $0x168] sm:$0xff]
        %v220 = vld [vmem:[%s161 + $0x170] sm:$0xff]
        %v221 = vld [vmem:[%s161 + $0x178] sm:$0xff]
        %v222 = vld [vmem:[%s161 + $0x180] sm:$0xff]
        %v223 = vld [vmem:[%s161 + $0x188] sm:$0xff]
        %v224 = vld [vmem:[%s161 + $0x190] sm:$0xff]
        %v225 = vld [vmem:[%s161 + $0x198] sm:$0xff]
        %v226 = vld [vmem:[%s161 + $0x1a0] sm:$0xff]
        %v227 = vld [vmem:[%s161 + $0x1a8] sm:$0xff]
        %v228 = vld [vmem:[%s161 + $0x1b0] sm:$0xff]
        %v229 = vld [vmem:[%s161 + $0x1b8] sm:$0xff]
        %v230 = vld [vmem:[%s161 + $0x1c0] sm:$0xff]
        %v231 = vld [vmem:[%s161 + $0x1c8] sm:$0xff]
        %v232 = vld [vmem:[%s161 + $0x1d0] sm:$0xff]
        %v233 = vld [vmem:[%s161 + $0x1d8] sm:$0xff]
        %v234 = vld [vmem:[%s161 + $0x1e0] sm:$0xff]
        %v235 = vld [vmem:[%s161 + $0x1e8] sm:$0xff]
        %v236 = vld [vmem:[%s161 + $0x1f0] sm:$0xff]
        %v237 = vld [vmem:[%s161 + $0x1f8] sm:$0xff]
        %v238 = vld [vmem:[%s161 + $0x200] sm:$0xff]
        %v239 = vld [vmem:[%s161 + $0x208] sm:$0xff]
        %v240 = vld [vmem:[%s161 + $0x210] sm:$0xff]
        %v241 = vld [vmem:[%s161 + $0x218] sm:$0xff]
        %v242 = vld [vmem:[%s161 + $0x220] sm:$0xff]
        %v243 = vld [vmem:[%s161 + $0x228] sm:$0xff]
        %v244 = vld [vmem:[%s161 + $0x230] sm:$0xff]
        %v245 = vld [vmem:[%s161 + $0x238] sm:$0xff]
        %v246 = vld [vmem:[%s161 + $0x240] sm:$0xff]
        %v247 = vld [vmem:[%s161 + $0x248] sm:$0xff]
        %v248 = vld [vmem:[%s161 + $0x250] sm:$0xff]
        %v249 = vld [vmem:[%s161 + $0x258] sm:$0xff]
        %v250 = vld [vmem:[%s161 + $0x260] sm:$0xff]
        %v251 = vld [vmem:[%s161 + $0x268] sm:$0xff]
        %v252 = vld [vmem:[%s161 + $0x270] sm:$0xff]
        %v253 = vld [vmem:[%s161 + $0x278] sm:$0xff]
        %v254 = vld [vmem:[%s161 + $0x280] sm:$0xff]
        %v255 = vld [vmem:[%s161 + $0x288] sm:$0xff]
        %v256 = vld [vmem:[%s161 + $0x290] sm:$0xff]
        %v257 = vld [vmem:[%s161 + $0x298] sm:$0xff]
        %v258 = vld [vmem:[%s161 + $0x2a0] sm:$0xff]
        %v259 = vld [vmem:[%s161 + $0x2a8] sm:$0xff]
        %v260 = vld [vmem:[%s161 + $0x2b0] sm:$0xff]
        %v261 = vld [vmem:[%s161 + $0x2b8] sm:$0xff]
        %v262 = vld [vmem:[%s161 + $0x2c0] sm:$0xff]
        %v263 = vld [vmem:[%s161 + $0x2c8] sm:$0xff]
        %v264 = vld [vmem:[%s161 + $0x2d0] sm:$0xff]
        %v265 = vld [vmem:[%s161 + $0x2d8] sm:$0xff]
        %v266 = vld [vmem:[%s161 + $0x2e0] sm:$0xff]
        %v267 = vld [vmem:[%s161 + $0x2e8] sm:$0xff]
        %v268 = vld [vmem:[%s161 + $0x2f0] sm:$0xff]
        %v269 = vld [vmem:[%s161 + $0x2f8] sm:$0xff]
        %v270 = vld [vmem:[%s161 + $0x300] sm:$0xff]
        %v271 = vld [vmem:[%s161 + $0x308] sm:$0xff]
        %v272 = vld [vmem:[%s161 + $0x310] sm:$0xff]
        %v273 = vld [vmem:[%s161 + $0x318] sm:$0xff]
        %v274 = vld [vmem:[%s161 + $0x320] sm:$0xff]
        %v275 = vld [vmem:[%s161 + $0x328] sm:$0xff]
        %v276 = vld [vmem:[%s161 + $0x330] sm:$0xff]
        %v277 = vld [vmem:[%s161 + $0x338] sm:$0xff]
        %v278 = vld [vmem:[%s161 + $0x340] sm:$0xff]
        %v279 = vld [vmem:[%s161 + $0x348] sm:$0xff]
        %v280 = vld [vmem:[%s161 + $0x350] sm:$0xff]
        %v281 = vld [vmem:[%s161 + $0x358] sm:$0xff]
        %v282 = vld [vmem:[%s161 + $0x360] sm:$0xff]
        %v283 = vld [vmem:[%s161 + $0x368] sm:$0xff]
        %v284 = vld [vmem:[%s161 + $0x370] sm:$0xff]
        %v285 = vld [vmem:[%s161 + $0x378] sm:$0xff]
        %v286 = vld [vmem:[%s161 + $0x380] sm:$0xff]
        %v287 = vld [vmem:[%s161 + $0x388] sm:$0xff]
        %v288 = vld [vmem:[%s161 + $0x390] sm:$0xff]
        %v289 = vld [vmem:[%s161 + $0x398] sm:$0xff]
        %v290 = vld [vmem:[%s161 + $0x3a0] sm:$0xff]
        %v291 = vld [vmem:[%s161 + $0x3a8] sm:$0xff]
        %v292 = vld [vmem:[%s161 + $0x3b0] sm:$0xff]
        %v293 = vld [vmem:[%s161 + $0x3b8] sm:$0xff]
        %v294 = vld [vmem:[%s161 + $0x3c0] sm:$0xff]
        %v295 = vld [vmem:[%s161 + $0x3c8] sm:$0xff]
        %v296 = vld [vmem:[%s161 + $0x3d0] sm:$0xff]
        %v297 = vld [vmem:[%s161 + $0x3d8] sm:$0xff]
        %v298 = vld [vmem:[%s161 + $0x3e0] sm:$0xff]
        %v299 = vld [vmem:[%s161 + $0x3e8] sm:$0xff]
        %v300 = vld [vmem:[%s161 + $0x3f0] sm:$0xff]
        %v301 = vld [vmem:[%s161 + $0x3f8] sm:$0xff]
        %v302 = vld [vmem:[%s161 + $0x400] sm:$0xff]
        %v303 = vld [vmem:[%s161 + $0x408] sm:$0xff]
        %v304 = vld [vmem:[%s161 + $0x410] sm:$0xff]
        %v305 = vld [vmem:[%s161 + $0x418] sm:$0xff]
        %v306 = vld [vmem:[%s161 + $0x420] sm:$0xff]
        %v307 = vld [vmem:[%s161 + $0x428] sm:$0xff]
        %v308 = vld [vmem:[%s161 + $0x430] sm:$0xff]
        %v309 = vld [vmem:[%s161 + $0x438] sm:$0xff]
        %v310 = vld [vmem:[%s161 + $0x440] sm:$0xff]
        %v311 = vld [vmem:[%s161 + $0x448] sm:$0xff]
        %v312 = vld [vmem:[%s161 + $0x450] sm:$0xff]
        %v313 = vld [vmem:[%s161 + $0x458] sm:$0xff]
        %v314 = vld [vmem:[%s161 + $0x460] sm:$0xff]
        %v315 = vld [vmem:[%s161 + $0x468] sm:$0xff]
        %v316 = vld [vmem:[%s161 + $0x470] sm:$0xff]
        %v317 = vld [vmem:[%s161 + $0x478] sm:$0xff]
        %v318 = vld [vmem:[%s161 + $0x480] sm:$0xff]
        %v319 = vld [vmem:[%s161 + $0x488] sm:$0xff]
        %v320 = vld [vmem:[%s161 + $0x490] sm:$0xff]
        %v321 = vld [vmem:[%s161 + $0x498] sm:$0xff]
        %v322 = vld [vmem:[%s161 + $0x4a0] sm:$0xff]
        %v323 = vld [vmem:[%s161 + $0x4a8] sm:$0xff]
        %v324 = vld [vmem:[%s161 + $0x4b0] sm:$0xff]
        %v325 = vld [vmem:[%s161 + $0x4b8] sm:$0xff]
        %v326 = vld [vmem:[%s161 + $0x4c0] sm:$0xff]
        %v327 = vld [vmem:[%s161 + $0x4c8] sm:$0xff]
        %v328 = vld [vmem:[%s161 + $0x4d0] sm:$0xff]
        %v329 = vld [vmem:[%s161 + $0x4d8] sm:$0xff]
        %v330 = vld [vmem:[%s161 + $0x4e0] sm:$0xff]
        %v331 = vld [vmem:[%s161 + $0x4e8] sm:$0xff]
        %v332 = vld [vmem:[%s161 + $0x4f0] sm:$0xff]
        %v333 = vld [vmem:[%s161 + $0x4f8] sm:$0xff]
        %v334 = vld [vmem:[%s161 + $0x500] sm:$0xff]
        %v335 = vld [vmem:[%s161 + $0x508] sm:$0xff]
        %v336 = vld [vmem:[%s161 + $0x510] sm:$0xff]
        %v337 = vld [vmem:[%s161 + $0x518] sm:$0xff]
        %v338 = vld [vmem:[%s161 + $0x520] sm:$0xff]
        %v339 = vld [vmem:[%s161 + $0x528] sm:$0xff]
        %v340 = vld [vmem:[%s161 + $0x530] sm:$0xff]
        %v341 = vld [vmem:[%s161 + $0x538] sm:$0xff]
        %v342 = vld [vmem:[%s161 + $0x540] sm:$0xff]
        %v343 = vld [vmem:[%s161 + $0x548] sm:$0xff]
        %v344 = vld [vmem:[%s161 + $0x550] sm:$0xff]
        %v345 = vld [vmem:[%s161 + $0x558] sm:$0xff]
        %v346 = vld [vmem:[%s161 + $0x560] sm:$0xff]
        %v347 = vld [vmem:[%s161 + $0x568] sm:$0xff]
        %v348 = vld [vmem:[%s161 + $0x570] sm:$0xff]
        %v349 = vld [vmem:[%s161 + $0x578] sm:$0xff]
        %v350 = vld [vmem:[%s161 + $0x580] sm:$0xff]
        %v351 = vld [vmem:[%s161 + $0x588] sm:$0xff]
        %v352 = vld [vmem:[%s161 + $0x590] sm:$0xff]
        %v353 = vld [vmem:[%s161 + $0x598] sm:$0xff]
        %v354 = vld [vmem:[%s161 + $0x5a0] sm:$0xff]
        %v355 = vld [vmem:[%s161 + $0x5a8] sm:$0xff]
        %v356 = vld [vmem:[%s161 + $0x5b0] sm:$0xff]
        %v357 = vld [vmem:[%s161 + $0x5b8] sm:$0xff]
        %v358 = vld [vmem:[%s161 + $0x5c0] sm:$0xff]
        %v359 = vld [vmem:[%s161 + $0x5c8] sm:$0xff]
        %v360 = vld [vmem:[%s161 + $0x5d0] sm:$0xff]
        %v361 = vld [vmem:[%s161 + $0x5d8] sm:$0xff]
        %v362 = vld [vmem:[%s161 + $0x5e0] sm:$0xff]
        %v363 = vld [vmem:[%s161 + $0x5e8] sm:$0xff]
        %v364 = vld [vmem:[%s161 + $0x5f0] sm:$0xff]
        %v365 = vld [vmem:[%s161 + $0x5f8] sm:$0xff]
        %v366 = vld [vmem:[%s1] sm:$0xff]
        %v367 = vld [vmem:[%s1 + $0x8] sm:$0xff]
        %v368 = vld [vmem:[%s1 + $0x10] sm:$0xff]
        %v369 = vld [vmem:[%s1 + $0x18] sm:$0xff]
        %v370 = vld [vmem:[%s1 + $0x20] sm:$0xff]
        %v371 = vld [vmem:[%s1 + $0x28] sm:$0xff]
        %v372 = vld [vmem:[%s1 + $0x30] sm:$0xff]
        %v373 = vld [vmem:[%s1 + $0x38] sm:$0xff]
        %v374 = vld [vmem:[%s1 + $0x40] sm:$0xff]
        %v375 = vld [vmem:[%s1 + $0x48] sm:$0xff]
        %v376 = vld [vmem:[%s1 + $0x50] sm:$0xff]
        %v377 = vld [vmem:[%s1 + $0x58] sm:$0xff]
        %v378 = vld [vmem:[%s1 + $0x60] sm:$0xff]
        %v379 = vld [vmem:[%s1 + $0x68] sm:$0xff]
        %v380 = vld [vmem:[%s1 + $0x70] sm:$0xff]
        %v381 = vld [vmem:[%s1 + $0x78] sm:$0xff]
        %v382 = vld [vmem:[%s1 + $0x80] sm:$0xff]
        %v383 = vld [vmem:[%s1 + $0x88] sm:$0xff]
        %v384 = vld [vmem:[%s1 + $0x90] sm:$0xff]
        %v385 = vld [vmem:[%s1 + $0x98] sm:$0xff]
        %v386 = vld [vmem:[%s1 + $0xa0] sm:$0xff]
        %v387 = vld [vmem:[%s1 + $0xa8] sm:$0xff]
        %v388 = vld [vmem:[%s1 + $0xb0] sm:$0xff]
        %v389 = vld [vmem:[%s1 + $0xb8] sm:$0xff]
        %v390 = vld [vmem:[%s1 + $0xc0] sm:$0xff]
        %v391 = vld [vmem:[%s1 + $0xc8] sm:$0xff]
        %v392 = vld [vmem:[%s1 + $0xd0] sm:$0xff]
        %v393 = vld [vmem:[%s1 + $0xd8] sm:$0xff]
        %v394 = vld [vmem:[%s1 + $0xe0] sm:$0xff]
        %v395 = vld [vmem:[%s1 + $0xe8] sm:$0xff]
        %v396 = vld [vmem:[%s1 + $0xf0] sm:$0xff]
        %v397 = vld [vmem:[%s1 + $0xf8] sm:$0xff]
        %v398 = vld [vmem:[%s1 + $0x100] sm:$0xff]
        %v399 = vld [vmem:[%s1 + $0x108] sm:$0xff]
        %v400 = vld [vmem:[%s1 + $0x110] sm:$0xff]
        %v401 = vld [vmem:[%s1 + $0x118] sm:$0xff]
        %v402 = vld [vmem:[%s1 + $0x120] sm:$0xff]
        %v403 = vld [vmem:[%s1 + $0x128] sm:$0xff]
        %v404 = vld [vmem:[%s1 + $0x130] sm:$0xff]
        %v405 = vld [vmem:[%s1 + $0x138] sm:$0xff]
        %v406 = vld [vmem:[%s1 + $0x140] sm:$0xff]
        %v407 = vld [vmem:[%s1 + $0x148] sm:$0xff]
        %v408 = vld [vmem:[%s1 + $0x150] sm:$0xff]
        %v409 = vld [vmem:[%s1 + $0x158] sm:$0xff]
        %v410 = vld [vmem:[%s1 + $0x160] sm:$0xff]
        %v411 = vld [vmem:[%s1 + $0x168] sm:$0xff]
        %v412 = vld [vmem:[%s1 + $0x170] sm:$0xff]
        %v413 = vld [vmem:[%s1 + $0x178] sm:$0xff]
        %v414 = vld [vmem:[%s1 + $0x180] sm:$0xff]
        %v415 = vld [vmem:[%s1 + $0x188] sm:$0xff]
        %v416 = vld [vmem:[%s1 + $0x190] sm:$0xff]
        %v417 = vld [vmem:[%s1 + $0x198] sm:$0xff]
        %v418 = vld [vmem:[%s1 + $0x1a0] sm:$0xff]
        %v419 = vld [vmem:[%s1 + $0x1a8] sm:$0xff]
        %v420 = vld [vmem:[%s1 + $0x1b0] sm:$0xff]
        %v421 = vld [vmem:[%s1 + $0x1b8] sm:$0xff]
        %v422 = vld [vmem:[%s1 + $0x1c0] sm:$0xff]
        %v423 = vld [vmem:[%s1 + $0x1c8] sm:$0xff]
        %v424 = vld [vmem:[%s1 + $0x1d0] sm:$0xff]
        %v425 = vld [vmem:[%s1 + $0x1d8] sm:$0xff]
        %v426 = vld [vmem:[%s1 + $0x1e0] sm:$0xff]
        %v427 = vld [vmem:[%s1 + $0x1e8] sm:$0xff]
        %v428 = vld [vmem:[%s1 + $0x1f0] sm:$0xff]
        %v429 = vld [vmem:[%s1 + $0x1f8] sm:$0xff]
        %v430 = vld [vmem:[%s1 + $0x200] sm:$0xff]
        %v431 = vld [vmem:[%s1 + $0x208] sm:$0xff]
        %v432 = vld [vmem:[%s1 + $0x210] sm:$0xff]
        %v433 = vld [vmem:[%s1 + $0x218] sm:$0xff]
        %v434 = vld [vmem:[%s1 + $0x220] sm:$0xff]
        %v435 = vld [vmem:[%s1 + $0x228] sm:$0xff]
        %v436 = vld [vmem:[%s1 + $0x230] sm:$0xff]
        %v437 = vld [vmem:[%s1 + $0x238] sm:$0xff]
        %v438 = vld [vmem:[%s1 + $0x240] sm:$0xff]
        %v439 = vld [vmem:[%s1 + $0x248] sm:$0xff]
        %v440 = vld [vmem:[%s1 + $0x250] sm:$0xff]
        %v441 = vld [vmem:[%s1 + $0x258] sm:$0xff]
        %v442 = vld [vmem:[%s1 + $0x260] sm:$0xff]
        %v443 = vld [vmem:[%s1 + $0x268] sm:$0xff]
        %v444 = vld [vmem:[%s1 + $0x270] sm:$0xff]
        %v445 = vld [vmem:[%s1 + $0x278] sm:$0xff]
        %v446 = vld [vmem:[%s1 + $0x280] sm:$0xff]
        %v447 = vld [vmem:[%s1 + $0x288] sm:$0xff]
        %v448 = vld [vmem:[%s1 + $0x290] sm:$0xff]
        %v449 = vld [vmem:[%s1 + $0x298] sm:$0xff]
        %v450 = vld [vmem:[%s1 + $0x2a0] sm:$0xff]
        %v451 = vld [vmem:[%s1 + $0x2a8] sm:$0xff]
        %v452 = vld [vmem:[%s1 + $0x2b0] sm:$0xff]
        %v453 = vld [vmem:[%s1 + $0x2b8] sm:$0xff]
        %v454 = vld [vmem:[%s1 + $0x2c0] sm:$0xff]
        %v455 = vld [vmem:[%s1 + $0x2c8] sm:$0xff]
        %v456 = vld [vmem:[%s1 + $0x2d0] sm:$0xff]
        %v457 = vld [vmem:[%s1 + $0x2d8] sm:$0xff]
        %v458 = vld [vmem:[%s1 + $0x2e0] sm:$0xff]
        %v459 = vld [vmem:[%s1 + $0x2e8] sm:$0xff]
        %v460 = vld [vmem:[%s1 + $0x2f0] sm:$0xff]
        %v461 = vld [vmem:[%s1 + $0x2f8] sm:$0xff]
        %v654 = vunpack.c.l.b16 %v174
        %v655 = vunpack.c.h.b16 %v174
        %v656 = vunpack.c.l.b16 %v175
        %v657 = vunpack.c.h.b16 %v175
        %v658 = vunpack.c.l.b16 %v176
        %v659 = vunpack.c.h.b16 %v176
        %v660 = vunpack.c.l.b16 %v177
        %v661 = vunpack.c.h.b16 %v177
        %v662 = vunpack.c.l.b16 %v178
        %v663 = vunpack.c.h.b16 %v178
        %v664 = vunpack.c.l.b16 %v179
        %v665 = vunpack.c.h.b16 %v179
        %v666 = vunpack.c.l.b16 %v180
        %v667 = vunpack.c.h.b16 %v180
        %v668 = vunpack.c.l.b16 %v181
        %v669 = vunpack.c.h.b16 %v181
        %v670 = vunpack.c.l.b16 %v182
        %v671 = vunpack.c.h.b16 %v182
        %v672 = vunpack.c.l.b16 %v183
        %v673 = vunpack.c.h.b16 %v183
        %v674 = vunpack.c.l.b16 %v184
        %v675 = vunpack.c.h.b16 %v184
        %v676 = vunpack.c.l.b16 %v185
        %v677 = vunpack.c.h.b16 %v185
        %v678 = vunpack.c.l.b16 %v186
        %v679 = vunpack.c.h.b16 %v186
        %v680 = vunpack.c.l.b16 %v187
        %v681 = vunpack.c.h.b16 %v187
        %v682 = vunpack.c.l.b16 %v188
        %v683 = vunpack.c.h.b16 %v188
        %v684 = vunpack.c.l.b16 %v189
        %v685 = vunpack.c.h.b16 %v189
        %v686 = vunpack.c.l.b16 %v190
        %v687 = vunpack.c.h.b16 %v190
        %v688 = vunpack.c.l.b16 %v191
        %v689 = vunpack.c.h.b16 %v191
        %v690 = vunpack.c.l.b16 %v192
        %v691 = vunpack.c.h.b16 %v192
        %v692 = vunpack.c.l.b16 %v193
        %v693 = vunpack.c.h.b16 %v193
        %v694 = vunpack.c.l.b16 %v194
        %v695 = vunpack.c.h.b16 %v194
        %v696 = vunpack.c.l.b16 %v195
        %v697 = vunpack.c.h.b16 %v195
        %v698 = vunpack.c.l.b16 %v196
        %v699 = vunpack.c.h.b16 %v196
        %v700 = vunpack.c.l.b16 %v197
        %v701 = vunpack.c.h.b16 %v197
        %v702 = vunpack.c.l.b16 %v198
        %v703 = vunpack.c.h.b16 %v198
        %v704 = vunpack.c.l.b16 %v199
        %v705 = vunpack.c.h.b16 %v199
        %v706 = vunpack.c.l.b16 %v200
        %v707 = vunpack.c.h.b16 %v200
        %v708 = vunpack.c.l.b16 %v201
        %v709 = vunpack.c.h.b16 %v201
        %v710 = vunpack.c.l.b16 %v202
        %v711 = vunpack.c.h.b16 %v202
        %v712 = vunpack.c.l.b16 %v203
        %v713 = vunpack.c.h.b16 %v203
        %v714 = vunpack.c.l.b16 %v204
        %v715 = vunpack.c.h.b16 %v204
        %v716 = vunpack.c.l.b16 %v205
        %v717 = vunpack.c.h.b16 %v205
        %v718 = vunpack.c.l.b16 %v206
        %v719 = vunpack.c.h.b16 %v206
        %v720 = vunpack.c.l.b16 %v207
        %v721 = vunpack.c.h.b16 %v207
        %v722 = vunpack.c.l.b16 %v208
        %v723 = vunpack.c.h.b16 %v208
        %v724 = vunpack.c.l.b16 %v209
        %v725 = vunpack.c.h.b16 %v209
        %v726 = vunpack.c.l.b16 %v210
        %v727 = vunpack.c.h.b16 %v210
        %v728 = vunpack.c.l.b16 %v211
        %v729 = vunpack.c.h.b16 %v211
        %v730 = vunpack.c.l.b16 %v212
        %v731 = vunpack.c.h.b16 %v212
        %v732 = vunpack.c.l.b16 %v213
        %v733 = vunpack.c.h.b16 %v213
        %v734 = vunpack.c.l.b16 %v214
        %v735 = vunpack.c.h.b16 %v214
        %v736 = vunpack.c.l.b16 %v215
        %v737 = vunpack.c.h.b16 %v215
        %v738 = vunpack.c.l.b16 %v216
        %v739 = vunpack.c.h.b16 %v216
        %v740 = vunpack.c.l.b16 %v217
        %v741 = vunpack.c.h.b16 %v217
        %v742 = vunpack.c.l.b16 %v218
        %v743 = vunpack.c.h.b16 %v218
        %v744 = vunpack.c.l.b16 %v219
        %v745 = vunpack.c.h.b16 %v219
        %v746 = vunpack.c.l.b16 %v220
        %v747 = vunpack.c.h.b16 %v220
        %v748 = vunpack.c.l.b16 %v221
        %v749 = vunpack.c.h.b16 %v221
        %v750 = vunpack.c.l.b16 %v222
        %v751 = vunpack.c.h.b16 %v222
        %v752 = vunpack.c.l.b16 %v223
        %v753 = vunpack.c.h.b16 %v223
        %v754 = vunpack.c.l.b16 %v224
        %v755 = vunpack.c.h.b16 %v224
        %v756 = vunpack.c.l.b16 %v225
        %v757 = vunpack.c.h.b16 %v225
        %v758 = vunpack.c.l.b16 %v226
        %v759 = vunpack.c.h.b16 %v226
        %v760 = vunpack.c.l.b16 %v227
        %v761 = vunpack.c.h.b16 %v227
        %v762 = vunpack.c.l.b16 %v228
        %v763 = vunpack.c.h.b16 %v228
        %v764 = vunpack.c.l.b16 %v229
        %v765 = vunpack.c.h.b16 %v229
        %v766 = vunpack.c.l.b16 %v230
        %v767 = vunpack.c.h.b16 %v230
        %v768 = vunpack.c.l.b16 %v231
        %v769 = vunpack.c.h.b16 %v231
        %v770 = vunpack.c.l.b16 %v232
        %v771 = vunpack.c.h.b16 %v232
        %v772 = vunpack.c.l.b16 %v233
        %v773 = vunpack.c.h.b16 %v233
        %v774 = vunpack.c.l.b16 %v234
        %v775 = vunpack.c.h.b16 %v234
        %v776 = vunpack.c.l.b16 %v235
        %v777 = vunpack.c.h.b16 %v235
        %v778 = vunpack.c.l.b16 %v236
        %v779 = vunpack.c.h.b16 %v236
        %v780 = vunpack.c.l.b16 %v237
        %v781 = vunpack.c.h.b16 %v237
        %v782 = vunpack.c.l.b16 %v238
        %v783 = vunpack.c.h.b16 %v238
        %v784 = vunpack.c.l.b16 %v239
        %v785 = vunpack.c.h.b16 %v239
        %v786 = vunpack.c.l.b16 %v240
        %v787 = vunpack.c.h.b16 %v240
        %v788 = vunpack.c.l.b16 %v241
        %v789 = vunpack.c.h.b16 %v241
        %v790 = vunpack.c.l.b16 %v242
        %v791 = vunpack.c.h.b16 %v242
        %v792 = vunpack.c.l.b16 %v243
        %v793 = vunpack.c.h.b16 %v243
        %v794 = vunpack.c.l.b16 %v244
        %v795 = vunpack.c.h.b16 %v244
        %v796 = vunpack.c.l.b16 %v245
        %v797 = vunpack.c.h.b16 %v245
        %v798 = vunpack.c.l.b16 %v246
        %v799 = vunpack.c.h.b16 %v246
        %v800 = vunpack.c.l.b16 %v247
        %v801 = vunpack.c.h.b16 %v247
        %v802 = vunpack.c.l.b16 %v248
        %v803 = vunpack.c.h.b16 %v248
        %v804 = vunpack.c.l.b16 %v249
        %v805 = vunpack.c.h.b16 %v249
        %v806 = vunpack.c.l.b16 %v250
        %v807 = vunpack.c.h.b16 %v250
        %v808 = vunpack.c.l.b16 %v251
        %v809 = vunpack.c.h.b16 %v251
        %v810 = vunpack.c.l.b16 %v252
        %v811 = vunpack.c.h.b16 %v252
        %v812 = vunpack.c.l.b16 %v253
        %v813 = vunpack.c.h.b16 %v253
        %v814 = vunpack.c.l.b16 %v254
        %v815 = vunpack.c.h.b16 %v254
        %v816 = vunpack.c.l.b16 %v255
        %v817 = vunpack.c.h.b16 %v255
        %v818 = vunpack.c.l.b16 %v256
        %v819 = vunpack.c.h.b16 %v256
        %v820 = vunpack.c.l.b16 %v257
        %v821 = vunpack.c.h.b16 %v257
        %v822 = vunpack.c.l.b16 %v258
        %v823 = vunpack.c.h.b16 %v258
        %v824 = vunpack.c.l.b16 %v259
        %v825 = vunpack.c.h.b16 %v259
        %v826 = vunpack.c.l.b16 %v260
        %v827 = vunpack.c.h.b16 %v260
        %v828 = vunpack.c.l.b16 %v261
        %v829 = vunpack.c.h.b16 %v261
        %v830 = vunpack.c.l.b16 %v262
        %v831 = vunpack.c.h.b16 %v262
        %v832 = vunpack.c.l.b16 %v263
        %v833 = vunpack.c.h.b16 %v263
        %v834 = vunpack.c.l.b16 %v264
        %v835 = vunpack.c.h.b16 %v264
        %v836 = vunpack.c.l.b16 %v265
        %v837 = vunpack.c.h.b16 %v265
        %v838 = vunpack.c.l.b16 %v266
        %v839 = vunpack.c.h.b16 %v266
        %v840 = vunpack.c.l.b16 %v267
        %v841 = vunpack.c.h.b16 %v267
        %v842 = vunpack.c.l.b16 %v268
        %v843 = vunpack.c.h.b16 %v268
        %v844 = vunpack.c.l.b16 %v269
        %v845 = vunpack.c.h.b16 %v269
        %v846 = vunpack.c.l.b16 %v270
        %v847 = vunpack.c.h.b16 %v270
        %v848 = vunpack.c.l.b16 %v271
        %v849 = vunpack.c.h.b16 %v271
        %v850 = vunpack.c.l.b16 %v272
        %v851 = vunpack.c.h.b16 %v272
        %v852 = vunpack.c.l.b16 %v273
        %v853 = vunpack.c.h.b16 %v273
        %v854 = vunpack.c.l.b16 %v274
        %v855 = vunpack.c.h.b16 %v274
        %v856 = vunpack.c.l.b16 %v275
        %v857 = vunpack.c.h.b16 %v275
        %v858 = vunpack.c.l.b16 %v276
        %v859 = vunpack.c.h.b16 %v276
        %v860 = vunpack.c.l.b16 %v277
        %v861 = vunpack.c.h.b16 %v277
        %v862 = vunpack.c.l.b16 %v278
        %v863 = vunpack.c.h.b16 %v278
        %v864 = vunpack.c.l.b16 %v279
        %v865 = vunpack.c.h.b16 %v279
        %v866 = vunpack.c.l.b16 %v280
        %v867 = vunpack.c.h.b16 %v280
        %v868 = vunpack.c.l.b16 %v281
        %v869 = vunpack.c.h.b16 %v281
        %v870 = vunpack.c.l.b16 %v282
        %v871 = vunpack.c.h.b16 %v282
        %v872 = vunpack.c.l.b16 %v283
        %v873 = vunpack.c.h.b16 %v283
        %v874 = vunpack.c.l.b16 %v284
        %v875 = vunpack.c.h.b16 %v284
        %v876 = vunpack.c.l.b16 %v285
        %v877 = vunpack.c.h.b16 %v285
        %v878 = vunpack.c.l.b16 %v286
        %v879 = vunpack.c.h.b16 %v286
        %v880 = vunpack.c.l.b16 %v287
        %v881 = vunpack.c.h.b16 %v287
        %v882 = vunpack.c.l.b16 %v288
        %v883 = vunpack.c.h.b16 %v288
        %v884 = vunpack.c.l.b16 %v289
        %v885 = vunpack.c.h.b16 %v289
        %v886 = vunpack.c.l.b16 %v290
        %v887 = vunpack.c.h.b16 %v290
        %v888 = vunpack.c.l.b16 %v291
        %v889 = vunpack.c.h.b16 %v291
        %v890 = vunpack.c.l.b16 %v292
        %v891 = vunpack.c.h.b16 %v292
        %v892 = vunpack.c.l.b16 %v293
        %v893 = vunpack.c.h.b16 %v293
        %v894 = vunpack.c.l.b16 %v294
        %v895 = vunpack.c.h.b16 %v294
        %v896 = vunpack.c.l.b16 %v295
        %v897 = vunpack.c.h.b16 %v295
        %v898 = vunpack.c.l.b16 %v296
        %v899 = vunpack.c.h.b16 %v296
        %v900 = vunpack.c.l.b16 %v297
        %v901 = vunpack.c.h.b16 %v297
        %v902 = vunpack.c.l.b16 %v298
        %v903 = vunpack.c.h.b16 %v298
        %v904 = vunpack.c.l.b16 %v299
        %v905 = vunpack.c.h.b16 %v299
        %v906 = vunpack.c.l.b16 %v300
        %v907 = vunpack.c.h.b16 %v300
        %v908 = vunpack.c.l.b16 %v301
        %v909 = vunpack.c.h.b16 %v301
        %v910 = vunpack.c.l.b16 %v302
        %v911 = vunpack.c.h.b16 %v302
        %v912 = vunpack.c.l.b16 %v303
        %v913 = vunpack.c.h.b16 %v303
        %v914 = vunpack.c.l.b16 %v304
        %v915 = vunpack.c.h.b16 %v304
        %v916 = vunpack.c.l.b16 %v305
        %v917 = vunpack.c.h.b16 %v305
        %v918 = vunpack.c.l.b16 %v306
        %v919 = vunpack.c.h.b16 %v306
        %v920 = vunpack.c.l.b16 %v307
        %v921 = vunpack.c.h.b16 %v307
        %v922 = vunpack.c.l.b16 %v308
        %v923 = vunpack.c.h.b16 %v308
        %v924 = vunpack.c.l.b16 %v309
        %v925 = vunpack.c.h.b16 %v309
        %v926 = vunpack.c.l.b16 %v310
        %v927 = vunpack.c.h.b16 %v310
        %v928 = vunpack.c.l.b16 %v311
        %v929 = vunpack.c.h.b16 %v311
        %v930 = vunpack.c.l.b16 %v312
        %v931 = vunpack.c.h.b16 %v312
        %v932 = vunpack.c.l.b16 %v313
        %v933 = vunpack.c.h.b16 %v313
        %v934 = vunpack.c.l.b16 %v314
        %v935 = vunpack.c.h.b16 %v314
        %v936 = vunpack.c.l.b16 %v315
        %v937 = vunpack.c.h.b16 %v315
        %v938 = vunpack.c.l.b16 %v316
        %v939 = vunpack.c.h.b16 %v316
        %v940 = vunpack.c.l.b16 %v317
        %v941 = vunpack.c.h.b16 %v317
        %v942 = vunpack.c.l.b16 %v318
        %v943 = vunpack.c.h.b16 %v318
        %v944 = vunpack.c.l.b16 %v319
        %v945 = vunpack.c.h.b16 %v319
        %v946 = vunpack.c.l.b16 %v320
        %v947 = vunpack.c.h.b16 %v320
        %v948 = vunpack.c.l.b16 %v321
        %v949 = vunpack.c.h.b16 %v321
        %v950 = vunpack.c.l.b16 %v322
        %v951 = vunpack.c.h.b16 %v322
        %v952 = vunpack.c.l.b16 %v323
        %v953 = vunpack.c.h.b16 %v323
        %v954 = vunpack.c.l.b16 %v324
        %v955 = vunpack.c.h.b16 %v324
        %v956 = vunpack.c.l.b16 %v325
        %v957 = vunpack.c.h.b16 %v325
        %v958 = vunpack.c.l.b16 %v326
        %v959 = vunpack.c.h.b16 %v326
        %v960 = vunpack.c.l.b16 %v327
        %v961 = vunpack.c.h.b16 %v327
        %v962 = vunpack.c.l.b16 %v328
        %v963 = vunpack.c.h.b16 %v328
        %v964 = vunpack.c.l.b16 %v329
        %v965 = vunpack.c.h.b16 %v329
        %v966 = vunpack.c.l.b16 %v330
        %v967 = vunpack.c.h.b16 %v330
        %v968 = vunpack.c.l.b16 %v331
        %v969 = vunpack.c.h.b16 %v331
        %v970 = vunpack.c.l.b16 %v332
        %v971 = vunpack.c.h.b16 %v332
        %v972 = vunpack.c.l.b16 %v333
        %v973 = vunpack.c.h.b16 %v333
        %v974 = vunpack.c.l.b16 %v334
        %v975 = vunpack.c.h.b16 %v334
        %v976 = vunpack.c.l.b16 %v335
        %v977 = vunpack.c.h.b16 %v335
        %v978 = vunpack.c.l.b16 %v336
        %v979 = vunpack.c.h.b16 %v336
        %v980 = vunpack.c.l.b16 %v337
        %v981 = vunpack.c.h.b16 %v337
        %v982 = vunpack.c.l.b16 %v338
        %v983 = vunpack.c.h.b16 %v338
        %v984 = vunpack.c.l.b16 %v339
        %v985 = vunpack.c.h.b16 %v339
        %v986 = vunpack.c.l.b16 %v340
        %v987 = vunpack.c.h.b16 %v340
        %v988 = vunpack.c.l.b16 %v341
        %v989 = vunpack.c.h.b16 %v341
        %v990 = vunpack.c.l.b16 %v342
        %v991 = vunpack.c.h.b16 %v342
        %v992 = vunpack.c.l.b16 %v343
        %v993 = vunpack.c.h.b16 %v343
        %v994 = vunpack.c.l.b16 %v344
        %v995 = vunpack.c.h.b16 %v344
        %v996 = vunpack.c.l.b16 %v345
        %v997 = vunpack.c.h.b16 %v345
        %v998 = vunpack.c.l.b16 %v346
        %v999 = vunpack.c.h.b16 %v346
        %v1000 = vunpack.c.l.b16 %v347
        %v1001 = vunpack.c.h.b16 %v347
        %v1002 = vunpack.c.l.b16 %v348
        %v1003 = vunpack.c.h.b16 %v348
        %v1004 = vunpack.c.l.b16 %v349
        %v1005 = vunpack.c.h.b16 %v349
        %v1006 = vunpack.c.l.b16 %v350
        %v1007 = vunpack.c.h.b16 %v350
        %v1008 = vunpack.c.l.b16 %v351
        %v1009 = vunpack.c.h.b16 %v351
        %v1010 = vunpack.c.l.b16 %v352
        %v1011 = vunpack.c.h.b16 %v352
        %v1012 = vunpack.c.l.b16 %v353
        %v1013 = vunpack.c.h.b16 %v353
        %v1014 = vunpack.c.l.b16 %v354
        %v1015 = vunpack.c.h.b16 %v354
        %v1016 = vunpack.c.l.b16 %v355
        %v1017 = vunpack.c.h.b16 %v355
        %v1018 = vunpack.c.l.b16 %v356
        %v1019 = vunpack.c.h.b16 %v356
        %v1020 = vunpack.c.l.b16 %v357
        %v1021 = vunpack.c.h.b16 %v357
        %v1022 = vunpack.c.l.b16 %v358
        %v1023 = vunpack.c.h.b16 %v358
        %v1024 = vunpack.c.l.b16 %v359
        %v1025 = vunpack.c.h.b16 %v359
        %v1026 = vunpack.c.l.b16 %v360
        %v1027 = vunpack.c.h.b16 %v360
        %v1028 = vunpack.c.l.b16 %v361
        %v1029 = vunpack.c.h.b16 %v361
        %v1030 = vunpack.c.l.b16 %v362
        %v1031 = vunpack.c.h.b16 %v362
        %v1032 = vunpack.c.l.b16 %v363
        %v1033 = vunpack.c.h.b16 %v363
        %v1034 = vunpack.c.l.b16 %v364
        %v1035 = vunpack.c.h.b16 %v364
        %v1036 = vunpack.c.l.b16 %v365
        %v1037 = vunpack.c.h.b16 %v365
        %v1038 = vpack.c.b16 %v660, %v654
        %v1039 = vpack.c.b16 %v661, %v655
        %v1040 = vpack.c.b16 %v662, %v656
        %v1041 = vpack.c.b16 %v663, %v657
        %v1042 = vpack.c.b16 %v664, %v658
        %v1043 = vpack.c.b16 %v665, %v659
        %v1044 = vpack.c.b16 %v672, %v666
        %v1045 = vpack.c.b16 %v673, %v667
        %v1046 = vpack.c.b16 %v674, %v668
        %v1047 = vpack.c.b16 %v675, %v669
        %v1048 = vpack.c.b16 %v676, %v670
        %v1049 = vpack.c.b16 %v677, %v671
        %v1050 = vpack.c.b16 %v684, %v678
        %v1051 = vpack.c.b16 %v685, %v679
        %v1052 = vpack.c.b16 %v686, %v680
        %v1053 = vpack.c.b16 %v687, %v681
        %v1054 = vpack.c.b16 %v688, %v682
        %v1055 = vpack.c.b16 %v689, %v683
        %v1056 = vpack.c.b16 %v696, %v690
        %v1057 = vpack.c.b16 %v697, %v691
        %v1058 = vpack.c.b16 %v698, %v692
        %v1059 = vpack.c.b16 %v699, %v693
        %v1060 = vpack.c.b16 %v700, %v694
        %v1061 = vpack.c.b16 %v701, %v695
        %v1062 = vpack.c.b16 %v708, %v702
        %v1063 = vpack.c.b16 %v709, %v703
        %v1064 = vpack.c.b16 %v710, %v704
        %v1065 = vpack.c.b16 %v711, %v705
        %v1066 = vpack.c.b16 %v712, %v706
        %v1067 = vpack.c.b16 %v713, %v707
        %v1068 = vpack.c.b16 %v720, %v714
        %v1069 = vpack.c.b16 %v721, %v715
        %v1070 = vpack.c.b16 %v722, %v716
        %v1071 = vpack.c.b16 %v723, %v717
        %v1072 = vpack.c.b16 %v724, %v718
        %v1073 = vpack.c.b16 %v725, %v719
        %v1074 = vpack.c.b16 %v732, %v726
        %v1075 = vpack.c.b16 %v733, %v727
        %v1076 = vpack.c.b16 %v734, %v728
        %v1077 = vpack.c.b16 %v735, %v729
        %v1078 = vpack.c.b16 %v736, %v730
        %v1079 = vpack.c.b16 %v737, %v731
        %v1080 = vpack.c.b16 %v744, %v738
        %v1081 = vpack.c.b16 %v745, %v739
        %v1082 = vpack.c.b16 %v746, %v740
        %v1083 = vpack.c.b16 %v747, %v741
        %v1084 = vpack.c.b16 %v748, %v742
        %v1085 = vpack.c.b16 %v749, %v743
        %v1086 = vpack.c.b16 %v756, %v750
        %v1087 = vpack.c.b16 %v757, %v751
        %v1088 = vpack.c.b16 %v758, %v752
        %v1089 = vpack.c.b16 %v759, %v753
        %v1090 = vpack.c.b16 %v760, %v754
        %v1091 = vpack.c.b16 %v761, %v755
        %v1092 = vpack.c.b16 %v768, %v762
        %v1093 = vpack.c.b16 %v769, %v763
        %v1094 = vpack.c.b16 %v770, %v764
        %v1095 = vpack.c.b16 %v771, %v765
        %v1096 = vpack.c.b16 %v772, %v766
        %v1097 = vpack.c.b16 %v773, %v767
        %v1098 = vpack.c.b16 %v780, %v774
        %v1099 = vpack.c.b16 %v781, %v775
        %v1100 = vpack.c.b16 %v782, %v776
        %v1101 = vpack.c.b16 %v783, %v777
        %v1102 = vpack.c.b16 %v784, %v778
        %v1103 = vpack.c.b16 %v785, %v779
        %v1104 = vpack.c.b16 %v792, %v786
        %v1105 = vpack.c.b16 %v793, %v787
        %v1106 = vpack.c.b16 %v794, %v788
        %v1107 = vpack.c.b16 %v795, %v789
        %v1108 = vpack.c.b16 %v796, %v790
        %v1109 = vpack.c.b16 %v797, %v791
        %v1110 = vpack.c.b16 %v804, %v798
        %v1111 = vpack.c.b16 %v805, %v799
        %v1112 = vpack.c.b16 %v806, %v800
        %v1113 = vpack.c.b16 %v807, %v801
        %v1114 = vpack.c.b16 %v808, %v802
        %v1115 = vpack.c.b16 %v809, %v803
        %v1116 = vpack.c.b16 %v816, %v810
        %v1117 = vpack.c.b16 %v817, %v811
        %v1118 = vpack.c.b16 %v818, %v812
        %v1119 = vpack.c.b16 %v819, %v813
        %v1120 = vpack.c.b16 %v820, %v814
        %v1121 = vpack.c.b16 %v821, %v815
        %v1122 = vpack.c.b16 %v828, %v822
        %v1123 = vpack.c.b16 %v829, %v823
        %v1124 = vpack.c.b16 %v830, %v824
        %v1125 = vpack.c.b16 %v831, %v825
        %v1126 = vpack.c.b16 %v832, %v826
        %v1127 = vpack.c.b16 %v833, %v827
        %v1128 = vpack.c.b16 %v840, %v834
        %v1129 = vpack.c.b16 %v841, %v835
        %v1130 = vpack.c.b16 %v842, %v836
        %v1131 = vpack.c.b16 %v843, %v837
        %v1132 = vpack.c.b16 %v844, %v838
        %v1133 = vpack.c.b16 %v845, %v839
        %v1134 = vpack.c.b16 %v852, %v846
        %v1135 = vpack.c.b16 %v853, %v847
        %v1136 = vpack.c.b16 %v854, %v848
        %v1137 = vpack.c.b16 %v855, %v849
        %v1138 = vpack.c.b16 %v856, %v850
        %v1139 = vpack.c.b16 %v857, %v851
        %v1140 = vpack.c.b16 %v864, %v858
        %v1141 = vpack.c.b16 %v865, %v859
        %v1142 = vpack.c.b16 %v866, %v860
        %v1143 = vpack.c.b16 %v867, %v861
        %v1144 = vpack.c.b16 %v868, %v862
        %v1145 = vpack.c.b16 %v869, %v863
        %v1146 = vpack.c.b16 %v876, %v870
        %v1147 = vpack.c.b16 %v877, %v871
        %v1148 = vpack.c.b16 %v878, %v872
        %v1149 = vpack.c.b16 %v879, %v873
        %v1150 = vpack.c.b16 %v880, %v874
        %v1151 = vpack.c.b16 %v881, %v875
        %v1152 = vpack.c.b16 %v888, %v882
        %v1153 = vpack.c.b16 %v889, %v883
        %v1154 = vpack.c.b16 %v890, %v884
        %v1155 = vpack.c.b16 %v891, %v885
        %v1156 = vpack.c.b16 %v892, %v886
        %v1157 = vpack.c.b16 %v893, %v887
        %v1158 = vpack.c.b16 %v900, %v894
        %v1159 = vpack.c.b16 %v901, %v895
        %v1160 = vpack.c.b16 %v902, %v896
        %v1161 = vpack.c.b16 %v903, %v897
        %v1162 = vpack.c.b16 %v904, %v898
        %v1163 = vpack.c.b16 %v905, %v899
        %v1164 = vpack.c.b16 %v912, %v906
        %v1165 = vpack.c.b16 %v913, %v907
        %v1166 = vpack.c.b16 %v914, %v908
        %v1167 = vpack.c.b16 %v915, %v909
        %v1168 = vpack.c.b16 %v916, %v910
        %v1169 = vpack.c.b16 %v917, %v911
        %v1170 = vpack.c.b16 %v924, %v918
        %v1171 = vpack.c.b16 %v925, %v919
        %v1172 = vpack.c.b16 %v926, %v920
        %v1173 = vpack.c.b16 %v927, %v921
        %v1174 = vpack.c.b16 %v928, %v922
        %v1175 = vpack.c.b16 %v929, %v923
        %v1176 = vpack.c.b16 %v936, %v930
        %v1177 = vpack.c.b16 %v937, %v931
        %v1178 = vpack.c.b16 %v938, %v932
        %v1179 = vpack.c.b16 %v939, %v933
        %v1180 = vpack.c.b16 %v940, %v934
        %v1181 = vpack.c.b16 %v941, %v935
        %v1182 = vpack.c.b16 %v948, %v942
        %v1183 = vpack.c.b16 %v949, %v943
        %v1184 = vpack.c.b16 %v950, %v944
        %v1185 = vpack.c.b16 %v951, %v945
        %v1186 = vpack.c.b16 %v952, %v946
        %v1187 = vpack.c.b16 %v953, %v947
        %v1188 = vpack.c.b16 %v960, %v954
        %v1189 = vpack.c.b16 %v961, %v955
        %v1190 = vpack.c.b16 %v962, %v956
        %v1191 = vpack.c.b16 %v963, %v957
        %v1192 = vpack.c.b16 %v964, %v958
        %v1193 = vpack.c.b16 %v965, %v959
        %v1194 = vpack.c.b16 %v972, %v966
        %v1195 = vpack.c.b16 %v973, %v967
        %v1196 = vpack.c.b16 %v974, %v968
        %v1197 = vpack.c.b16 %v975, %v969
        %v1198 = vpack.c.b16 %v976, %v970
        %v1199 = vpack.c.b16 %v977, %v971
        %v1200 = vpack.c.b16 %v984, %v978
        %v1201 = vpack.c.b16 %v985, %v979
        %v1202 = vpack.c.b16 %v986, %v980
        %v1203 = vpack.c.b16 %v987, %v981
        %v1204 = vpack.c.b16 %v988, %v982
        %v1205 = vpack.c.b16 %v989, %v983
        %v1206 = vpack.c.b16 %v996, %v990
        %v1207 = vpack.c.b16 %v997, %v991
        %v1208 = vpack.c.b16 %v998, %v992
        %v1209 = vpack.c.b16 %v999, %v993
        %v1210 = vpack.c.b16 %v1000, %v994
        %v1211 = vpack.c.b16 %v1001, %v995
        %v1212 = vpack.c.b16 %v1008, %v1002
        %v1213 = vpack.c.b16 %v1009, %v1003
        %v1214 = vpack.c.b16 %v1010, %v1004
        %v1215 = vpack.c.b16 %v1011, %v1005
        %v1216 = vpack.c.b16 %v1012, %v1006
        %v1217 = vpack.c.b16 %v1013, %v1007
        %v1218 = vpack.c.b16 %v1020, %v1014
        %v1219 = vpack.c.b16 %v1021, %v1015
        %v1220 = vpack.c.b16 %v1022, %v1016
        %v1221 = vpack.c.b16 %v1023, %v1017
        %v1222 = vpack.c.b16 %v1024, %v1018
        %v1223 = vpack.c.b16 %v1025, %v1019
        %v1224 = vpack.c.b16 %v1032, %v1026
        %v1225 = vpack.c.b16 %v1033, %v1027
        %v1226 = vpack.c.b16 %v1034, %v1028
        %v1227 = vpack.c.b16 %v1035, %v1029
        %v1228 = vpack.c.b16 %v1036, %v1030
        %v1229 = vpack.c.b16 %v1037, %v1031
        %v1518 = vunpack.c.l.b16 %v366
        %v1519 = vunpack.c.h.b16 %v366
        %v1520 = vunpack.c.l.b16 %v367
        %v1521 = vunpack.c.h.b16 %v367
        %v1522 = vunpack.c.l.b16 %v368
        %v1523 = vunpack.c.h.b16 %v368
        %v1524 = vunpack.c.l.b16 %v369
        %v1525 = vunpack.c.h.b16 %v369
        %v1526 = vunpack.c.l.b16 %v370
        %v1527 = vunpack.c.h.b16 %v370
        %v1528 = vunpack.c.l.b16 %v371
        %v1529 = vunpack.c.h.b16 %v371
        %v1530 = vunpack.c.l.b16 %v372
        %v1531 = vunpack.c.h.b16 %v372
        %v1532 = vunpack.c.l.b16 %v373
        %v1533 = vunpack.c.h.b16 %v373
        %v1534 = vunpack.c.l.b16 %v374
        %v1535 = vunpack.c.h.b16 %v374
        %v1536 = vunpack.c.l.b16 %v375
        %v1537 = vunpack.c.h.b16 %v375
        %v1538 = vunpack.c.l.b16 %v376
        %v1539 = vunpack.c.h.b16 %v376
        %v1540 = vunpack.c.l.b16 %v377
        %v1541 = vunpack.c.h.b16 %v377
        %v1542 = vunpack.c.l.b16 %v378
        %v1543 = vunpack.c.h.b16 %v378
        %v1544 = vunpack.c.l.b16 %v379
        %v1545 = vunpack.c.h.b16 %v379
        %v1546 = vunpack.c.l.b16 %v380
        %v1547 = vunpack.c.h.b16 %v380
        %v1548 = vunpack.c.l.b16 %v381
        %v1549 = vunpack.c.h.b16 %v381
        %v1550 = vunpack.c.l.b16 %v382
        %v1551 = vunpack.c.h.b16 %v382
        %v1552 = vunpack.c.l.b16 %v383
        %v1553 = vunpack.c.h.b16 %v383
        %v1554 = vunpack.c.l.b16 %v384
        %v1555 = vunpack.c.h.b16 %v384
        %v1556 = vunpack.c.l.b16 %v385
        %v1557 = vunpack.c.h.b16 %v385
        %v1558 = vunpack.c.l.b16 %v386
        %v1559 = vunpack.c.h.b16 %v386
        %v1560 = vunpack.c.l.b16 %v387
        %v1561 = vunpack.c.h.b16 %v387
        %v1562 = vunpack.c.l.b16 %v388
        %v1563 = vunpack.c.h.b16 %v388
        %v1564 = vunpack.c.l.b16 %v389
        %v1565 = vunpack.c.h.b16 %v389
        %v1566 = vunpack.c.l.b16 %v390
        %v1567 = vunpack.c.h.b16 %v390
        %v1568 = vunpack.c.l.b16 %v391
        %v1569 = vunpack.c.h.b16 %v391
        %v1570 = vunpack.c.l.b16 %v392
        %v1571 = vunpack.c.h.b16 %v392
        %v1572 = vunpack.c.l.b16 %v393
        %v1573 = vunpack.c.h.b16 %v393
        %v1574 = vunpack.c.l.b16 %v394
        %v1575 = vunpack.c.h.b16 %v394
        %v1576 = vunpack.c.l.b16 %v395
        %v1577 = vunpack.c.h.b16 %v395
        %v1578 = vunpack.c.l.b16 %v396
        %v1579 = vunpack.c.h.b16 %v396
        %v1580 = vunpack.c.l.b16 %v397
        %v1581 = vunpack.c.h.b16 %v397
        %v1582 = vunpack.c.l.b16 %v398
        %v1583 = vunpack.c.h.b16 %v398
        %v1584 = vunpack.c.l.b16 %v399
        %v1585 = vunpack.c.h.b16 %v399
        %v1586 = vunpack.c.l.b16 %v400
        %v1587 = vunpack.c.h.b16 %v400
        %v1588 = vunpack.c.l.b16 %v401
        %v1589 = vunpack.c.h.b16 %v401
        %v1590 = vunpack.c.l.b16 %v402
        %v1591 = vunpack.c.h.b16 %v402
        %v1592 = vunpack.c.l.b16 %v403
        %v1593 = vunpack.c.h.b16 %v403
        %v1594 = vunpack.c.l.b16 %v404
        %v1595 = vunpack.c.h.b16 %v404
        %v1596 = vunpack.c.l.b16 %v405
        %v1597 = vunpack.c.h.b16 %v405
        %v1598 = vunpack.c.l.b16 %v406
        %v1599 = vunpack.c.h.b16 %v406
        %v1600 = vunpack.c.l.b16 %v407
        %v1601 = vunpack.c.h.b16 %v407
        %v1602 = vunpack.c.l.b16 %v408
        %v1603 = vunpack.c.h.b16 %v408
        %v1604 = vunpack.c.l.b16 %v409
        %v1605 = vunpack.c.h.b16 %v409
        %v1606 = vunpack.c.l.b16 %v410
        %v1607 = vunpack.c.h.b16 %v410
        %v1608 = vunpack.c.l.b16 %v411
        %v1609 = vunpack.c.h.b16 %v411
        %v1610 = vunpack.c.l.b16 %v412
        %v1611 = vunpack.c.h.b16 %v412
        %v1612 = vunpack.c.l.b16 %v413
        %v1613 = vunpack.c.h.b16 %v413
        %v1614 = vunpack.c.l.b16 %v414
        %v1615 = vunpack.c.h.b16 %v414
        %v1616 = vunpack.c.l.b16 %v415
        %v1617 = vunpack.c.h.b16 %v415
        %v1618 = vunpack.c.l.b16 %v416
        %v1619 = vunpack.c.h.b16 %v416
        %v1620 = vunpack.c.l.b16 %v417
        %v1621 = vunpack.c.h.b16 %v417
        %v1622 = vunpack.c.l.b16 %v418
        %v1623 = vunpack.c.h.b16 %v418
        %v1624 = vunpack.c.l.b16 %v419
        %v1625 = vunpack.c.h.b16 %v419
        %v1626 = vunpack.c.l.b16 %v420
        %v1627 = vunpack.c.h.b16 %v420
        %v1628 = vunpack.c.l.b16 %v421
        %v1629 = vunpack.c.h.b16 %v421
        %v1630 = vunpack.c.l.b16 %v422
        %v1631 = vunpack.c.h.b16 %v422
        %v1632 = vunpack.c.l.b16 %v423
        %v1633 = vunpack.c.h.b16 %v423
        %v1634 = vunpack.c.l.b16 %v424
        %v1635 = vunpack.c.h.b16 %v424
        %v1636 = vunpack.c.l.b16 %v425
        %v1637 = vunpack.c.h.b16 %v425
        %v1638 = vunpack.c.l.b16 %v426
        %v1639 = vunpack.c.h.b16 %v426
        %v1640 = vunpack.c.l.b16 %v427
        %v1641 = vunpack.c.h.b16 %v427
        %v1642 = vunpack.c.l.b16 %v428
        %v1643 = vunpack.c.h.b16 %v428
        %v1644 = vunpack.c.l.b16 %v429
        %v1645 = vunpack.c.h.b16 %v429
        %v1646 = vunpack.c.l.b16 %v430
        %v1647 = vunpack.c.h.b16 %v430
        %v1648 = vunpack.c.l.b16 %v431
        %v1649 = vunpack.c.h.b16 %v431
        %v1650 = vunpack.c.l.b16 %v432
        %v1651 = vunpack.c.h.b16 %v432
        %v1652 = vunpack.c.l.b16 %v433
        %v1653 = vunpack.c.h.b16 %v433
        %v1654 = vunpack.c.l.b16 %v434
        %v1655 = vunpack.c.h.b16 %v434
        %v1656 = vunpack.c.l.b16 %v435
        %v1657 = vunpack.c.h.b16 %v435
        %v1658 = vunpack.c.l.b16 %v436
        %v1659 = vunpack.c.h.b16 %v436
        %v1660 = vunpack.c.l.b16 %v437
        %v1661 = vunpack.c.h.b16 %v437
        %v1662 = vunpack.c.l.b16 %v438
        %v1663 = vunpack.c.h.b16 %v438
        %v1664 = vunpack.c.l.b16 %v439
        %v1665 = vunpack.c.h.b16 %v439
        %v1666 = vunpack.c.l.b16 %v440
        %v1667 = vunpack.c.h.b16 %v440
        %v1668 = vunpack.c.l.b16 %v441
        %v1669 = vunpack.c.h.b16 %v441
        %v1670 = vunpack.c.l.b16 %v442
        %v1671 = vunpack.c.h.b16 %v442
        %v1672 = vunpack.c.l.b16 %v443
        %v1673 = vunpack.c.h.b16 %v443
        %v1674 = vunpack.c.l.b16 %v444
        %v1675 = vunpack.c.h.b16 %v444
        %v1676 = vunpack.c.l.b16 %v445
        %v1677 = vunpack.c.h.b16 %v445
        %v1678 = vunpack.c.l.b16 %v446
        %v1679 = vunpack.c.h.b16 %v446
        %v1680 = vunpack.c.l.b16 %v447
        %v1681 = vunpack.c.h.b16 %v447
        %v1682 = vunpack.c.l.b16 %v448
        %v1683 = vunpack.c.h.b16 %v448
        %v1684 = vunpack.c.l.b16 %v449
        %v1685 = vunpack.c.h.b16 %v449
        %v1686 = vunpack.c.l.b16 %v450
        %v1687 = vunpack.c.h.b16 %v450
        %v1688 = vunpack.c.l.b16 %v451
        %v1689 = vunpack.c.h.b16 %v451
        %v1690 = vunpack.c.l.b16 %v452
        %v1691 = vunpack.c.h.b16 %v452
        %v1692 = vunpack.c.l.b16 %v453
        %v1693 = vunpack.c.h.b16 %v453
        %v1694 = vunpack.c.l.b16 %v454
        %v1695 = vunpack.c.h.b16 %v454
        %v1696 = vunpack.c.l.b16 %v455
        %v1697 = vunpack.c.h.b16 %v455
        %v1698 = vunpack.c.l.b16 %v456
        %v1699 = vunpack.c.h.b16 %v456
        %v1700 = vunpack.c.l.b16 %v457
        %v1701 = vunpack.c.h.b16 %v457
        %v1702 = vunpack.c.l.b16 %v458
        %v1703 = vunpack.c.h.b16 %v458
        %v1704 = vunpack.c.l.b16 %v459
        %v1705 = vunpack.c.h.b16 %v459
        %v1706 = vunpack.c.l.b16 %v460
        %v1707 = vunpack.c.h.b16 %v460
        %v1708 = vunpack.c.l.b16 %v461
        %v1709 = vunpack.c.h.b16 %v461
        %v1710 = vpack.c.b16 %v1520, %v1518
        %v1711 = vpack.c.b16 %v1521, %v1519
        %v1712 = vpack.c.b16 %v1524, %v1522
        %v1713 = vpack.c.b16 %v1525, %v1523
        %v1714 = vpack.c.b16 %v1528, %v1526
        %v1715 = vpack.c.b16 %v1529, %v1527
        %v1716 = vpack.c.b16 %v1532, %v1530
        %v1717 = vpack.c.b16 %v1533, %v1531
        %v1718 = vpack.c.b16 %v1536, %v1534
        %v1719 = vpack.c.b16 %v1537, %v1535
        %v1720 = vpack.c.b16 %v1540, %v1538
        %v1721 = vpack.c.b16 %v1541, %v1539
        %v1722 = vpack.c.b16 %v1544, %v1542
        %v1723 = vpack.c.b16 %v1545, %v1543
        %v1724 = vpack.c.b16 %v1548, %v1546
        %v1725 = vpack.c.b16 %v1549, %v1547
        %v1726 = vpack.c.b16 %v1552, %v1550
        %v1727 = vpack.c.b16 %v1553, %v1551
        %v1728 = vpack.c.b16 %v1556, %v1554
        %v1729 = vpack.c.b16 %v1557, %v1555
        %v1730 = vpack.c.b16 %v1560, %v1558
        %v1731 = vpack.c.b16 %v1561, %v1559
        %v1732 = vpack.c.b16 %v1564, %v1562
        %v1733 = vpack.c.b16 %v1565, %v1563
        %v1734 = vpack.c.b16 %v1568, %v1566
        %v1735 = vpack.c.b16 %v1569, %v1567
        %v1736 = vpack.c.b16 %v1572, %v1570
        %v1737 = vpack.c.b16 %v1573, %v1571
        %v1738 = vpack.c.b16 %v1576, %v1574
        %v1739 = vpack.c.b16 %v1577, %v1575
        %v1740 = vpack.c.b16 %v1580, %v1578
        %v1741 = vpack.c.b16 %v1581, %v1579
        %v1742 = vpack.c.b16 %v1584, %v1582
        %v1743 = vpack.c.b16 %v1585, %v1583
        %v1744 = vpack.c.b16 %v1588, %v1586
        %v1745 = vpack.c.b16 %v1589, %v1587
        %v1746 = vpack.c.b16 %v1592, %v1590
        %v1747 = vpack.c.b16 %v1593, %v1591
        %v1748 = vpack.c.b16 %v1596, %v1594
        %v1749 = vpack.c.b16 %v1597, %v1595
        %v1750 = vpack.c.b16 %v1600, %v1598
        %v1751 = vpack.c.b16 %v1601, %v1599
        %v1752 = vpack.c.b16 %v1604, %v1602
        %v1753 = vpack.c.b16 %v1605, %v1603
        %v1754 = vpack.c.b16 %v1608, %v1606
        %v1755 = vpack.c.b16 %v1609, %v1607
        %v1756 = vpack.c.b16 %v1612, %v1610
        %v1757 = vpack.c.b16 %v1613, %v1611
        %v1758 = vpack.c.b16 %v1616, %v1614
        %v1759 = vpack.c.b16 %v1617, %v1615
        %v1760 = vpack.c.b16 %v1620, %v1618
        %v1761 = vpack.c.b16 %v1621, %v1619
        %v1762 = vpack.c.b16 %v1624, %v1622
        %v1763 = vpack.c.b16 %v1625, %v1623
        %v1764 = vpack.c.b16 %v1628, %v1626
        %v1765 = vpack.c.b16 %v1629, %v1627
        %v1766 = vpack.c.b16 %v1632, %v1630
        %v1767 = vpack.c.b16 %v1633, %v1631
        %v1768 = vpack.c.b16 %v1636, %v1634
        %v1769 = vpack.c.b16 %v1637, %v1635
        %v1770 = vpack.c.b16 %v1640, %v1638
        %v1771 = vpack.c.b16 %v1641, %v1639
        %v1772 = vpack.c.b16 %v1644, %v1642
        %v1773 = vpack.c.b16 %v1645, %v1643
        %v1774 = vpack.c.b16 %v1648, %v1646
        %v1775 = vpack.c.b16 %v1649, %v1647
        %v1776 = vpack.c.b16 %v1652, %v1650
        %v1777 = vpack.c.b16 %v1653, %v1651
        %v1778 = vpack.c.b16 %v1656, %v1654
        %v1779 = vpack.c.b16 %v1657, %v1655
        %v1780 = vpack.c.b16 %v1660, %v1658
        %v1781 = vpack.c.b16 %v1661, %v1659
        %v1782 = vpack.c.b16 %v1664, %v1662
        %v1783 = vpack.c.b16 %v1665, %v1663
        %v1784 = vpack.c.b16 %v1668, %v1666
        %v1785 = vpack.c.b16 %v1669, %v1667
        %v1786 = vpack.c.b16 %v1672, %v1670
        %v1787 = vpack.c.b16 %v1673, %v1671
        %v1788 = vpack.c.b16 %v1676, %v1674
        %v1789 = vpack.c.b16 %v1677, %v1675
        %v1790 = vpack.c.b16 %v1680, %v1678
        %v1791 = vpack.c.b16 %v1681, %v1679
        %v1792 = vpack.c.b16 %v1684, %v1682
        %v1793 = vpack.c.b16 %v1685, %v1683
        %v1794 = vpack.c.b16 %v1688, %v1686
        %v1795 = vpack.c.b16 %v1689, %v1687
        %v1796 = vpack.c.b16 %v1692, %v1690
        %v1797 = vpack.c.b16 %v1693, %v1691
        %v1798 = vpack.c.b16 %v1696, %v1694
        %v1799 = vpack.c.b16 %v1697, %v1695
        %v1800 = vpack.c.b16 %v1700, %v1698
        %v1801 = vpack.c.b16 %v1701, %v1699
        %v1802 = vpack.c.b16 %v1704, %v1702
        %v1803 = vpack.c.b16 %v1705, %v1703
        %v1804 = vpack.c.b16 %v1708, %v1706
        %v1805 = vpack.c.b16 %v1709, %v1707
        %1902 = vmatprep.subr.bf16.mxu0 %v1725
        %1903 = vmatpush1.bf16.msra.mxu0 %v1724
        %1904 = vmatprep.subr.bf16.mxu0 %v1723
        %1905 = vmatpush1.bf16.msra.mxu0 %v1722
        %1906 = vmatprep.subr.bf16.mxu0 %v1721
        %1907 = vmatpush1.bf16.msra.mxu0 %v1720
        %1908 = vmatprep.subr.bf16.mxu0 %v1719
        %1909 = vmatpush1.bf16.msra.mxu0 %v1718
        %1910 = vmatprep.subr.bf16.mxu0 %v1717
        %1911 = vmatpush1.bf16.msra.mxu0 %v1716
        %1912 = vmatprep.subr.bf16.mxu0 %v1715
        %1913 = vmatpush1.bf16.msra.mxu0 %v1714
        %1914 = vmatprep.subr.bf16.mxu0 %v1713
        %1915 = vmatpush1.bf16.msra.mxu0 %v1712
        %1916 = vmatprep.subr.bf16.mxu0 %v1711
        %1917 = vmatpush1.bf16.msra.mxu0 %v1710
        %1918 = vmatprep.subr.bf16.mxu0 %v1741
        %1919 = vmatpush2.bf16.msra.mxu0 %v1740
        %1920 = vmatprep.subr.bf16.mxu0 %v1739
        %1921 = vmatpush2.bf16.msra.mxu0 %v1738
        %1922 = vmatprep.subr.bf16.mxu0 %v1737
        %1923 = vmatpush2.bf16.msra.mxu0 %v1736
        %1924 = vmatprep.subr.bf16.mxu0 %v1735
        %1925 = vmatpush2.bf16.msra.mxu0 %v1734
        %1926 = vmatprep.subr.bf16.mxu0 %v1733
        %1927 = vmatpush2.bf16.msra.mxu0 %v1732
        %1928 = vmatprep.subr.bf16.mxu0 %v1731
        %1929 = vmatpush2.bf16.msra.mxu0 %v1730
        %1930 = vmatprep.subr.bf16.mxu0 %v1729
        %1931 = vmatpush2.bf16.msra.mxu0 %v1728
        %1932 = vmatprep.subr.bf16.mxu0 %v1727
        %1933 = vmatpush2.bf16.msra.mxu0 %v1726
        %1934 = vmatprep.mubr.bf16.mxu0 %v1039
        %1935 = vmatmul.mubr.bf16.gmra.mxu0 %v1038
        %v1936 = vpop.f32.mrf.mxu0
        %v1937 = vadd.f32 0.0, %v1936
        %v1938 = vpop.f32.mrf.mxu0
        %v1939 = vadd.f32 0.0, %v1938
        %v1940 = vpop.f32.mrf.mxu0
        %v1941 = vadd.f32 0.0, %v1940
        %v1942 = vpop.f32.mrf.mxu0
        %v1943 = vadd.f32 0.0, %v1942
        %1944 = vmatprep.mubr.bf16.mxu0 %v1045
        %1945 = vmatmul.mubr.bf16.gmra.mxu0 %v1044
        %v1946 = vpop.f32.mrf.mxu0
        %v1947 = vadd.f32 0.0, %v1946
        %v1948 = vpop.f32.mrf.mxu0
        %v1949 = vadd.f32 0.0, %v1948
        %v1950 = vpop.f32.mrf.mxu0
        %v1951 = vadd.f32 0.0, %v1950
        %v1952 = vpop.f32.mrf.mxu0
        %v1953 = vadd.f32 0.0, %v1952
        %1954 = vmatprep.mubr.bf16.mxu0 %v1051
        %1955 = vmatmul.mubr.bf16.gmra.mxu0 %v1050
        %v1956 = vpop.f32.mrf.mxu0
        %v1957 = vadd.f32 0.0, %v1956
        %v1958 = vpop.f32.mrf.mxu0
        %v1959 = vadd.f32 0.0, %v1958
        %v1960 = vpop.f32.mrf.mxu0
        %v1961 = vadd.f32 0.0, %v1960
        %v1962 = vpop.f32.mrf.mxu0
        %v1963 = vadd.f32 0.0, %v1962
        %1964 = vmatprep.mubr.bf16.mxu0 %v1057
        %1965 = vmatmul.mubr.bf16.gmra.mxu0 %v1056
        %v1966 = vpop.f32.mrf.mxu0
        %v1967 = vadd.f32 0.0, %v1966
        %v1968 = vpop.f32.mrf.mxu0
        %v1969 = vadd.f32 0.0, %v1968
        %v1970 = vpop.f32.mrf.mxu0
        %v1971 = vadd.f32 0.0, %v1970
        %v1972 = vpop.f32.mrf.mxu0
        %v1973 = vadd.f32 0.0, %v1972
        %1974 = vmatprep.mubr.bf16.mxu0 %v1063
        %1975 = vmatmul.mubr.bf16.gmra.mxu0 %v1062
        %v1976 = vpop.f32.mrf.mxu0
        %v1977 = vadd.f32 0.0, %v1976
        %v1978 = vpop.f32.mrf.mxu0
        %v1979 = vadd.f32 0.0, %v1978
        %v1980 = vpop.f32.mrf.mxu0
        %v1981 = vadd.f32 0.0, %v1980
        %v1982 = vpop.f32.mrf.mxu0
        %v1983 = vadd.f32 0.0, %v1982
        %1984 = vmatprep.mubr.bf16.mxu0 %v1069
        %1985 = vmatmul.mubr.bf16.gmra.mxu0 %v1068
        %v1986 = vpop.f32.mrf.mxu0
        %v1987 = vadd.f32 0.0, %v1986
        %v1988 = vpop.f32.mrf.mxu0
        %v1989 = vadd.f32 0.0, %v1988
        %v1990 = vpop.f32.mrf.mxu0
        %v1991 = vadd.f32 0.0, %v1990
        %v1992 = vpop.f32.mrf.mxu0
        %v1993 = vadd.f32 0.0, %v1992
        %1994 = vmatprep.mubr.bf16.mxu0 %v1075
        %1995 = vmatmul.mubr.bf16.gmra.mxu0 %v1074
        %v1996 = vpop.f32.mrf.mxu0
        %v1997 = vadd.f32 0.0, %v1996
        %v1998 = vpop.f32.mrf.mxu0
        %v1999 = vadd.f32 0.0, %v1998
        %v2000 = vpop.f32.mrf.mxu0
        %v2001 = vadd.f32 0.0, %v2000
        %v2002 = vpop.f32.mrf.mxu0
        %v2003 = vadd.f32 0.0, %v2002
        %2004 = vmatprep.mubr.bf16.mxu0 %v1081
        %2005 = vmatmul.mubr.bf16.gmra.mxu0 %v1080
        %v2006 = vpop.f32.mrf.mxu0
        %v2007 = vadd.f32 0.0, %v2006
        %v2008 = vpop.f32.mrf.mxu0
        %v2009 = vadd.f32 0.0, %v2008
        %v2010 = vpop.f32.mrf.mxu0
        %v2011 = vadd.f32 0.0, %v2010
        %v2012 = vpop.f32.mrf.mxu0
        %v2013 = vadd.f32 0.0, %v2012
        %2014 = vmatprep.mubr.bf16.mxu0 %v1087
        %2015 = vmatmul.mubr.bf16.gmra.mxu0 %v1086
        %v2016 = vpop.f32.mrf.mxu0
        %v2017 = vadd.f32 0.0, %v2016
        %v2018 = vpop.f32.mrf.mxu0
        %v2019 = vadd.f32 0.0, %v2018
        %v2020 = vpop.f32.mrf.mxu0
        %v2021 = vadd.f32 0.0, %v2020
        %v2022 = vpop.f32.mrf.mxu0
        %v2023 = vadd.f32 0.0, %v2022
        %2024 = vmatprep.mubr.bf16.mxu0 %v1093
        %2025 = vmatmul.mubr.bf16.gmra.mxu0 %v1092
        %v2026 = vpop.f32.mrf.mxu0
        %v2027 = vadd.f32 0.0, %v2026
        %v2028 = vpop.f32.mrf.mxu0
        %v2029 = vadd.f32 0.0, %v2028
        %v2030 = vpop.f32.mrf.mxu0
        %v2031 = vadd.f32 0.0, %v2030
        %v2032 = vpop.f32.mrf.mxu0
        %v2033 = vadd.f32 0.0, %v2032
        %2034 = vmatprep.mubr.bf16.mxu0 %v1099
        %2035 = vmatmul.mubr.bf16.gmra.mxu0 %v1098
        %v2036 = vpop.f32.mrf.mxu0
        %v2037 = vadd.f32 0.0, %v2036
        %v2038 = vpop.f32.mrf.mxu0
        %v2039 = vadd.f32 0.0, %v2038
        %v2040 = vpop.f32.mrf.mxu0
        %v2041 = vadd.f32 0.0, %v2040
        %v2042 = vpop.f32.mrf.mxu0
        %v2043 = vadd.f32 0.0, %v2042
        %2044 = vmatprep.mubr.bf16.mxu0 %v1105
        %2045 = vmatmul.mubr.bf16.gmra.mxu0 %v1104
        %v2046 = vpop.f32.mrf.mxu0
        %v2047 = vadd.f32 0.0, %v2046
        %v2048 = vpop.f32.mrf.mxu0
        %v2049 = vadd.f32 0.0, %v2048
        %v2050 = vpop.f32.mrf.mxu0
        %v2051 = vadd.f32 0.0, %v2050
        %v2052 = vpop.f32.mrf.mxu0
        %v2053 = vadd.f32 0.0, %v2052
        %2054 = vmatprep.mubr.bf16.mxu0 %v1111
        %2055 = vmatmul.mubr.bf16.gmra.mxu0 %v1110
        %v2056 = vpop.f32.mrf.mxu0
        %v2057 = vadd.f32 0.0, %v2056
        %v2058 = vpop.f32.mrf.mxu0
        %v2059 = vadd.f32 0.0, %v2058
        %v2060 = vpop.f32.mrf.mxu0
        %v2061 = vadd.f32 0.0, %v2060
        %v2062 = vpop.f32.mrf.mxu0
        %v2063 = vadd.f32 0.0, %v2062
        %2064 = vmatprep.mubr.bf16.mxu0 %v1117
        %2065 = vmatmul.mubr.bf16.gmra.mxu0 %v1116
        %v2066 = vpop.f32.mrf.mxu0
        %v2067 = vadd.f32 0.0, %v2066
        %v2068 = vpop.f32.mrf.mxu0
        %v2069 = vadd.f32 0.0, %v2068
        %v2070 = vpop.f32.mrf.mxu0
        %v2071 = vadd.f32 0.0, %v2070
        %v2072 = vpop.f32.mrf.mxu0
        %v2073 = vadd.f32 0.0, %v2072
        %2074 = vmatprep.mubr.bf16.mxu0 %v1123
        %2075 = vmatmul.mubr.bf16.gmra.mxu0 %v1122
        %v2076 = vpop.f32.mrf.mxu0
        %v2077 = vadd.f32 0.0, %v2076
        %v2078 = vpop.f32.mrf.mxu0
        %v2079 = vadd.f32 0.0, %v2078
        %v2080 = vpop.f32.mrf.mxu0
        %v2081 = vadd.f32 0.0, %v2080
        %v2082 = vpop.f32.mrf.mxu0
        %v2083 = vadd.f32 0.0, %v2082
        %2084 = vmatprep.mubr.bf16.mxu0 %v1129
        %2085 = vmatmul.mubr.bf16.gmra.mxu0 %v1128
        %v2086 = vpop.f32.mrf.mxu0
        %v2087 = vadd.f32 0.0, %v2086
        %v2088 = vpop.f32.mrf.mxu0
        %v2089 = vadd.f32 0.0, %v2088
        %v2090 = vpop.f32.mrf.mxu0
        %v2091 = vadd.f32 0.0, %v2090
        %v2092 = vpop.f32.mrf.mxu0
        %v2093 = vadd.f32 0.0, %v2092
        %2094 = vmatprep.mubr.bf16.mxu0 %v1135
        %2095 = vmatmul.mubr.bf16.gmra.mxu0 %v1134
        %v2096 = vpop.f32.mrf.mxu0
        %v2097 = vadd.f32 0.0, %v2096
        %v2098 = vpop.f32.mrf.mxu0
        %v2099 = vadd.f32 0.0, %v2098
        %v2100 = vpop.f32.mrf.mxu0
        %v2101 = vadd.f32 0.0, %v2100
        %v2102 = vpop.f32.mrf.mxu0
        %v2103 = vadd.f32 0.0, %v2102
        %2104 = vmatprep.mubr.bf16.mxu0 %v1141
        %2105 = vmatmul.mubr.bf16.gmra.mxu0 %v1140
        %v2106 = vpop.f32.mrf.mxu0
        %v2107 = vadd.f32 0.0, %v2106
        %v2108 = vpop.f32.mrf.mxu0
        %v2109 = vadd.f32 0.0, %v2108
        %v2110 = vpop.f32.mrf.mxu0
        %v2111 = vadd.f32 0.0, %v2110
        %v2112 = vpop.f32.mrf.mxu0
        %v2113 = vadd.f32 0.0, %v2112
        %2114 = vmatprep.mubr.bf16.mxu0 %v1147
        %2115 = vmatmul.mubr.bf16.gmra.mxu0 %v1146
        %v2116 = vpop.f32.mrf.mxu0
        %v2117 = vadd.f32 0.0, %v2116
        %v2118 = vpop.f32.mrf.mxu0
        %v2119 = vadd.f32 0.0, %v2118
        %v2120 = vpop.f32.mrf.mxu0
        %v2121 = vadd.f32 0.0, %v2120
        %v2122 = vpop.f32.mrf.mxu0
        %v2123 = vadd.f32 0.0, %v2122
        %2124 = vmatprep.mubr.bf16.mxu0 %v1153
        %2125 = vmatmul.mubr.bf16.gmra.mxu0 %v1152
        %v2126 = vpop.f32.mrf.mxu0
        %v2127 = vadd.f32 0.0, %v2126
        %v2128 = vpop.f32.mrf.mxu0
        %v2129 = vadd.f32 0.0, %v2128
        %v2130 = vpop.f32.mrf.mxu0
        %v2131 = vadd.f32 0.0, %v2130
        %v2132 = vpop.f32.mrf.mxu0
        %v2133 = vadd.f32 0.0, %v2132
        %2134 = vmatprep.mubr.bf16.mxu0 %v1159
        %2135 = vmatmul.mubr.bf16.gmra.mxu0 %v1158
        %v2136 = vpop.f32.mrf.mxu0
        %v2137 = vadd.f32 0.0, %v2136
        %v2138 = vpop.f32.mrf.mxu0
        %v2139 = vadd.f32 0.0, %v2138
        %v2140 = vpop.f32.mrf.mxu0
        %v2141 = vadd.f32 0.0, %v2140
        %v2142 = vpop.f32.mrf.mxu0
        %v2143 = vadd.f32 0.0, %v2142
        %2144 = vmatprep.mubr.bf16.mxu0 %v1165
        %2145 = vmatmul.mubr.bf16.gmra.mxu0 %v1164
        %v2146 = vpop.f32.mrf.mxu0
        %v2147 = vadd.f32 0.0, %v2146
        %v2148 = vpop.f32.mrf.mxu0
        %v2149 = vadd.f32 0.0, %v2148
        %v2150 = vpop.f32.mrf.mxu0
        %v2151 = vadd.f32 0.0, %v2150
        %v2152 = vpop.f32.mrf.mxu0
        %v2153 = vadd.f32 0.0, %v2152
        %2154 = vmatprep.mubr.bf16.mxu0 %v1171
        %2155 = vmatmul.mubr.bf16.gmra.mxu0 %v1170
        %v2156 = vpop.f32.mrf.mxu0
        %v2157 = vadd.f32 0.0, %v2156
        %v2158 = vpop.f32.mrf.mxu0
        %v2159 = vadd.f32 0.0, %v2158
        %v2160 = vpop.f32.mrf.mxu0
        %v2161 = vadd.f32 0.0, %v2160
        %v2162 = vpop.f32.mrf.mxu0
        %v2163 = vadd.f32 0.0, %v2162
        %2164 = vmatprep.mubr.bf16.mxu0 %v1177
        %2165 = vmatmul.mubr.bf16.gmra.mxu0 %v1176
        %v2166 = vpop.f32.mrf.mxu0
        %v2167 = vadd.f32 0.0, %v2166
        %v2168 = vpop.f32.mrf.mxu0
        %v2169 = vadd.f32 0.0, %v2168
        %v2170 = vpop.f32.mrf.mxu0
        %v2171 = vadd.f32 0.0, %v2170
        %v2172 = vpop.f32.mrf.mxu0
        %v2173 = vadd.f32 0.0, %v2172
        %2174 = vmatprep.mubr.bf16.mxu0 %v1183
        %2175 = vmatmul.mubr.bf16.gmra.mxu0 %v1182
        %v2176 = vpop.f32.mrf.mxu0
        %v2177 = vadd.f32 0.0, %v2176
        %v2178 = vpop.f32.mrf.mxu0
        %v2179 = vadd.f32 0.0, %v2178
        %v2180 = vpop.f32.mrf.mxu0
        %v2181 = vadd.f32 0.0, %v2180
        %v2182 = vpop.f32.mrf.mxu0
        %v2183 = vadd.f32 0.0, %v2182
        %2184 = vmatprep.mubr.bf16.mxu0 %v1189
        %2185 = vmatmul.mubr.bf16.gmra.mxu0 %v1188
        %v2186 = vpop.f32.mrf.mxu0
        %v2187 = vadd.f32 0.0, %v2186
        %v2188 = vpop.f32.mrf.mxu0
        %v2189 = vadd.f32 0.0, %v2188
        %v2190 = vpop.f32.mrf.mxu0
        %v2191 = vadd.f32 0.0, %v2190
        %v2192 = vpop.f32.mrf.mxu0
        %v2193 = vadd.f32 0.0, %v2192
        %2194 = vmatprep.mubr.bf16.mxu0 %v1195
        %2195 = vmatmul.mubr.bf16.gmra.mxu0 %v1194
        %v2196 = vpop.f32.mrf.mxu0
        %v2197 = vadd.f32 0.0, %v2196
        %v2198 = vpop.f32.mrf.mxu0
        %v2199 = vadd.f32 0.0, %v2198
        %v2200 = vpop.f32.mrf.mxu0
        %v2201 = vadd.f32 0.0, %v2200
        %v2202 = vpop.f32.mrf.mxu0
        %v2203 = vadd.f32 0.0, %v2202
        %2204 = vmatprep.mubr.bf16.mxu0 %v1201
        %2205 = vmatmul.mubr.bf16.gmra.mxu0 %v1200
        %v2206 = vpop.f32.mrf.mxu0
        %v2207 = vadd.f32 0.0, %v2206
        %v2208 = vpop.f32.mrf.mxu0
        %v2209 = vadd.f32 0.0, %v2208
        %v2210 = vpop.f32.mrf.mxu0
        %v2211 = vadd.f32 0.0, %v2210
        %v2212 = vpop.f32.mrf.mxu0
        %v2213 = vadd.f32 0.0, %v2212
        %2214 = vmatprep.mubr.bf16.mxu0 %v1207
        %2215 = vmatmul.mubr.bf16.gmra.mxu0 %v1206
        %v2216 = vpop.f32.mrf.mxu0
        %v2217 = vadd.f32 0.0, %v2216
        %v2218 = vpop.f32.mrf.mxu0
        %v2219 = vadd.f32 0.0, %v2218
        %v2220 = vpop.f32.mrf.mxu0
        %v2221 = vadd.f32 0.0, %v2220
        %v2222 = vpop.f32.mrf.mxu0
        %v2223 = vadd.f32 0.0, %v2222
        %2224 = vmatprep.mubr.bf16.mxu0 %v1213
        %2225 = vmatmul.mubr.bf16.gmra.mxu0 %v1212
        %v2226 = vpop.f32.mrf.mxu0
        %v2227 = vadd.f32 0.0, %v2226
        %v2228 = vpop.f32.mrf.mxu0
        %v2229 = vadd.f32 0.0, %v2228
        %v2230 = vpop.f32.mrf.mxu0
        %v2231 = vadd.f32 0.0, %v2230
        %v2232 = vpop.f32.mrf.mxu0
        %v2233 = vadd.f32 0.0, %v2232
        %2234 = vmatprep.mubr.bf16.mxu0 %v1219
        %2235 = vmatmul.mubr.bf16.gmra.mxu0 %v1218
        %v2236 = vpop.f32.mrf.mxu0
        %v2237 = vadd.f32 0.0, %v2236
        %v2238 = vpop.f32.mrf.mxu0
        %v2239 = vadd.f32 0.0, %v2238
        %v2240 = vpop.f32.mrf.mxu0
        %v2241 = vadd.f32 0.0, %v2240
        %v2242 = vpop.f32.mrf.mxu0
        %v2243 = vadd.f32 0.0, %v2242
        %2244 = vmatprep.mubr.bf16.mxu0 %v1225
        %2245 = vmatmul.mubr.bf16.gmra.mxu0 %v1224
        %v2246 = vpop.f32.mrf.mxu0
        %v2247 = vadd.f32 0.0, %v2246
        %v2248 = vpop.f32.mrf.mxu0
        %v2249 = vadd.f32 0.0, %v2248
        %v2250 = vpop.f32.mrf.mxu0
        %v2251 = vadd.f32 0.0, %v2250
        %v2252 = vpop.f32.mrf.mxu0
        %v2253 = vadd.f32 0.0, %v2252
        %2254 = vdwg.mxu0
        %2255 = vmatprep.subr.bf16.mxu0 %v1757
        %2256 = vmatpush1.bf16.msra.mxu0 %v1756
        %2257 = vmatprep.subr.bf16.mxu0 %v1755
        %2258 = vmatpush1.bf16.msra.mxu0 %v1754
        %2259 = vmatprep.subr.bf16.mxu0 %v1753
        %2260 = vmatpush1.bf16.msra.mxu0 %v1752
        %2261 = vmatprep.subr.bf16.mxu0 %v1751
        %2262 = vmatpush1.bf16.msra.mxu0 %v1750
        %2263 = vmatprep.subr.bf16.mxu0 %v1749
        %2264 = vmatpush1.bf16.msra.mxu0 %v1748
        %2265 = vmatprep.subr.bf16.mxu0 %v1747
        %2266 = vmatpush1.bf16.msra.mxu0 %v1746
        %2267 = vmatprep.subr.bf16.mxu0 %v1745
        %2268 = vmatpush1.bf16.msra.mxu0 %v1744
        %2269 = vmatprep.subr.bf16.mxu0 %v1743
        %2270 = vmatpush1.bf16.msra.mxu0 %v1742
        %2271 = vmatprep.subr.bf16.mxu0 %v1773
        %2272 = vmatpush2.bf16.msra.mxu0 %v1772
        %2273 = vmatprep.subr.bf16.mxu0 %v1771
        %2274 = vmatpush2.bf16.msra.mxu0 %v1770
        %2275 = vmatprep.subr.bf16.mxu0 %v1769
        %2276 = vmatpush2.bf16.msra.mxu0 %v1768
        %2277 = vmatprep.subr.bf16.mxu0 %v1767
        %2278 = vmatpush2.bf16.msra.mxu0 %v1766
        %2279 = vmatprep.subr.bf16.mxu0 %v1765
        %2280 = vmatpush2.bf16.msra.mxu0 %v1764
        %2281 = vmatprep.subr.bf16.mxu0 %v1763
        %2282 = vmatpush2.bf16.msra.mxu0 %v1762
        %2283 = vmatprep.subr.bf16.mxu0 %v1761
        %2284 = vmatpush2.bf16.msra.mxu0 %v1760
        %2285 = vmatprep.subr.bf16.mxu0 %v1759
        %2286 = vmatpush2.bf16.msra.mxu0 %v1758
        %2287 = vmatprep.mubr.bf16.mxu0 %v1041
        %2288 = vmatmul.mubr.bf16.gmra.mxu0 %v1040
        %v2289 = vpop.f32.mrf.mxu0
        %v2290 = vadd.f32 %v1937, %v2289
        %v2291 = vpop.f32.mrf.mxu0
        %v2292 = vadd.f32 %v1939, %v2291
        %v2293 = vpop.f32.mrf.mxu0
        %v2294 = vadd.f32 %v1941, %v2293
        %v2295 = vpop.f32.mrf.mxu0
        %v2296 = vadd.f32 %v1943, %v2295
        %2297 = vmatprep.mubr.bf16.mxu0 %v1047
        %2298 = vmatmul.mubr.bf16.gmra.mxu0 %v1046
        %v2299 = vpop.f32.mrf.mxu0
        %v2300 = vadd.f32 %v1947, %v2299
        %v2301 = vpop.f32.mrf.mxu0
        %v2302 = vadd.f32 %v1949, %v2301
        %v2303 = vpop.f32.mrf.mxu0
        %v2304 = vadd.f32 %v1951, %v2303
        %v2305 = vpop.f32.mrf.mxu0
        %v2306 = vadd.f32 %v1953, %v2305
        %2307 = vmatprep.mubr.bf16.mxu0 %v1053
        %2308 = vmatmul.mubr.bf16.gmra.mxu0 %v1052
        %v2309 = vpop.f32.mrf.mxu0
        %v2310 = vadd.f32 %v1957, %v2309
        %v2311 = vpop.f32.mrf.mxu0
        %v2312 = vadd.f32 %v1959, %v2311
        %v2313 = vpop.f32.mrf.mxu0
        %v2314 = vadd.f32 %v1961, %v2313
        %v2315 = vpop.f32.mrf.mxu0
        %v2316 = vadd.f32 %v1963, %v2315
        %2317 = vmatprep.mubr.bf16.mxu0 %v1059
        %2318 = vmatmul.mubr.bf16.gmra.mxu0 %v1058
        %v2319 = vpop.f32.mrf.mxu0
        %v2320 = vadd.f32 %v1967, %v2319
        %v2321 = vpop.f32.mrf.mxu0
        %v2322 = vadd.f32 %v1969, %v2321
        %v2323 = vpop.f32.mrf.mxu0
        %v2324 = vadd.f32 %v1971, %v2323
        %v2325 = vpop.f32.mrf.mxu0
        %v2326 = vadd.f32 %v1973, %v2325
        %2327 = vmatprep.mubr.bf16.mxu0 %v1065
        %2328 = vmatmul.mubr.bf16.gmra.mxu0 %v1064
        %v2329 = vpop.f32.mrf.mxu0
        %v2330 = vadd.f32 %v1977, %v2329
        %v2331 = vpop.f32.mrf.mxu0
        %v2332 = vadd.f32 %v1979, %v2331
        %v2333 = vpop.f32.mrf.mxu0
        %v2334 = vadd.f32 %v1981, %v2333
        %v2335 = vpop.f32.mrf.mxu0
        %v2336 = vadd.f32 %v1983, %v2335
        %2337 = vmatprep.mubr.bf16.mxu0 %v1071
        %2338 = vmatmul.mubr.bf16.gmra.mxu0 %v1070
        %v2339 = vpop.f32.mrf.mxu0
        %v2340 = vadd.f32 %v1987, %v2339
        %v2341 = vpop.f32.mrf.mxu0
        %v2342 = vadd.f32 %v1989, %v2341
        %v2343 = vpop.f32.mrf.mxu0
        %v2344 = vadd.f32 %v1991, %v2343
        %v2345 = vpop.f32.mrf.mxu0
        %v2346 = vadd.f32 %v1993, %v2345
        %2347 = vmatprep.mubr.bf16.mxu0 %v1077
        %2348 = vmatmul.mubr.bf16.gmra.mxu0 %v1076
        %v2349 = vpop.f32.mrf.mxu0
        %v2350 = vadd.f32 %v1997, %v2349
        %v2351 = vpop.f32.mrf.mxu0
        %v2352 = vadd.f32 %v1999, %v2351
        %v2353 = vpop.f32.mrf.mxu0
        %v2354 = vadd.f32 %v2001, %v2353
        %v2355 = vpop.f32.mrf.mxu0
        %v2356 = vadd.f32 %v2003, %v2355
        %2357 = vmatprep.mubr.bf16.mxu0 %v1083
        %2358 = vmatmul.mubr.bf16.gmra.mxu0 %v1082
        %v2359 = vpop.f32.mrf.mxu0
        %v2360 = vadd.f32 %v2007, %v2359
        %v2361 = vpop.f32.mrf.mxu0
        %v2362 = vadd.f32 %v2009, %v2361
        %v2363 = vpop.f32.mrf.mxu0
        %v2364 = vadd.f32 %v2011, %v2363
        %v2365 = vpop.f32.mrf.mxu0
        %v2366 = vadd.f32 %v2013, %v2365
        %2367 = vmatprep.mubr.bf16.mxu0 %v1089
        %2368 = vmatmul.mubr.bf16.gmra.mxu0 %v1088
        %v2369 = vpop.f32.mrf.mxu0
        %v2370 = vadd.f32 %v2017, %v2369
        %v2371 = vpop.f32.mrf.mxu0
        %v2372 = vadd.f32 %v2019, %v2371
        %v2373 = vpop.f32.mrf.mxu0
        %v2374 = vadd.f32 %v2021, %v2373
        %v2375 = vpop.f32.mrf.mxu0
        %v2376 = vadd.f32 %v2023, %v2375
        %2377 = vmatprep.mubr.bf16.mxu0 %v1095
        %2378 = vmatmul.mubr.bf16.gmra.mxu0 %v1094
        %v2379 = vpop.f32.mrf.mxu0
        %v2380 = vadd.f32 %v2027, %v2379
        %v2381 = vpop.f32.mrf.mxu0
        %v2382 = vadd.f32 %v2029, %v2381
        %v2383 = vpop.f32.mrf.mxu0
        %v2384 = vadd.f32 %v2031, %v2383
        %v2385 = vpop.f32.mrf.mxu0
        %v2386 = vadd.f32 %v2033, %v2385
        %2387 = vmatprep.mubr.bf16.mxu0 %v1101
        %2388 = vmatmul.mubr.bf16.gmra.mxu0 %v1100
        %v2389 = vpop.f32.mrf.mxu0
        %v2390 = vadd.f32 %v2037, %v2389
        %v2391 = vpop.f32.mrf.mxu0
        %v2392 = vadd.f32 %v2039, %v2391
        %v2393 = vpop.f32.mrf.mxu0
        %v2394 = vadd.f32 %v2041, %v2393
        %v2395 = vpop.f32.mrf.mxu0
        %v2396 = vadd.f32 %v2043, %v2395
        %2397 = vmatprep.mubr.bf16.mxu0 %v1107
        %2398 = vmatmul.mubr.bf16.gmra.mxu0 %v1106
        %v2399 = vpop.f32.mrf.mxu0
        %v2400 = vadd.f32 %v2047, %v2399
        %v2401 = vpop.f32.mrf.mxu0
        %v2402 = vadd.f32 %v2049, %v2401
        %v2403 = vpop.f32.mrf.mxu0
        %v2404 = vadd.f32 %v2051, %v2403
        %v2405 = vpop.f32.mrf.mxu0
        %v2406 = vadd.f32 %v2053, %v2405
        %2407 = vmatprep.mubr.bf16.mxu0 %v1113
        %2408 = vmatmul.mubr.bf16.gmra.mxu0 %v1112
        %v2409 = vpop.f32.mrf.mxu0
        %v2410 = vadd.f32 %v2057, %v2409
        %v2411 = vpop.f32.mrf.mxu0
        %v2412 = vadd.f32 %v2059, %v2411
        %v2413 = vpop.f32.mrf.mxu0
        %v2414 = vadd.f32 %v2061, %v2413
        %v2415 = vpop.f32.mrf.mxu0
        %v2416 = vadd.f32 %v2063, %v2415
        %2417 = vmatprep.mubr.bf16.mxu0 %v1119
        %2418 = vmatmul.mubr.bf16.gmra.mxu0 %v1118
        %v2419 = vpop.f32.mrf.mxu0
        %v2420 = vadd.f32 %v2067, %v2419
        %v2421 = vpop.f32.mrf.mxu0
        %v2422 = vadd.f32 %v2069, %v2421
        %v2423 = vpop.f32.mrf.mxu0
        %v2424 = vadd.f32 %v2071, %v2423
        %v2425 = vpop.f32.mrf.mxu0
        %v2426 = vadd.f32 %v2073, %v2425
        %2427 = vmatprep.mubr.bf16.mxu0 %v1125
        %2428 = vmatmul.mubr.bf16.gmra.mxu0 %v1124
        %v2429 = vpop.f32.mrf.mxu0
        %v2430 = vadd.f32 %v2077, %v2429
        %v2431 = vpop.f32.mrf.mxu0
        %v2432 = vadd.f32 %v2079, %v2431
        %v2433 = vpop.f32.mrf.mxu0
        %v2434 = vadd.f32 %v2081, %v2433
        %v2435 = vpop.f32.mrf.mxu0
        %v2436 = vadd.f32 %v2083, %v2435
        %2437 = vmatprep.mubr.bf16.mxu0 %v1131
        %2438 = vmatmul.mubr.bf16.gmra.mxu0 %v1130
        %v2439 = vpop.f32.mrf.mxu0
        %v2440 = vadd.f32 %v2087, %v2439
        %v2441 = vpop.f32.mrf.mxu0
        %v2442 = vadd.f32 %v2089, %v2441
        %v2443 = vpop.f32.mrf.mxu0
        %v2444 = vadd.f32 %v2091, %v2443
        %v2445 = vpop.f32.mrf.mxu0
        %v2446 = vadd.f32 %v2093, %v2445
        %2447 = vmatprep.mubr.bf16.mxu0 %v1137
        %2448 = vmatmul.mubr.bf16.gmra.mxu0 %v1136
        %v2449 = vpop.f32.mrf.mxu0
        %v2450 = vadd.f32 %v2097, %v2449
        %v2451 = vpop.f32.mrf.mxu0
        %v2452 = vadd.f32 %v2099, %v2451
        %v2453 = vpop.f32.mrf.mxu0
        %v2454 = vadd.f32 %v2101, %v2453
        %v2455 = vpop.f32.mrf.mxu0
        %v2456 = vadd.f32 %v2103, %v2455
        %2457 = vmatprep.mubr.bf16.mxu0 %v1143
        %2458 = vmatmul.mubr.bf16.gmra.mxu0 %v1142
        %v2459 = vpop.f32.mrf.mxu0
        %v2460 = vadd.f32 %v2107, %v2459
        %v2461 = vpop.f32.mrf.mxu0
        %v2462 = vadd.f32 %v2109, %v2461
        %v2463 = vpop.f32.mrf.mxu0
        %v2464 = vadd.f32 %v2111, %v2463
        %v2465 = vpop.f32.mrf.mxu0
        %v2466 = vadd.f32 %v2113, %v2465
        %2467 = vmatprep.mubr.bf16.mxu0 %v1149
        %2468 = vmatmul.mubr.bf16.gmra.mxu0 %v1148
        %v2469 = vpop.f32.mrf.mxu0
        %v2470 = vadd.f32 %v2117, %v2469
        %v2471 = vpop.f32.mrf.mxu0
        %v2472 = vadd.f32 %v2119, %v2471
        %v2473 = vpop.f32.mrf.mxu0
        %v2474 = vadd.f32 %v2121, %v2473
        %v2475 = vpop.f32.mrf.mxu0
        %v2476 = vadd.f32 %v2123, %v2475
        %2477 = vmatprep.mubr.bf16.mxu0 %v1155
        %2478 = vmatmul.mubr.bf16.gmra.mxu0 %v1154
        %v2479 = vpop.f32.mrf.mxu0
        %v2480 = vadd.f32 %v2127, %v2479
        %v2481 = vpop.f32.mrf.mxu0
        %v2482 = vadd.f32 %v2129, %v2481
        %v2483 = vpop.f32.mrf.mxu0
        %v2484 = vadd.f32 %v2131, %v2483
        %v2485 = vpop.f32.mrf.mxu0
        %v2486 = vadd.f32 %v2133, %v2485
        %2487 = vmatprep.mubr.bf16.mxu0 %v1161
        %2488 = vmatmul.mubr.bf16.gmra.mxu0 %v1160
        %v2489 = vpop.f32.mrf.mxu0
        %v2490 = vadd.f32 %v2137, %v2489
        %v2491 = vpop.f32.mrf.mxu0
        %v2492 = vadd.f32 %v2139, %v2491
        %v2493 = vpop.f32.mrf.mxu0
        %v2494 = vadd.f32 %v2141, %v2493
        %v2495 = vpop.f32.mrf.mxu0
        %v2496 = vadd.f32 %v2143, %v2495
        %2497 = vmatprep.mubr.bf16.mxu0 %v1167
        %2498 = vmatmul.mubr.bf16.gmra.mxu0 %v1166
        %v2499 = vpop.f32.mrf.mxu0
        %v2500 = vadd.f32 %v2147, %v2499
        %v2501 = vpop.f32.mrf.mxu0
        %v2502 = vadd.f32 %v2149, %v2501
        %v2503 = vpop.f32.mrf.mxu0
        %v2504 = vadd.f32 %v2151, %v2503
        %v2505 = vpop.f32.mrf.mxu0
        %v2506 = vadd.f32 %v2153, %v2505
        %2507 = vmatprep.mubr.bf16.mxu0 %v1173
        %2508 = vmatmul.mubr.bf16.gmra.mxu0 %v1172
        %v2509 = vpop.f32.mrf.mxu0
        %v2510 = vadd.f32 %v2157, %v2509
        %v2511 = vpop.f32.mrf.mxu0
        %v2512 = vadd.f32 %v2159, %v2511
        %v2513 = vpop.f32.mrf.mxu0
        %v2514 = vadd.f32 %v2161, %v2513
        %v2515 = vpop.f32.mrf.mxu0
        %v2516 = vadd.f32 %v2163, %v2515
        %2517 = vmatprep.mubr.bf16.mxu0 %v1179
        %2518 = vmatmul.mubr.bf16.gmra.mxu0 %v1178
        %v2519 = vpop.f32.mrf.mxu0
        %v2520 = vadd.f32 %v2167, %v2519
        %v2521 = vpop.f32.mrf.mxu0
        %v2522 = vadd.f32 %v2169, %v2521
        %v2523 = vpop.f32.mrf.mxu0
        %v2524 = vadd.f32 %v2171, %v2523
        %v2525 = vpop.f32.mrf.mxu0
        %v2526 = vadd.f32 %v2173, %v2525
        %2527 = vmatprep.mubr.bf16.mxu0 %v1185
        %2528 = vmatmul.mubr.bf16.gmra.mxu0 %v1184
        %v2529 = vpop.f32.mrf.mxu0
        %v2530 = vadd.f32 %v2177, %v2529
        %v2531 = vpop.f32.mrf.mxu0
        %v2532 = vadd.f32 %v2179, %v2531
        %v2533 = vpop.f32.mrf.mxu0
        %v2534 = vadd.f32 %v2181, %v2533
        %v2535 = vpop.f32.mrf.mxu0
        %v2536 = vadd.f32 %v2183, %v2535
        %2537 = vmatprep.mubr.bf16.mxu0 %v1191
        %2538 = vmatmul.mubr.bf16.gmra.mxu0 %v1190
        %v2539 = vpop.f32.mrf.mxu0
        %v2540 = vadd.f32 %v2187, %v2539
        %v2541 = vpop.f32.mrf.mxu0
        %v2542 = vadd.f32 %v2189, %v2541
        %v2543 = vpop.f32.mrf.mxu0
        %v2544 = vadd.f32 %v2191, %v2543
        %v2545 = vpop.f32.mrf.mxu0
        %v2546 = vadd.f32 %v2193, %v2545
        %2547 = vmatprep.mubr.bf16.mxu0 %v1197
        %2548 = vmatmul.mubr.bf16.gmra.mxu0 %v1196
        %v2549 = vpop.f32.mrf.mxu0
        %v2550 = vadd.f32 %v2197, %v2549
        %v2551 = vpop.f32.mrf.mxu0
        %v2552 = vadd.f32 %v2199, %v2551
        %v2553 = vpop.f32.mrf.mxu0
        %v2554 = vadd.f32 %v2201, %v2553
        %v2555 = vpop.f32.mrf.mxu0
        %v2556 = vadd.f32 %v2203, %v2555
        %2557 = vmatprep.mubr.bf16.mxu0 %v1203
        %2558 = vmatmul.mubr.bf16.gmra.mxu0 %v1202
        %v2559 = vpop.f32.mrf.mxu0
        %v2560 = vadd.f32 %v2207, %v2559
        %v2561 = vpop.f32.mrf.mxu0
        %v2562 = vadd.f32 %v2209, %v2561
        %v2563 = vpop.f32.mrf.mxu0
        %v2564 = vadd.f32 %v2211, %v2563
        %v2565 = vpop.f32.mrf.mxu0
        %v2566 = vadd.f32 %v2213, %v2565
        %2567 = vmatprep.mubr.bf16.mxu0 %v1209
        %2568 = vmatmul.mubr.bf16.gmra.mxu0 %v1208
        %v2569 = vpop.f32.mrf.mxu0
        %v2570 = vadd.f32 %v2217, %v2569
        %v2571 = vpop.f32.mrf.mxu0
        %v2572 = vadd.f32 %v2219, %v2571
        %v2573 = vpop.f32.mrf.mxu0
        %v2574 = vadd.f32 %v2221, %v2573
        %v2575 = vpop.f32.mrf.mxu0
        %v2576 = vadd.f32 %v2223, %v2575
        %2577 = vmatprep.mubr.bf16.mxu0 %v1215
        %2578 = vmatmul.mubr.bf16.gmra.mxu0 %v1214
        %v2579 = vpop.f32.mrf.mxu0
        %v2580 = vadd.f32 %v2227, %v2579
        %v2581 = vpop.f32.mrf.mxu0
        %v2582 = vadd.f32 %v2229, %v2581
        %v2583 = vpop.f32.mrf.mxu0
        %v2584 = vadd.f32 %v2231, %v2583
        %v2585 = vpop.f32.mrf.mxu0
        %v2586 = vadd.f32 %v2233, %v2585
        %2587 = vmatprep.mubr.bf16.mxu0 %v1221
        %2588 = vmatmul.mubr.bf16.gmra.mxu0 %v1220
        %v2589 = vpop.f32.mrf.mxu0
        %v2590 = vadd.f32 %v2237, %v2589
        %v2591 = vpop.f32.mrf.mxu0
        %v2592 = vadd.f32 %v2239, %v2591
        %v2593 = vpop.f32.mrf.mxu0
        %v2594 = vadd.f32 %v2241, %v2593
        %v2595 = vpop.f32.mrf.mxu0
        %v2596 = vadd.f32 %v2243, %v2595
        %2597 = vmatprep.mubr.bf16.mxu0 %v1227
        %2598 = vmatmul.mubr.bf16.gmra.mxu0 %v1226
        %v2599 = vpop.f32.mrf.mxu0
        %v2600 = vadd.f32 %v2247, %v2599
        %v2601 = vpop.f32.mrf.mxu0
        %v2602 = vadd.f32 %v2249, %v2601
        %v2603 = vpop.f32.mrf.mxu0
        %v2604 = vadd.f32 %v2251, %v2603
        %v2605 = vpop.f32.mrf.mxu0
        %v2606 = vadd.f32 %v2253, %v2605
        %2607 = vdwg.mxu0
        %2608 = vmatprep.subr.bf16.mxu0 %v1789
        %2609 = vmatpush1.bf16.msra.mxu0 %v1788
        %2610 = vmatprep.subr.bf16.mxu0 %v1787
        %2611 = vmatpush1.bf16.msra.mxu0 %v1786
        %2612 = vmatprep.subr.bf16.mxu0 %v1785
        %2613 = vmatpush1.bf16.msra.mxu0 %v1784
        %2614 = vmatprep.subr.bf16.mxu0 %v1783
        %2615 = vmatpush1.bf16.msra.mxu0 %v1782
        %2616 = vmatprep.subr.bf16.mxu0 %v1781
        %2617 = vmatpush1.bf16.msra.mxu0 %v1780
        %2618 = vmatprep.subr.bf16.mxu0 %v1779
        %2619 = vmatpush1.bf16.msra.mxu0 %v1778
        %2620 = vmatprep.subr.bf16.mxu0 %v1777
        %2621 = vmatpush1.bf16.msra.mxu0 %v1776
        %2622 = vmatprep.subr.bf16.mxu0 %v1775
        %2623 = vmatpush1.bf16.msra.mxu0 %v1774
        %2624 = vmatprep.subr.bf16.mxu0 %v1805
        %2625 = vmatpush2.bf16.msra.mxu0 %v1804
        %2626 = vmatprep.subr.bf16.mxu0 %v1803
        %2627 = vmatpush2.bf16.msra.mxu0 %v1802
        %2628 = vmatprep.subr.bf16.mxu0 %v1801
        %2629 = vmatpush2.bf16.msra.mxu0 %v1800
        %2630 = vmatprep.subr.bf16.mxu0 %v1799
        %2631 = vmatpush2.bf16.msra.mxu0 %v1798
        %2632 = vmatprep.subr.bf16.mxu0 %v1797
        %2633 = vmatpush2.bf16.msra.mxu0 %v1796
        %2634 = vmatprep.subr.bf16.mxu0 %v1795
        %2635 = vmatpush2.bf16.msra.mxu0 %v1794
        %2636 = vmatprep.subr.bf16.mxu0 %v1793
        %2637 = vmatpush2.bf16.msra.mxu0 %v1792
        %2638 = vmatprep.subr.bf16.mxu0 %v1791
        %2639 = vmatpush2.bf16.msra.mxu0 %v1790
        %2640 = vmatprep.mubr.bf16.mxu0 %v1043
        %2641 = vmatmul.mubr.bf16.gmra.mxu0 %v1042
        %v2642 = vpop.f32.mrf.mxu0
        %v2643 = vadd.f32 %v2290, %v2642
        %v2644 = vpop.f32.mrf.mxu0
        %v2645 = vadd.f32 %v2292, %v2644
        %v2646 = vpop.f32.mrf.mxu0
        %v2647 = vadd.f32 %v2294, %v2646
        %v2648 = vpop.f32.mrf.mxu0
        %v2649 = vadd.f32 %v2296, %v2648
        %2650 = vmatprep.mubr.bf16.mxu0 %v1049
        %2651 = vmatmul.mubr.bf16.gmra.mxu0 %v1048
        %v2652 = vpop.f32.mrf.mxu0
        %v2653 = vadd.f32 %v2300, %v2652
        %v2654 = vpop.f32.mrf.mxu0
        %v2655 = vadd.f32 %v2302, %v2654
        %v2656 = vpop.f32.mrf.mxu0
        %v2657 = vadd.f32 %v2304, %v2656
        %v2658 = vpop.f32.mrf.mxu0
        %v2659 = vadd.f32 %v2306, %v2658
        %2660 = vmatprep.mubr.bf16.mxu0 %v1055
        %2661 = vmatmul.mubr.bf16.gmra.mxu0 %v1054
        %v2662 = vpop.f32.mrf.mxu0
        %v2663 = vadd.f32 %v2310, %v2662
        %v2664 = vpop.f32.mrf.mxu0
        %v2665 = vadd.f32 %v2312, %v2664
        %v2666 = vpop.f32.mrf.mxu0
        %v2667 = vadd.f32 %v2314, %v2666
        %v2668 = vpop.f32.mrf.mxu0
        %v2669 = vadd.f32 %v2316, %v2668
        %2670 = vmatprep.mubr.bf16.mxu0 %v1061
        %2671 = vmatmul.mubr.bf16.gmra.mxu0 %v1060
        %v2672 = vpop.f32.mrf.mxu0
        %v2673 = vadd.f32 %v2320, %v2672
        %v2674 = vpop.f32.mrf.mxu0
        %v2675 = vadd.f32 %v2322, %v2674
        %v2676 = vpop.f32.mrf.mxu0
        %v2677 = vadd.f32 %v2324, %v2676
        %v2678 = vpop.f32.mrf.mxu0
        %v2679 = vadd.f32 %v2326, %v2678
        %2680 = vmatprep.mubr.bf16.mxu0 %v1067
        %2681 = vmatmul.mubr.bf16.gmra.mxu0 %v1066
        %v2682 = vpop.f32.mrf.mxu0
        %v2683 = vadd.f32 %v2330, %v2682
        %v2684 = vpop.f32.mrf.mxu0
        %v2685 = vadd.f32 %v2332, %v2684
        %v2686 = vpop.f32.mrf.mxu0
        %v2687 = vadd.f32 %v2334, %v2686
        %v2688 = vpop.f32.mrf.mxu0
        %v2689 = vadd.f32 %v2336, %v2688
        %2690 = vmatprep.mubr.bf16.mxu0 %v1073
        %2691 = vmatmul.mubr.bf16.gmra.mxu0 %v1072
        %v2692 = vpop.f32.mrf.mxu0
        %v2693 = vadd.f32 %v2340, %v2692
        %v2694 = vpop.f32.mrf.mxu0
        %v2695 = vadd.f32 %v2342, %v2694
        %v2696 = vpop.f32.mrf.mxu0
        %v2697 = vadd.f32 %v2344, %v2696
        %v2698 = vpop.f32.mrf.mxu0
        %v2699 = vadd.f32 %v2346, %v2698
        %2700 = vmatprep.mubr.bf16.mxu0 %v1079
        %2701 = vmatmul.mubr.bf16.gmra.mxu0 %v1078
        %v2702 = vpop.f32.mrf.mxu0
        %v2703 = vadd.f32 %v2350, %v2702
        %v2704 = vpop.f32.mrf.mxu0
        %v2705 = vadd.f32 %v2352, %v2704
        %v2706 = vpop.f32.mrf.mxu0
        %v2707 = vadd.f32 %v2354, %v2706
        %v2708 = vpop.f32.mrf.mxu0
        %v2709 = vadd.f32 %v2356, %v2708
        %2710 = vmatprep.mubr.bf16.mxu0 %v1085
        %2711 = vmatmul.mubr.bf16.gmra.mxu0 %v1084
        %v2712 = vpop.f32.mrf.mxu0
        %v2713 = vadd.f32 %v2360, %v2712
        %v2714 = vpop.f32.mrf.mxu0
        %v2715 = vadd.f32 %v2362, %v2714
        %v2716 = vpop.f32.mrf.mxu0
        %v2717 = vadd.f32 %v2364, %v2716
        %v2718 = vpop.f32.mrf.mxu0
        %v2719 = vadd.f32 %v2366, %v2718
        %2720 = vmatprep.mubr.bf16.mxu0 %v1091
        %2721 = vmatmul.mubr.bf16.gmra.mxu0 %v1090
        %v2722 = vpop.f32.mrf.mxu0
        %v2723 = vadd.f32 %v2370, %v2722
        %v2724 = vpop.f32.mrf.mxu0
        %v2725 = vadd.f32 %v2372, %v2724
        %v2726 = vpop.f32.mrf.mxu0
        %v2727 = vadd.f32 %v2374, %v2726
        %v2728 = vpop.f32.mrf.mxu0
        %v2729 = vadd.f32 %v2376, %v2728
        %2730 = vmatprep.mubr.bf16.mxu0 %v1097
        %2731 = vmatmul.mubr.bf16.gmra.mxu0 %v1096
        %v2732 = vpop.f32.mrf.mxu0
        %v2733 = vadd.f32 %v2380, %v2732
        %v2734 = vpop.f32.mrf.mxu0
        %v2735 = vadd.f32 %v2382, %v2734
        %v2736 = vpop.f32.mrf.mxu0
        %v2737 = vadd.f32 %v2384, %v2736
        %v2738 = vpop.f32.mrf.mxu0
        %v2739 = vadd.f32 %v2386, %v2738
        %2740 = vmatprep.mubr.bf16.mxu0 %v1103
        %2741 = vmatmul.mubr.bf16.gmra.mxu0 %v1102
        %v2742 = vpop.f32.mrf.mxu0
        %v2743 = vadd.f32 %v2390, %v2742
        %v2744 = vpop.f32.mrf.mxu0
        %v2745 = vadd.f32 %v2392, %v2744
        %v2746 = vpop.f32.mrf.mxu0
        %v2747 = vadd.f32 %v2394, %v2746
        %v2748 = vpop.f32.mrf.mxu0
        %v2749 = vadd.f32 %v2396, %v2748
        %2750 = vmatprep.mubr.bf16.mxu0 %v1109
        %2751 = vmatmul.mubr.bf16.gmra.mxu0 %v1108
        %v2752 = vpop.f32.mrf.mxu0
        %v2753 = vadd.f32 %v2400, %v2752
        %v2754 = vpop.f32.mrf.mxu0
        %v2755 = vadd.f32 %v2402, %v2754
        %v2756 = vpop.f32.mrf.mxu0
        %v2757 = vadd.f32 %v2404, %v2756
        %v2758 = vpop.f32.mrf.mxu0
        %v2759 = vadd.f32 %v2406, %v2758
        %2760 = vmatprep.mubr.bf16.mxu0 %v1115
        %2761 = vmatmul.mubr.bf16.gmra.mxu0 %v1114
        %v2762 = vpop.f32.mrf.mxu0
        %v2763 = vadd.f32 %v2410, %v2762
        %v2764 = vpop.f32.mrf.mxu0
        %v2765 = vadd.f32 %v2412, %v2764
        %v2766 = vpop.f32.mrf.mxu0
        %v2767 = vadd.f32 %v2414, %v2766
        %v2768 = vpop.f32.mrf.mxu0
        %v2769 = vadd.f32 %v2416, %v2768
        %2770 = vmatprep.mubr.bf16.mxu0 %v1121
        %2771 = vmatmul.mubr.bf16.gmra.mxu0 %v1120
        %v2772 = vpop.f32.mrf.mxu0
        %v2773 = vadd.f32 %v2420, %v2772
        %v2774 = vpop.f32.mrf.mxu0
        %v2775 = vadd.f32 %v2422, %v2774
        %v2776 = vpop.f32.mrf.mxu0
        %v2777 = vadd.f32 %v2424, %v2776
        %v2778 = vpop.f32.mrf.mxu0
        %v2779 = vadd.f32 %v2426, %v2778
        %2780 = vmatprep.mubr.bf16.mxu0 %v1127
        %2781 = vmatmul.mubr.bf16.gmra.mxu0 %v1126
        %v2782 = vpop.f32.mrf.mxu0
        %v2783 = vadd.f32 %v2430, %v2782
        %v2784 = vpop.f32.mrf.mxu0
        %v2785 = vadd.f32 %v2432, %v2784
        %v2786 = vpop.f32.mrf.mxu0
        %v2787 = vadd.f32 %v2434, %v2786
        %v2788 = vpop.f32.mrf.mxu0
        %v2789 = vadd.f32 %v2436, %v2788
        %2790 = vmatprep.mubr.bf16.mxu0 %v1133
        %2791 = vmatmul.mubr.bf16.gmra.mxu0 %v1132
        %v2792 = vpop.f32.mrf.mxu0
        %v2793 = vadd.f32 %v2440, %v2792
        %v2794 = vpop.f32.mrf.mxu0
        %v2795 = vadd.f32 %v2442, %v2794
        %v2796 = vpop.f32.mrf.mxu0
        %v2797 = vadd.f32 %v2444, %v2796
        %v2798 = vpop.f32.mrf.mxu0
        %v2799 = vadd.f32 %v2446, %v2798
        %2800 = vmatprep.mubr.bf16.mxu0 %v1139
        %2801 = vmatmul.mubr.bf16.gmra.mxu0 %v1138
        %v2802 = vpop.f32.mrf.mxu0
        %v2803 = vadd.f32 %v2450, %v2802
        %v2804 = vpop.f32.mrf.mxu0
        %v2805 = vadd.f32 %v2452, %v2804
        %v2806 = vpop.f32.mrf.mxu0
        %v2807 = vadd.f32 %v2454, %v2806
        %v2808 = vpop.f32.mrf.mxu0
        %v2809 = vadd.f32 %v2456, %v2808
        %2810 = vmatprep.mubr.bf16.mxu0 %v1145
        %2811 = vmatmul.mubr.bf16.gmra.mxu0 %v1144
        %v2812 = vpop.f32.mrf.mxu0
        %v2813 = vadd.f32 %v2460, %v2812
        %v2814 = vpop.f32.mrf.mxu0
        %v2815 = vadd.f32 %v2462, %v2814
        %v2816 = vpop.f32.mrf.mxu0
        %v2817 = vadd.f32 %v2464, %v2816
        %v2818 = vpop.f32.mrf.mxu0
        %v2819 = vadd.f32 %v2466, %v2818
        %2820 = vmatprep.mubr.bf16.mxu0 %v1151
        %2821 = vmatmul.mubr.bf16.gmra.mxu0 %v1150
        %v2822 = vpop.f32.mrf.mxu0
        %v2823 = vadd.f32 %v2470, %v2822
        %v2824 = vpop.f32.mrf.mxu0
        %v2825 = vadd.f32 %v2472, %v2824
        %v2826 = vpop.f32.mrf.mxu0
        %v2827 = vadd.f32 %v2474, %v2826
        %v2828 = vpop.f32.mrf.mxu0
        %v2829 = vadd.f32 %v2476, %v2828
        %2830 = vmatprep.mubr.bf16.mxu0 %v1157
        %2831 = vmatmul.mubr.bf16.gmra.mxu0 %v1156
        %v2832 = vpop.f32.mrf.mxu0
        %v2833 = vadd.f32 %v2480, %v2832
        %v2834 = vpop.f32.mrf.mxu0
        %v2835 = vadd.f32 %v2482, %v2834
        %v2836 = vpop.f32.mrf.mxu0
        %v2837 = vadd.f32 %v2484, %v2836
        %v2838 = vpop.f32.mrf.mxu0
        %v2839 = vadd.f32 %v2486, %v2838
        %2840 = vmatprep.mubr.bf16.mxu0 %v1163
        %2841 = vmatmul.mubr.bf16.gmra.mxu0 %v1162
        %v2842 = vpop.f32.mrf.mxu0
        %v2843 = vadd.f32 %v2490, %v2842
        %v2844 = vpop.f32.mrf.mxu0
        %v2845 = vadd.f32 %v2492, %v2844
        %v2846 = vpop.f32.mrf.mxu0
        %v2847 = vadd.f32 %v2494, %v2846
        %v2848 = vpop.f32.mrf.mxu0
        %v2849 = vadd.f32 %v2496, %v2848
        %2850 = vmatprep.mubr.bf16.mxu0 %v1169
        %2851 = vmatmul.mubr.bf16.gmra.mxu0 %v1168
        %v2852 = vpop.f32.mrf.mxu0
        %v2853 = vadd.f32 %v2500, %v2852
        %v2854 = vpop.f32.mrf.mxu0
        %v2855 = vadd.f32 %v2502, %v2854
        %v2856 = vpop.f32.mrf.mxu0
        %v2857 = vadd.f32 %v2504, %v2856
        %v2858 = vpop.f32.mrf.mxu0
        %v2859 = vadd.f32 %v2506, %v2858
        %2860 = vmatprep.mubr.bf16.mxu0 %v1175
        %2861 = vmatmul.mubr.bf16.gmra.mxu0 %v1174
        %v2862 = vpop.f32.mrf.mxu0
        %v2863 = vadd.f32 %v2510, %v2862
        %v2864 = vpop.f32.mrf.mxu0
        %v2865 = vadd.f32 %v2512, %v2864
        %v2866 = vpop.f32.mrf.mxu0
        %v2867 = vadd.f32 %v2514, %v2866
        %v2868 = vpop.f32.mrf.mxu0
        %v2869 = vadd.f32 %v2516, %v2868
        %2870 = vmatprep.mubr.bf16.mxu0 %v1181
        %2871 = vmatmul.mubr.bf16.gmra.mxu0 %v1180
        %v2872 = vpop.f32.mrf.mxu0
        %v2873 = vadd.f32 %v2520, %v2872
        %v2874 = vpop.f32.mrf.mxu0
        %v2875 = vadd.f32 %v2522, %v2874
        %v2876 = vpop.f32.mrf.mxu0
        %v2877 = vadd.f32 %v2524, %v2876
        %v2878 = vpop.f32.mrf.mxu0
        %v2879 = vadd.f32 %v2526, %v2878
        %2880 = vmatprep.mubr.bf16.mxu0 %v1187
        %2881 = vmatmul.mubr.bf16.gmra.mxu0 %v1186
        %v2882 = vpop.f32.mrf.mxu0
        %v2883 = vadd.f32 %v2530, %v2882
        %v2884 = vpop.f32.mrf.mxu0
        %v2885 = vadd.f32 %v2532, %v2884
        %v2886 = vpop.f32.mrf.mxu0
        %v2887 = vadd.f32 %v2534, %v2886
        %v2888 = vpop.f32.mrf.mxu0
        %v2889 = vadd.f32 %v2536, %v2888
        %2890 = vmatprep.mubr.bf16.mxu0 %v1193
        %2891 = vmatmul.mubr.bf16.gmra.mxu0 %v1192
        %v2892 = vpop.f32.mrf.mxu0
        %v2893 = vadd.f32 %v2540, %v2892
        %v2894 = vpop.f32.mrf.mxu0
        %v2895 = vadd.f32 %v2542, %v2894
        %v2896 = vpop.f32.mrf.mxu0
        %v2897 = vadd.f32 %v2544, %v2896
        %v2898 = vpop.f32.mrf.mxu0
        %v2899 = vadd.f32 %v2546, %v2898
        %2900 = vmatprep.mubr.bf16.mxu0 %v1199
        %2901 = vmatmul.mubr.bf16.gmra.mxu0 %v1198
        %v2902 = vpop.f32.mrf.mxu0
        %v2903 = vadd.f32 %v2550, %v2902
        %v2904 = vpop.f32.mrf.mxu0
        %v2905 = vadd.f32 %v2552, %v2904
        %v2906 = vpop.f32.mrf.mxu0
        %v2907 = vadd.f32 %v2554, %v2906
        %v2908 = vpop.f32.mrf.mxu0
        %v2909 = vadd.f32 %v2556, %v2908
        %2910 = vmatprep.mubr.bf16.mxu0 %v1205
        %2911 = vmatmul.mubr.bf16.gmra.mxu0 %v1204
        %v2912 = vpop.f32.mrf.mxu0
        %v2913 = vadd.f32 %v2560, %v2912
        %v2914 = vpop.f32.mrf.mxu0
        %v2915 = vadd.f32 %v2562, %v2914
        %v2916 = vpop.f32.mrf.mxu0
        %v2917 = vadd.f32 %v2564, %v2916
        %v2918 = vpop.f32.mrf.mxu0
        %v2919 = vadd.f32 %v2566, %v2918
        %2920 = vmatprep.mubr.bf16.mxu0 %v1211
        %2921 = vmatmul.mubr.bf16.gmra.mxu0 %v1210
        %v2922 = vpop.f32.mrf.mxu0
        %v2923 = vadd.f32 %v2570, %v2922
        %v2924 = vpop.f32.mrf.mxu0
        %v2925 = vadd.f32 %v2572, %v2924
        %v2926 = vpop.f32.mrf.mxu0
        %v2927 = vadd.f32 %v2574, %v2926
        %v2928 = vpop.f32.mrf.mxu0
        %v2929 = vadd.f32 %v2576, %v2928
        %2930 = vmatprep.mubr.bf16.mxu0 %v1217
        %2931 = vmatmul.mubr.bf16.gmra.mxu0 %v1216
        %v2932 = vpop.f32.mrf.mxu0
        %v2933 = vadd.f32 %v2580, %v2932
        %v2934 = vpop.f32.mrf.mxu0
        %v2935 = vadd.f32 %v2582, %v2934
        %v2936 = vpop.f32.mrf.mxu0
        %v2937 = vadd.f32 %v2584, %v2936
        %v2938 = vpop.f32.mrf.mxu0
        %v2939 = vadd.f32 %v2586, %v2938
        %2940 = vmatprep.mubr.bf16.mxu0 %v1223
        %2941 = vmatmul.mubr.bf16.gmra.mxu0 %v1222
        %v2942 = vpop.f32.mrf.mxu0
        %v2943 = vadd.f32 %v2590, %v2942
        %v2944 = vpop.f32.mrf.mxu0
        %v2945 = vadd.f32 %v2592, %v2944
        %v2946 = vpop.f32.mrf.mxu0
        %v2947 = vadd.f32 %v2594, %v2946
        %v2948 = vpop.f32.mrf.mxu0
        %v2949 = vadd.f32 %v2596, %v2948
        %2950 = vmatprep.mubr.bf16.mxu0 %v1229
        %2951 = vmatmul.mubr.bf16.gmra.mxu0 %v1228
        %v2952 = vpop.f32.mrf.mxu0
        %v2953 = vadd.f32 %v2600, %v2952
        %v2954 = vpop.f32.mrf.mxu0
        %v2955 = vadd.f32 %v2602, %v2954
        %v2956 = vpop.f32.mrf.mxu0
        %v2957 = vadd.f32 %v2604, %v2956
        %v2958 = vpop.f32.mrf.mxu0
        %v2959 = vadd.f32 %v2606, %v2958
        %2960 = vdwg.mxu0
        %2961 = vst [vmem:[%s150] sm:$0xff] %v2643
        %2962 = vst [vmem:[%s150 + $0x8] sm:$0xff] %v2645
        %2963 = vst [vmem:[%s150 + $0x10] sm:$0xff] %v2647
        %2964 = vst [vmem:[%s150 + $0x18] sm:$0xff] %v2649
        %2965 = vst [vmem:[%s150 + $0x20] sm:$0xff] %v2653
        %2966 = vst [vmem:[%s150 + $0x28] sm:$0xff] %v2655
        %2967 = vst [vmem:[%s150 + $0x30] sm:$0xff] %v2657
        %2968 = vst [vmem:[%s150 + $0x38] sm:$0xff] %v2659
        %2969 = vst [vmem:[%s150 + $0x40] sm:$0xff] %v2663
        %2970 = vst [vmem:[%s150 + $0x48] sm:$0xff] %v2665
        %2971 = vst [vmem:[%s150 + $0x50] sm:$0xff] %v2667
        %2972 = vst [vmem:[%s150 + $0x58] sm:$0xff] %v2669
        %2973 = vst [vmem:[%s150 + $0x60] sm:$0xff] %v2673
        %2974 = vst [vmem:[%s150 + $0x68] sm:$0xff] %v2675
        %2975 = vst [vmem:[%s150 + $0x70] sm:$0xff] %v2677
        %2976 = vst [vmem:[%s150 + $0x78] sm:$0xff] %v2679
        %2977 = vst [vmem:[%s150 + $0x80] sm:$0xff] %v2683
        %2978 = vst [vmem:[%s150 + $0x88] sm:$0xff] %v2685
        %2979 = vst [vmem:[%s150 + $0x90] sm:$0xff] %v2687
        %2980 = vst [vmem:[%s150 + $0x98] sm:$0xff] %v2689
        %2981 = vst [vmem:[%s150 + $0xa0] sm:$0xff] %v2693
        %2982 = vst [vmem:[%s150 + $0xa8] sm:$0xff] %v2695
        %2983 = vst [vmem:[%s150 + $0xb0] sm:$0xff] %v2697
        %2984 = vst [vmem:[%s150 + $0xb8] sm:$0xff] %v2699
        %2985 = vst [vmem:[%s150 + $0xc0] sm:$0xff] %v2703
        %2986 = vst [vmem:[%s150 + $0xc8] sm:$0xff] %v2705
        %2987 = vst [vmem:[%s150 + $0xd0] sm:$0xff] %v2707
        %2988 = vst [vmem:[%s150 + $0xd8] sm:$0xff] %v2709
        %2989 = vst [vmem:[%s150 + $0xe0] sm:$0xff] %v2713
        %2990 = vst [vmem:[%s150 + $0xe8] sm:$0xff] %v2715
        %2991 = vst [vmem:[%s150 + $0xf0] sm:$0xff] %v2717
        %2992 = vst [vmem:[%s150 + $0xf8] sm:$0xff] %v2719
        %2993 = vst [vmem:[%s150 + $0x100] sm:$0xff] %v2723
        %2994 = vst [vmem:[%s150 + $0x108] sm:$0xff] %v2725
        %2995 = vst [vmem:[%s150 + $0x110] sm:$0xff] %v2727
        %2996 = vst [vmem:[%s150 + $0x118] sm:$0xff] %v2729
        %2997 = vst [vmem:[%s150 + $0x120] sm:$0xff] %v2733
        %2998 = vst [vmem:[%s150 + $0x128] sm:$0xff] %v2735
        %2999 = vst [vmem:[%s150 + $0x130] sm:$0xff] %v2737
        %3000 = vst [vmem:[%s150 + $0x138] sm:$0xff] %v2739
        %3001 = vst [vmem:[%s150 + $0x140] sm:$0xff] %v2743
        %3002 = vst [vmem:[%s150 + $0x148] sm:$0xff] %v2745
        %3003 = vst [vmem:[%s150 + $0x150] sm:$0xff] %v2747
        %3004 = vst [vmem:[%s150 + $0x158] sm:$0xff] %v2749
        %3005 = vst [vmem:[%s150 + $0x160] sm:$0xff] %v2753
        %3006 = vst [vmem:[%s150 + $0x168] sm:$0xff] %v2755
        %3007 = vst [vmem:[%s150 + $0x170] sm:$0xff] %v2757
        %3008 = vst [vmem:[%s150 + $0x178] sm:$0xff] %v2759
        %3009 = vst [vmem:[%s150 + $0x180] sm:$0xff] %v2763
        %3010 = vst [vmem:[%s150 + $0x188] sm:$0xff] %v2765
        %3011 = vst [vmem:[%s150 + $0x190] sm:$0xff] %v2767
        %3012 = vst [vmem:[%s150 + $0x198] sm:$0xff] %v2769
        %3013 = vst [vmem:[%s150 + $0x1a0] sm:$0xff] %v2773
        %3014 = vst [vmem:[%s150 + $0x1a8] sm:$0xff] %v2775
        %3015 = vst [vmem:[%s150 + $0x1b0] sm:$0xff] %v2777
        %3016 = vst [vmem:[%s150 + $0x1b8] sm:$0xff] %v2779
        %3017 = vst [vmem:[%s150 + $0x1c0] sm:$0xff] %v2783
        %3018 = vst [vmem:[%s150 + $0x1c8] sm:$0xff] %v2785
        %3019 = vst [vmem:[%s150 + $0x1d0] sm:$0xff] %v2787
        %3020 = vst [vmem:[%s150 + $0x1d8] sm:$0xff] %v2789
        %3021 = vst [vmem:[%s150 + $0x1e0] sm:$0xff] %v2793
        %3022 = vst [vmem:[%s150 + $0x1e8] sm:$0xff] %v2795
        %3023 = vst [vmem:[%s150 + $0x1f0] sm:$0xff] %v2797
        %3024 = vst [vmem:[%s150 + $0x1f8] sm:$0xff] %v2799
        %3025 = vst [vmem:[%s150 + $0x200] sm:$0xff] %v2803
        %3026 = vst [vmem:[%s150 + $0x208] sm:$0xff] %v2805
        %3027 = vst [vmem:[%s150 + $0x210] sm:$0xff] %v2807
        %3028 = vst [vmem:[%s150 + $0x218] sm:$0xff] %v2809
        %3029 = vst [vmem:[%s150 + $0x220] sm:$0xff] %v2813
        %3030 = vst [vmem:[%s150 + $0x228] sm:$0xff] %v2815
        %3031 = vst [vmem:[%s150 + $0x230] sm:$0xff] %v2817
        %3032 = vst [vmem:[%s150 + $0x238] sm:$0xff] %v2819
        %3033 = vst [vmem:[%s150 + $0x240] sm:$0xff] %v2823
        %3034 = vst [vmem:[%s150 + $0x248] sm:$0xff] %v2825
        %3035 = vst [vmem:[%s150 + $0x250] sm:$0xff] %v2827
        %3036 = vst [vmem:[%s150 + $0x258] sm:$0xff] %v2829
        %3037 = vst [vmem:[%s150 + $0x260] sm:$0xff] %v2833
        %3038 = vst [vmem:[%s150 + $0x268] sm:$0xff] %v2835
        %3039 = vst [vmem:[%s150 + $0x270] sm:$0xff] %v2837
        %3040 = vst [vmem:[%s150 + $0x278] sm:$0xff] %v2839
        %3041 = vst [vmem:[%s150 + $0x280] sm:$0xff] %v2843
        %3042 = vst [vmem:[%s150 + $0x288] sm:$0xff] %v2845
        %3043 = vst [vmem:[%s150 + $0x290] sm:$0xff] %v2847
        %3044 = vst [vmem:[%s150 + $0x298] sm:$0xff] %v2849
        %3045 = vst [vmem:[%s150 + $0x2a0] sm:$0xff] %v2853
        %3046 = vst [vmem:[%s150 + $0x2a8] sm:$0xff] %v2855
        %3047 = vst [vmem:[%s150 + $0x2b0] sm:$0xff] %v2857
        %3048 = vst [vmem:[%s150 + $0x2b8] sm:$0xff] %v2859
        %3049 = vst [vmem:[%s150 + $0x2c0] sm:$0xff] %v2863
        %3050 = vst [vmem:[%s150 + $0x2c8] sm:$0xff] %v2865
        %3051 = vst [vmem:[%s150 + $0x2d0] sm:$0xff] %v2867
        %3052 = vst [vmem:[%s150 + $0x2d8] sm:$0xff] %v2869
        %3053 = vst [vmem:[%s150 + $0x2e0] sm:$0xff] %v2873
        %3054 = vst [vmem:[%s150 + $0x2e8] sm:$0xff] %v2875
        %3055 = vst [vmem:[%s150 + $0x2f0] sm:$0xff] %v2877
        %3056 = vst [vmem:[%s150 + $0x2f8] sm:$0xff] %v2879
        %3057 = vst [vmem:[%s150 + $0x300] sm:$0xff] %v2883
        %3058 = vst [vmem:[%s150 + $0x308] sm:$0xff] %v2885
        %3059 = vst [vmem:[%s150 + $0x310] sm:$0xff] %v2887
        %3060 = vst [vmem:[%s150 + $0x318] sm:$0xff] %v2889
        %3061 = vst [vmem:[%s150 + $0x320] sm:$0xff] %v2893
        %3062 = vst [vmem:[%s150 + $0x328] sm:$0xff] %v2895
        %3063 = vst [vmem:[%s150 + $0x330] sm:$0xff] %v2897
        %3064 = vst [vmem:[%s150 + $0x338] sm:$0xff] %v2899
        %3065 = vst [vmem:[%s150 + $0x340] sm:$0xff] %v2903
        %3066 = vst [vmem:[%s150 + $0x348] sm:$0xff] %v2905
        %3067 = vst [vmem:[%s150 + $0x350] sm:$0xff] %v2907
        %3068 = vst [vmem:[%s150 + $0x358] sm:$0xff] %v2909
        %3069 = vst [vmem:[%s150 + $0x360] sm:$0xff] %v2913
        %3070 = vst [vmem:[%s150 + $0x368] sm:$0xff] %v2915
        %3071 = vst [vmem:[%s150 + $0x370] sm:$0xff] %v2917
        %3072 = vst [vmem:[%s150 + $0x378] sm:$0xff] %v2919
        %3073 = vst [vmem:[%s150 + $0x380] sm:$0xff] %v2923
        %3074 = vst [vmem:[%s150 + $0x388] sm:$0xff] %v2925
        %3075 = vst [vmem:[%s150 + $0x390] sm:$0xff] %v2927
        %3076 = vst [vmem:[%s150 + $0x398] sm:$0xff] %v2929
        %3077 = vst [vmem:[%s150 + $0x3a0] sm:$0xff] %v2933
        %3078 = vst [vmem:[%s150 + $0x3a8] sm:$0xff] %v2935
        %3079 = vst [vmem:[%s150 + $0x3b0] sm:$0xff] %v2937
        %3080 = vst [vmem:[%s150 + $0x3b8] sm:$0xff] %v2939
        %3081 = vst [vmem:[%s150 + $0x3c0] sm:$0xff] %v2943
        %3082 = vst [vmem:[%s150 + $0x3c8] sm:$0xff] %v2945
        %3083 = vst [vmem:[%s150 + $0x3d0] sm:$0xff] %v2947
        %3084 = vst [vmem:[%s150 + $0x3d8] sm:$0xff] %v2949
        %3085 = vst [vmem:[%s150 + $0x3e0] sm:$0xff] %v2953
        %3086 = vst [vmem:[%s150 + $0x3e8] sm:$0xff] %v2955
        %3087 = vst [vmem:[%s150 + $0x3f0] sm:$0xff] %v2957
        %3088 = vst [vmem:[%s150 + $0x3f8] sm:$0xff] %v2959
        %s3089 = sand.u32 %s68, 1
        %s3090 = sand.u32 %s68, 1
        %s3091 = smul.addr %s3090, 1024
        %s3092 = scalar_lea.vmem [#allocation2], %s3091
        // Predicated region
        $region29: #{cnn_encoder_2048f.3} parent=27 // pred_check
          %p3093 = pneg %p78
        $region30: #{cnn_encoder_2048f.3} parent=27 // pred_check_branch
          %3095 = sbr.rel (%p3093) target = $region32
        $region31: #{cnn_encoder_2048f.3} parent=27 // pred_region
          %s3096 = smul.u32 64, %s13
          %s3097 = ssub.s32 73, %s3096
          %p3098 = scmp.lt.s32.totalorder %s3097, 64
          %s3099 = scalar_select %p3098, %s3097, 64
          %s3100 = smul.u32 128, %s3099
          %s3101 = smul.u32 %s3100, 2
          %p3102 = scmp.ne.s32.totalorder 0, %s3101
          %s3103 = smul.addr %s3096, 2
          %s3104 = smul.addr %s3103, 8
          %s3105 = scalar_lea.vmem %s2, %s3104
          // Predicated region
          $region33: #{cnn_encoder_2048f.3} parent=31 // pred_check
            %p3106 = pneg %p3102
          $region34: #{cnn_encoder_2048f.3} parent=31 // pred_check_branch
            %3108 = sbr.rel (%p3106) target = $region36
          $region35: #{cnn_encoder_2048f.3} parent=31 // pred_region
            // Predicated region
            $region37: #{cnn_encoder_2048f.3} parent=35 // pred_check
              _
            $region38: #{cnn_encoder_2048f.3} parent=35 // pred_check_branch
              %3110 = sbr.rel (0) target = $region40
            $region39: #{cnn_encoder_2048f.3} parent=35 // pred_region
              %s3111 = sshrl.u32 %s3099, 5
              // While loop
              $region41: #{cnn_encoder_2048f.3} parent=39 // loop_pre_header
                _
              $region42: #{cnn_encoder_2048f.3} parent=39 // loop_header
                %s3113 = sphi 0, %s3115
                %p3114 = scmp.ge.s32.totalorder %s3113, %s3111
                %s3118 = sphi 0, %s3251
                %s3119 = sphi %s3092, %s3254
                %s3120 = sphi %s3105, %s3255
              $region43: #{cnn_encoder_2048f.3} parent=39 // loop_header_branch
                %3117 = sbr.rel (%p3114) target = $region47
              $region44: #{cnn_encoder_2048f.3} parent=39 // loop_body
                %v3121 = vld [vmem:[%s3119] sm:$0xff]
                %3122 = vst [vmem:[%s3120] sm:$0xff] %v3121
                %v3123 = vld [vmem:[%s3119 + $0x10] sm:$0xff]
                %3124 = vst [vmem:[%s3120 + $0x10] sm:$0xff] %v3123
                %v3125 = vld [vmem:[%s3119 + $0x20] sm:$0xff]
                %3126 = vst [vmem:[%s3120 + $0x20] sm:$0xff] %v3125
                %v3127 = vld [vmem:[%s3119 + $0x30] sm:$0xff]
                %3128 = vst [vmem:[%s3120 + $0x30] sm:$0xff] %v3127
                %v3129 = vld [vmem:[%s3119 + $0x40] sm:$0xff]
                %3130 = vst [vmem:[%s3120 + $0x40] sm:$0xff] %v3129
                %v3131 = vld [vmem:[%s3119 + $0x50] sm:$0xff]
                %3132 = vst [vmem:[%s3120 + $0x50] sm:$0xff] %v3131
                %v3133 = vld [vmem:[%s3119 + $0x60] sm:$0xff]
                %3134 = vst [vmem:[%s3120 + $0x60] sm:$0xff] %v3133
                %v3135 = vld [vmem:[%s3119 + $0x70] sm:$0xff]
                %3136 = vst [vmem:[%s3120 + $0x70] sm:$0xff] %v3135
                %v3137 = vld [vmem:[%s3119 + $0x80] sm:$0xff]
                %3138 = vst [vmem:[%s3120 + $0x80] sm:$0xff] %v3137
                %v3139 = vld [vmem:[%s3119 + $0x90] sm:$0xff]
                %3140 = vst [vmem:[%s3120 + $0x90] sm:$0xff] %v3139
                %v3141 = vld [vmem:[%s3119 + $0xa0] sm:$0xff]
                %3142 = vst [vmem:[%s3120 + $0xa0] sm:$0xff] %v3141
                %v3143 = vld [vmem:[%s3119 + $0xb0] sm:$0xff]
                %3144 = vst [vmem:[%s3120 + $0xb0] sm:$0xff] %v3143
                %v3145 = vld [vmem:[%s3119 + $0xc0] sm:$0xff]
                %3146 = vst [vmem:[%s3120 + $0xc0] sm:$0xff] %v3145
                %v3147 = vld [vmem:[%s3119 + $0xd0] sm:$0xff]
                %3148 = vst [vmem:[%s3120 + $0xd0] sm:$0xff] %v3147
                %v3149 = vld [vmem:[%s3119 + $0xe0] sm:$0xff]
                %3150 = vst [vmem:[%s3120 + $0xe0] sm:$0xff] %v3149
                %v3151 = vld [vmem:[%s3119 + $0xf0] sm:$0xff]
                %3152 = vst [vmem:[%s3120 + $0xf0] sm:$0xff] %v3151
                %v3153 = vld [vmem:[%s3119 + $0x100] sm:$0xff]
                %3154 = vst [vmem:[%s3120 + $0x100] sm:$0xff] %v3153
                %v3155 = vld [vmem:[%s3119 + $0x110] sm:$0xff]
                %3156 = vst [vmem:[%s3120 + $0x110] sm:$0xff] %v3155
                %v3157 = vld [vmem:[%s3119 + $0x120] sm:$0xff]
                %3158 = vst [vmem:[%s3120 + $0x120] sm:$0xff] %v3157
                %v3159 = vld [vmem:[%s3119 + $0x130] sm:$0xff]
                %3160 = vst [vmem:[%s3120 + $0x130] sm:$0xff] %v3159
                %v3161 = vld [vmem:[%s3119 + $0x140] sm:$0xff]
                %3162 = vst [vmem:[%s3120 + $0x140] sm:$0xff] %v3161
                %v3163 = vld [vmem:[%s3119 + $0x150] sm:$0xff]
                %3164 = vst [vmem:[%s3120 + $0x150] sm:$0xff] %v3163
                %v3165 = vld [vmem:[%s3119 + $0x160] sm:$0xff]
                %3166 = vst [vmem:[%s3120 + $0x160] sm:$0xff] %v3165
                %v3167 = vld [vmem:[%s3119 + $0x170] sm:$0xff]
                %3168 = vst [vmem:[%s3120 + $0x170] sm:$0xff] %v3167
                %v3169 = vld [vmem:[%s3119 + $0x180] sm:$0xff]
                %3170 = vst [vmem:[%s3120 + $0x180] sm:$0xff] %v3169
                %v3171 = vld [vmem:[%s3119 + $0x190] sm:$0xff]
                %3172 = vst [vmem:[%s3120 + $0x190] sm:$0xff] %v3171
                %v3173 = vld [vmem:[%s3119 + $0x1a0] sm:$0xff]
                %3174 = vst [vmem:[%s3120 + $0x1a0] sm:$0xff] %v3173
                %v3175 = vld [vmem:[%s3119 + $0x1b0] sm:$0xff]
                %3176 = vst [vmem:[%s3120 + $0x1b0] sm:$0xff] %v3175
                %v3177 = vld [vmem:[%s3119 + $0x1c0] sm:$0xff]
                %3178 = vst [vmem:[%s3120 + $0x1c0] sm:$0xff] %v3177
                %v3179 = vld [vmem:[%s3119 + $0x1d0] sm:$0xff]
                %3180 = vst [vmem:[%s3120 + $0x1d0] sm:$0xff] %v3179
                %v3181 = vld [vmem:[%s3119 + $0x1e0] sm:$0xff]
                %3182 = vst [vmem:[%s3120 + $0x1e0] sm:$0xff] %v3181
                %v3183 = vld [vmem:[%s3119 + $0x1f0] sm:$0xff]
                %3184 = vst [vmem:[%s3120 + $0x1f0] sm:$0xff] %v3183
                %v3185 = vld [vmem:[%s3119 + $0x8] sm:$0xff]
                %3186 = vst [vmem:[%s3120 + $0x8] sm:$0xff] %v3185
                %v3187 = vld [vmem:[%s3119 + $0x18] sm:$0xff]
                %3188 = vst [vmem:[%s3120 + $0x18] sm:$0xff] %v3187
                %v3189 = vld [vmem:[%s3119 + $0x28] sm:$0xff]
                %3190 = vst [vmem:[%s3120 + $0x28] sm:$0xff] %v3189
                %v3191 = vld [vmem:[%s3119 + $0x38] sm:$0xff]
                %3192 = vst [vmem:[%s3120 + $0x38] sm:$0xff] %v3191
                %v3193 = vld [vmem:[%s3119 + $0x48] sm:$0xff]
                %3194 = vst [vmem:[%s3120 + $0x48] sm:$0xff] %v3193
                %v3195 = vld [vmem:[%s3119 + $0x58] sm:$0xff]
                %3196 = vst [vmem:[%s3120 + $0x58] sm:$0xff] %v3195
                %v3197 = vld [vmem:[%s3119 + $0x68] sm:$0xff]
                %3198 = vst [vmem:[%s3120 + $0x68] sm:$0xff] %v3197
                %v3199 = vld [vmem:[%s3119 + $0x78] sm:$0xff]
                %3200 = vst [vmem:[%s3120 + $0x78] sm:$0xff] %v3199
                %v3201 = vld [vmem:[%s3119 + $0x88] sm:$0xff]
                %3202 = vst [vmem:[%s3120 + $0x88] sm:$0xff] %v3201
                %v3203 = vld [vmem:[%s3119 + $0x98] sm:$0xff]
                %3204 = vst [vmem:[%s3120 + $0x98] sm:$0xff] %v3203
                %v3205 = vld [vmem:[%s3119 + $0xa8] sm:$0xff]
                %3206 = vst [vmem:[%s3120 + $0xa8] sm:$0xff] %v3205
                %v3207 = vld [vmem:[%s3119 + $0xb8] sm:$0xff]
                %3208 = vst [vmem:[%s3120 + $0xb8] sm:$0xff] %v3207
                %v3209 = vld [vmem:[%s3119 + $0xc8] sm:$0xff]
                %3210 = vst [vmem:[%s3120 + $0xc8] sm:$0xff] %v3209
                %v3211 = vld [vmem:[%s3119 + $0xd8] sm:$0xff]
                %3212 = vst [vmem:[%s3120 + $0xd8] sm:$0xff] %v3211
                %v3213 = vld [vmem:[%s3119 + $0xe8] sm:$0xff]
                %3214 = vst [vmem:[%s3120 + $0xe8] sm:$0xff] %v3213
                %v3215 = vld [vmem:[%s3119 + $0xf8] sm:$0xff]
                %3216 = vst [vmem:[%s3120 + $0xf8] sm:$0xff] %v3215
                %v3217 = vld [vmem:[%s3119 + $0x108] sm:$0xff]
                %3218 = vst [vmem:[%s3120 + $0x108] sm:$0xff] %v3217
                %v3219 = vld [vmem:[%s3119 + $0x118] sm:$0xff]
                %3220 = vst [vmem:[%s3120 + $0x118] sm:$0xff] %v3219
                %v3221 = vld [vmem:[%s3119 + $0x128] sm:$0xff]
                %3222 = vst [vmem:[%s3120 + $0x128] sm:$0xff] %v3221
                %v3223 = vld [vmem:[%s3119 + $0x138] sm:$0xff]
                %3224 = vst [vmem:[%s3120 + $0x138] sm:$0xff] %v3223
                %v3225 = vld [vmem:[%s3119 + $0x148] sm:$0xff]
                %3226 = vst [vmem:[%s3120 + $0x148] sm:$0xff] %v3225
                %v3227 = vld [vmem:[%s3119 + $0x158] sm:$0xff]
                %3228 = vst [vmem:[%s3120 + $0x158] sm:$0xff] %v3227
                %v3229 = vld [vmem:[%s3119 + $0x168] sm:$0xff]
                %3230 = vst [vmem:[%s3120 + $0x168] sm:$0xff] %v3229
                %v3231 = vld [vmem:[%s3119 + $0x178] sm:$0xff]
                %3232 = vst [vmem:[%s3120 + $0x178] sm:$0xff] %v3231
                %v3233 = vld [vmem:[%s3119 + $0x188] sm:$0xff]
                %3234 = vst [vmem:[%s3120 + $0x188] sm:$0xff] %v3233
                %v3235 = vld [vmem:[%s3119 + $0x198] sm:$0xff]
                %3236 = vst [vmem:[%s3120 + $0x198] sm:$0xff] %v3235
                %v3237 = vld [vmem:[%s3119 + $0x1a8] sm:$0xff]
                %3238 = vst [vmem:[%s3120 + $0x1a8] sm:$0xff] %v3237
                %v3239 = vld [vmem:[%s3119 + $0x1b8] sm:$0xff]
                %3240 = vst [vmem:[%s3120 + $0x1b8] sm:$0xff] %v3239
                %v3241 = vld [vmem:[%s3119 + $0x1c8] sm:$0xff]
                %3242 = vst [vmem:[%s3120 + $0x1c8] sm:$0xff] %v3241
                %v3243 = vld [vmem:[%s3119 + $0x1d8] sm:$0xff]
                %3244 = vst [vmem:[%s3120 + $0x1d8] sm:$0xff] %v3243
                %v3245 = vld [vmem:[%s3119 + $0x1e8] sm:$0xff]
                %3246 = vst [vmem:[%s3120 + $0x1e8] sm:$0xff] %v3245
                %v3247 = vld [vmem:[%s3119 + $0x1f8] sm:$0xff]
                %3248 = vst [vmem:[%s3120 + $0x1f8] sm:$0xff] %v3247
                %s3249 = sadd.s32 1, %s3118
                %p3250 = scmp.ge.s32.totalorder %s3249, %s3111
                %s3251 = scalar_select %p3250, 0, %s3249
                %s3252 = smul.u32 %s3251, 512
                %s3253 = smul.u32 %s3251, 512
                %s3254 = scalar_lea.vmem %s3092, %s3252 [#allocation2]
                %s3255 = scalar_lea.vmem %s3105, %s3253
              $region45: #{cnn_encoder_2048f.3} parent=39 // loop_footer
                %s3115 = sadd.s32 %s3113, 1
              $region46: #{cnn_encoder_2048f.3} parent=39 // loop_footer_branch
                %3112 = sbr.rel target = $region42
              $region47: #{cnn_encoder_2048f.3} parent=39 // loop_exit
                _
              %s3256 = sshrl.u32 %s3099, 5
              %s3257 = sand.u32 %s3099, 31
              %s3258 = smul.u32 %s3256, 32
              %s3259 = smul.u32 16, %s3258
              %s3260 = scalar_lea.vmem %s3092, %s3259 [#allocation2]
              %s3261 = smul.u32 16, %s3258
              %s3262 = scalar_lea.vmem %s3105, %s3261
              // While loop
              $region48: #{cnn_encoder_2048f.3} parent=39 // loop_pre_header
                _
              $region49: #{cnn_encoder_2048f.3} parent=39 // loop_header
                %s3264 = sphi 0, %s3266
                %p3265 = scmp.ge.s32.totalorder %s3264, %s3257
                %s3269 = sphi 0, %s3278
                %s3270 = sphi %s3260, %s3281
                %s3271 = sphi %s3262, %s3282
              $region50: #{cnn_encoder_2048f.3} parent=39 // loop_header_branch
                %3268 = sbr.rel (%p3265) target = $region54
              $region51: #{cnn_encoder_2048f.3} parent=39 // loop_body
                %v3272 = vld [vmem:[%s3270] sm:$0xff]
                %3273 = vst [vmem:[%s3271] sm:$0xff] %v3272
                %v3274 = vld [vmem:[%s3270 + $0x8] sm:$0xff]
                %3275 = vst [vmem:[%s3271 + $0x8] sm:$0xff] %v3274
                %s3276 = sadd.s32 1, %s3269
                %p3277 = scmp.ge.s32.totalorder %s3276, %s3257
                %s3278 = scalar_select %p3277, 0, %s3276
                %s3279 = smul.u32 %s3278, 16
                %s3280 = smul.u32 %s3278, 16
                %s3281 = scalar_lea.vmem %s3260, %s3279 [#allocation2]
                %s3282 = scalar_lea.vmem %s3262, %s3280
              $region52: #{cnn_encoder_2048f.3} parent=39 // loop_footer
                %s3266 = sadd.s32 %s3264, 1
              $region53: #{cnn_encoder_2048f.3} parent=39 // loop_footer_branch
                %3263 = sbr.rel target = $region49
              $region54: #{cnn_encoder_2048f.3} parent=39 // loop_exit
                _
            $region40: #{cnn_encoder_2048f.3} parent=35 // pred_fallthru
              _
            // Predicated region
            $region55: #{cnn_encoder_2048f.3} parent=35 // pred_check
              _
            $region56: #{cnn_encoder_2048f.3} parent=35 // pred_check_branch
              %3284 = sbr.rel target = $region58
            $region57: #{cnn_encoder_2048f.3} parent=35 // pred_region
              _
            $region58: #{cnn_encoder_2048f.3} parent=35 // pred_fallthru
              _
          $region36: #{cnn_encoder_2048f.3} parent=31 // pred_fallthru
            _
          %3285 = vnop
        $region32: #{cnn_encoder_2048f.3} parent=27 // pred_fallthru
          _
      $region28: #{cnn_encoder_2048f.3} parent=5 // pred_fallthru
        _
      %p3286 = scmp.le.s32.totalorder 2, %s8
      // Predicated region
      $region59: #{cnn_encoder_2048f.3} parent=5 // pred_check
        %p3287 = pneg %p3286
      $region60: #{cnn_encoder_2048f.3} parent=5 // pred_check_branch
        %3289 = sbr.rel (%p3287) target = $region62
      $region61: #{cnn_encoder_2048f.3} parent=5 // pred_region
        %s3290 = ssub.s32 %s8, 2
        // Predicated region
        $region63: #{cnn_encoder_2048f.3} parent=61 // pred_check
          %p3291 = pneg %p84
        $region64: #{cnn_encoder_2048f.3} parent=61 // pred_check_branch
          %3293 = sbr.rel (%p3291) target = $region66
        $region65: #{cnn_encoder_2048f.3} parent=61 // pred_region
          %s3294 = sand.u32 %s69, 1
          %s3295 = sand.u32 %s69, 1
          %s3296 = smul.addr %s3295, 1024
          %s3297 = scalar_lea.vmem [#allocation2], %s3296
        $region66: #{cnn_encoder_2048f.3} parent=61 // pred_fallthru
          _
      $region62: #{cnn_encoder_2048f.3} parent=5 // pred_fallthru
        _
    $region6: #{cnn_encoder_2048f.3} parent=1 // loop_footer
      %s12 = sadd.s32 1, %s8
    $region7: #{cnn_encoder_2048f.3} parent=1 // loop_footer_branch
      %7 = sbr.rel target = $region3
    $region8: #{cnn_encoder_2048f.3} parent=1 // loop_exit
      _

</llo_original>
